<compile_context>
chip_gen: v7x
topology: tpu7x:2x2x1
jax: 0.10.0
libtpu: 0.0.40
codegen_flags: <defaults>
</compile_context>

<pallas_src>
import functools

import jax
import jax.numpy as jnp
from jax import lax
from jax.experimental import pallas as pl
from jax.experimental.pallas import tpu as pltpu


# ------------------------------ Pallas kernel -------------------------------

def _bottleneck_kernel(x_ref, w1_ref, b1_ref, w2_ref, b2_ref, w3_ref, b3_ref,
                       o_ref, y1l_ref, y1c_ref, y1r_ref, acc_ref,
                       *, H, W, TH, d, PADL):
    """Fused Bottleneck forward for one (image, row-tile) grid step.

    x_ref : (Hp, Wp, Cinp) f32  spatially zero-padded input (top/bot halo = d,
                                left halo = PADL >= d, 8-aligned)
    o_ref : (TH, Wp, Coutp) f32 padded-width output rows (lane-dense stores)
    y1*_ref: (R,  Pp) bf16      conv1 output, flattened; left/center/right
                                width-shifted copies (conv2 taps read these)
    acc_ref: (M,  Pp) f32       conv2 accumulator
    """
    Hp, Wp, Cinp = x_ref.shape
    Pp = w1_ref.shape[1]
    Coutp = w3_ref.shape[1]
    THp = TH + 2 * d            # y1 rows needed for this output row tile
    R = THp * Wp                # flattened y1 rows
    M = TH * Wp                 # flattened output rows

    t = pl.program_id(1)
    row0 = t * TH               # first padded row of this tile's window

    # ---- conv1 (1x1) + bn1 + relu over the tile's halo'd row window --------
    xw = x_ref[pl.ds(row0, THp), :, :]                       # leading-axis slice
    x2d = xw.reshape(R, Cinp).astype(jnp.bfloat16)           # Wp % 8 == 0 -> no-op
    y1 = jnp.dot(x2d, w1_ref[...], preferred_element_type=jnp.float32)
    y1 = jnp.maximum(y1 + b1_ref[...], 0.0)

    # Zero the spatial-padding positions (conv2 padding semantics). The mask is
    # generated in-kernel (iota) instead of being DMA'd from HBM.
    rr = jax.lax.broadcasted_iota(jnp.int32, (THp, Wp, Pp), 0) + row0
    cc = jax.lax.broadcasted_iota(jnp.int32, (THp, Wp, Pp), 1)
    inside = (rr >= d) & (rr < d + H) & (cc >= PADL) & (cc < PADL + W)
    y1 = jnp.where(inside, y1.reshape(THp, Wp, Pp), 0.0).reshape(R, Pp)

    # Width-shifted copies, built once per tile.  A flat shift of +-d equals a
    # W shift of +-d for every interior column because PADL >= d, Wp >= PADL+W+d
    # and the border columns are exactly zero; the 9 conv2 taps below are then
    # free, aligned leading-axis slices (no per-tap retile copies).
    zrow = jnp.zeros((d, Pp), jnp.float32)
    y1c_ref[...] = y1.astype(jnp.bfloat16)
    y1l_ref[...] = jnp.concatenate([zrow, y1[:R - d]], axis=0).astype(jnp.bfloat16)
    y1r_ref[...] = jnp.concatenate([y1[d:], zrow], axis=0).astype(jnp.bfloat16)

    # ---- conv2 (3x3, dilation d, padding d) + bn2 + relu --------------------
    # 9 accumulated MXU matmuls into an f32 VMEM scratch (pure acc += dot chain).
    srcs = (y1l_ref, y1c_ref, y1r_ref)                       # indexed by kw
    first = True
    for kh in range(3):
        r0 = kh * d * Wp                                     # multiple of 8
        for kw in range(3):
            part = jnp.dot(srcs[kw][r0:r0 + M, :], w2_ref[kh * 3 + kw],
                           preferred_element_type=jnp.float32)
            if first:
                acc_ref[...] = part
                first = False
            else:
                acc_ref[...] += part
    y2 = jnp.maximum(acc_ref[...] + b2_ref[...], 0.0).astype(jnp.bfloat16)

    # ---- conv3 (1x1) + bn3 + residual + relu (residual added in f32) -------
    resid = x_ref[pl.ds(row0 + d, TH), :, :].reshape(M, Cinp)
    y3 = jnp.dot(y2, w3_ref[...], preferred_element_type=jnp.float32)
    y3 = jnp.maximum(y3 + b3_ref[...] + resid, 0.0)
    o_ref[...] = y3.reshape(TH, Wp, Coutp)


# ------------------------------ host wrapper --------------------------------

def _round_up(x, m):
    return (x + m - 1) // m * m


def _bn_fold(bn, eps=1e-5):
    gamma, beta, mean, var = bn
    scale = gamma / jnp.sqrt(var + eps)
    return scale, beta - mean * scale


def bottleneck_forward(x_nchw, w1_t, w2_t, w3_t, bn1, bn2, bn3,
                       stride=1, dilation=1, row_tile=4):
    """Pallas implementation of Bottleneck.forward with downsample=None."""
    N, Cin, H, W = x_nchw.shape
    P = w1_t.shape[0]
    Cout = w3_t.shape[0]
    d = dilation

    # downsample=None => residual is the raw input; only stride=1 is well-formed.
    assert stride == 1, "stride>1 with downsample=None is not representable"
    assert Cin == Cout == 4 * P, "downsample=None requires inplanes == planes*4"

    # Row tile: largest divisor of H that is <= row_tile (>=4 grid steps / core).
    TH = 1
    for cand in range(min(row_tile, H), 0, -1):
        if H % cand == 0:
            TH = cand
            break
    nT = H // TH
    THp = TH + 2 * d

    LANE = 128
    Cinp = _round_up(Cin, LANE)
    Pp = _round_up(P, LANE)
    Coutp = _round_up(Cout, LANE)

    PADL = _round_up(max(d, 1), 8)            # left halo: sublane-aligned, >= d
    Wp = PADL + _round_up(W + d, 8)           # right halo >= d, Wp % 8 == 0
    Hp = H + 2 * d
    R = THp * Wp
    M = TH * Wp

    # --- fold BN (running stats) into weights + bias; pad channels; bf16 weights.
    s1, b1 = _bn_fold(bn1)
    s2, b2 = _bn_fold(bn2)
    s3, b3 = _bn_fold(bn3)

    w1 = jnp.transpose(w1_t[:, :, 0, 0], (1, 0)) * s1[None, :]            # (Cin, P)
    w3 = jnp.transpose(w3_t[:, :, 0, 0], (1, 0)) * s3[None, :]            # (P, Cout)
    w2 = jnp.transpose(w2_t, (2, 3, 1, 0)) * s2[None, None, None, :]      # (3,3,P,P)
    w2 = w2.reshape(9, P, P)                                              # tap = kh*3+kw

    def pad2(a, r, c):
        return jnp.pad(a, ((0, r - a.shape[0]), (0, c - a.shape[1])))

    w1p = pad2(w1, Cinp, Pp).astype(jnp.bfloat16)
    w3p = pad2(w3, Pp, Coutp).astype(jnp.bfloat16)
    w2p = jnp.pad(w2, ((0, 0), (0, Pp - P), (0, Pp - P))).astype(jnp.bfloat16)
    b1p = jnp.pad(b1, (0, Pp - P)).reshape(1, Pp).astype(jnp.float32)
    b2p = jnp.pad(b2, (0, Pp - P)).reshape(1, Pp).astype(jnp.float32)
    b3p = jnp.pad(b3, (0, Coutp - Cout)).reshape(1, Coutp).astype(jnp.float32)

    # --- NCHW -> NHWC; zero-pad: H halo = d, W left halo = PADL, channels to 128.
    x = jnp.transpose(x_nchw, (0, 2, 3, 1))
    xp = jnp.pad(x, ((0, 0), (d, d), (PADL, Wp - W - PADL), (0, Cinp - Cin)))

    kernel = functools.partial(_bottleneck_kernel,
                               H=H, W=W, TH=TH, d=d, PADL=PADL)

    # Weight/bias blocks use constant index_maps -> DMA'd once and kept resident;
    # the per-image x block is re-used across the row-tile axis (re-DMA only when
    # n changes, prefetched while the previous image's last tiles compute).
    out_padded = pl.pallas_call(
        kernel,
        out_shape=jax.ShapeDtypeStruct((N, H, Wp, Coutp), jnp.float32),
        grid_spec=pltpu.PrefetchScalarGridSpec(
            num_scalar_prefetch=0,
            grid=(N, nT),
            in_specs=[
                pl.BlockSpec((None, Hp, Wp, Cinp), lambda n, t: (n, 0, 0, 0)),
                pl.BlockSpec((Cinp, Pp), lambda n, t: (0, 0)),
                pl.BlockSpec((1, Pp), lambda n, t: (0, 0)),
                pl.BlockSpec((9, Pp, Pp), lambda n, t: (0, 0, 0)),
                pl.BlockSpec((1, Pp), lambda n, t: (0, 0)),
                pl.BlockSpec((Pp, Coutp), lambda n, t: (0, 0)),
                pl.BlockSpec((1, Coutp), lambda n, t: (0, 0)),
            ],
            out_specs=pl.BlockSpec((None, TH, Wp, Coutp),
                                   lambda n, t: (n, t, 0, 0)),
            scratch_shapes=[
                pltpu.VMEM((R, Pp), jnp.bfloat16),   # y1 shifted left  (kw=0)
                pltpu.VMEM((R, Pp), jnp.bfloat16),   # y1 center        (kw=1)
                pltpu.VMEM((R, Pp), jnp.bfloat16),   # y1 shifted right (kw=2)
                pltpu.VMEM((M, Pp), jnp.float32),    # conv2 accumulator
            ],
        ),
        compiler_params=pltpu.CompilerParams(
            dimension_semantics=("parallel", "arbitrary"),
            vmem_limit_bytes=32 * 1024 * 1024),
    )(xp, w1p, b1p, w2p, b2p, w3p, b3p)

    out = out_padded[:, :, PADL:PADL + W, :Cout]   # drop spatial/channel padding
    return jnp.transpose(out, (0, 3, 1, 2))        # back to NCHW


# -------------------------------- references --------------------------------

def _reference_exact(x, w1_t, w2_t, w3_t, bn1, bn2, bn3, dilation, eps=1e-5):
    """Exact f32 reference (HIGHEST precision convs, BN with running stats)."""
    def conv(inp, w, dil=1, pad=0):
        return lax.conv_general_dilated(
            inp, w, (1, 1), [(pad, pad), (pad, pad)], rhs_dilation=(dil, dil),
            dimension_numbers=("NCHW", "OIHW", "NCHW"),
            precision=lax.Precision.HIGHEST)

    def bn(y, p):
        g, b, m, v = p
        inv = g / jnp.sqrt(v + eps)
        return (y - m[None, :, None, None]) * inv[None, :, None, None] \
            + b[None, :, None, None]

    out = jax.nn.relu(bn(conv(x, w1_t), bn1))
    out = jax.nn.relu(bn(conv(out, w2_t, dil=dilation, pad=dilation), bn2))
    out = bn(conv(out, w3_t), bn3)
    return jax.nn.relu(out + x)


def _reference_bf16(x, w1_t, w2_t, w3_t, bn1, bn2, bn3, dilation, eps=1e-5):
    """Reference mirroring the kernel's numerics: BN folded into weights,
    bf16 matmul operands, f32 accumulation, f32 residual."""
    def fold(w_oihw, p):
        g, b, m, v = p
        s = g / jnp.sqrt(v + eps)
        return w_oihw * s[:, None, None, None], b - m * s

    w1f, b1 = fold(w1_t, bn1)
    w2f, b2 = fold(w2_t, bn2)
    w3f, b3 = fold(w3_t, bn3)

    def conv(inp, w, dil=1, pad=0):
        return lax.conv_general_dilated(
            inp.astype(jnp.bfloat16), w.astype(jnp.bfloat16),
            (1, 1), [(pad, pad), (pad, pad)], rhs_dilation=(dil, dil),
            dimension_numbers=("NCHW", "OIHW", "NCHW"),
            preferred_element_type=jnp.float32)

    out = jax.nn.relu(conv(x, w1f) + b1[None, :, None, None])
    out = jax.nn.relu(conv(out, w2f, dil=dilation, pad=dilation)
                      + b2[None, :, None, None])
    out = conv(out, w3f) + b3[None, :, None, None] + x
    return jax.nn.relu(out)


# ----------------------------------- main ------------------------------------

if __name__ == "__main__":
    N, H, W = 2, 16, 16
    planes = 4
    inplanes = planes * 4          # downsample=None => inplanes == planes*4
    stride, dilation = 1, 1

    key = jax.random.PRNGKey(0)
    keys = jax.random.split(key, 8)
    x = jax.random.normal(keys[0], (N, inplanes, H, W), jnp.float32)

    # PyTorch-layout conv weights (OIHW), deterministic init.
    w1_t = jax.random.normal(keys[1], (planes, inplanes, 1, 1), jnp.float32) * 0.1
    w2_t = jax.random.normal(keys[2], (planes, planes, 3, 3), jnp.float32) * 0.1
    w3_t = jax.random.normal(keys[3], (planes * 4, planes, 1, 1), jnp.float32) * 0.1

    def bn_params(k, C):
        k1, k2, k3, k4 = jax.random.split(k, 4)
        gamma = jax.random.uniform(k1, (C,), minval=0.5, maxval=1.5)
        beta = jax.random.normal(k2, (C,)) * 0.1
        mean = jax.random.normal(k3, (C,)) * 0.1
        var = jax.random.uniform(k4, (C,), minval=0.5, maxval=1.5)
        return (gamma, beta, mean, var)

    bn1 = bn_params(keys[4], planes)
    bn2 = bn_params(keys[5], planes)
    bn3 = bn_params(keys[6], planes * 4)

    fwd = jax.jit(functools.partial(bottleneck_forward,
                                    stride=stride, dilation=dilation))
    out = jax.block_until_ready(fwd(x, w1_t, w2_t, w3_t, bn1, bn2, bn3))
    assert out.shape == (N, planes * 4, H, W)

    # Tight check vs a conv pipeline that mirrors the kernel's numerics.
    ref_b = _reference_bf16(x, w1_t, w2_t, w3_t, bn1, bn2, bn3, dilation)
    assert jnp.allclose(out, ref_b, atol=1e-3, rtol=1e-3), \
        float(jnp.max(jnp.abs(out - ref_b)))

    # Sanity check vs the exact f32 reference (bf16 MXU operands => looser tol).
    ref_f = _reference_exact(x, w1_t, w2_t, w3_t, bn1, bn2, bn3, dilation)
    assert jnp.allclose(out, ref_f, atol=5e-2, rtol=5e-2), \
        float(jnp.max(jnp.abs(out - ref_f)))

    print("KERNEL_OK")
</pallas_src>

<mosaic_0001>
module attributes {stable_mosaic.version = 11 : i64} {
  func.func @_bottleneck_kernel(%arg0: i32, %arg1: i32, %arg2: memref<1x18x32x128xf32, #tpu.memory_space<vmem>>, %arg3: memref<128x128xbf16, #tpu.memory_space<vmem>>, %arg4: memref<1x128xf32, #tpu.memory_space<vmem>>, %arg5: memref<9x128x128xbf16, #tpu.memory_space<vmem>>, %arg6: memref<1x128xf32, #tpu.memory_space<vmem>>, %arg7: memref<128x128xbf16, #tpu.memory_space<vmem>>, %arg8: memref<1x128xf32, #tpu.memory_space<vmem>>, %arg9: memref<1x4x32x128xf32, #tpu.memory_space<vmem>>, %arg10: memref<192x128xbf16, #tpu.memory_space<vmem>>, %arg11: memref<192x128xbf16, #tpu.memory_space<vmem>>, %arg12: memref<192x128xbf16, #tpu.memory_space<vmem>>, %arg13: memref<128x128xf32, #tpu.memory_space<vmem>>) attributes {dimension_semantics = [#tpu.dimension_semantics<parallel>, #tpu.dimension_semantics<arbitrary>], iteration_bounds = array<i64: 2, 4>, scalar_prefetch = 0 : i64, scratch_operands = 4 : i64, tpu.core_type = #tpu.core_type<tc>, window_params = [{transform_indices = @transform_0, window_bounds = array<i64: 1, 18, 32, 128>}, {pipeline_mode = #tpu.pipeline_mode<synchronous>, transform_indices = @transform_1, window_bounds = array<i64: 128, 128>}, {pipeline_mode = #tpu.pipeline_mode<synchronous>, transform_indices = @transform_2, window_bounds = array<i64: 1, 128>}, {pipeline_mode = #tpu.pipeline_mode<synchronous>, transform_indices = @transform_3, window_bounds = array<i64: 9, 128, 128>}, {pipeline_mode = #tpu.pipeline_mode<synchronous>, transform_indices = @transform_4, window_bounds = array<i64: 1, 128>}, {pipeline_mode = #tpu.pipeline_mode<synchronous>, transform_indices = @transform_5, window_bounds = array<i64: 128, 128>}, {pipeline_mode = #tpu.pipeline_mode<synchronous>, transform_indices = @transform_6, window_bounds = array<i64: 1, 128>}, {transform_indices = @transform_7, window_bounds = array<i64: 1, 4, 32, 128>}]} {
    %c4_i32 = arith.constant 4 : i32
    %0 = arith.muli %arg1, %c4_i32 : i32
    %c0 = arith.constant 0 : index
    %1 = arith.index_cast %0 : i32 to index
    %c0_0 = arith.constant 0 : index
    %c0_1 = arith.constant 0 : index
    %2 = vector.load %arg2[%c0, %1, %c0_0, %c0_1] : memref<1x18x32x128xf32, #tpu.memory_space<vmem>>, vector<1x6x32x128xf32>
    %3 = vector.shape_cast %2 : vector<1x6x32x128xf32> to vector<6x32x128xf32>
    %4 = vector.shape_cast %3 : vector<6x32x128xf32> to vector<192x128xf32>
    %5 = arith.truncf %4 : vector<192x128xf32> to vector<192x128xbf16>
    %c0_2 = arith.constant 0 : index
    %c0_3 = arith.constant 0 : index
    %6 = vector.load %arg3[%c0_2, %c0_3] : memref<128x128xbf16, #tpu.memory_space<vmem>>, vector<128x128xbf16>
    %cst = arith.constant dense<0.000000e+00> : vector<192x128xf32>
    %7 = tpu.matmul %5, %6, %cst {dimension_numbers = #tpu.dot_dimension_numbers<[1], [0], [0], [1], [0, 0, 1, 1], [], []>} : vector<192x128xbf16>, vector<128x128xbf16>, vector<192x128xf32> -> vector<192x128xf32>
    %c0_4 = arith.constant 0 : index
    %c0_5 = arith.constant 0 : index
    %8 = vector.load %arg4[%c0_4, %c0_5] : memref<1x128xf32, #tpu.memory_space<vmem>>, vector<1x128xf32>
    %9 = vector.broadcast %8 : vector<1x128xf32> to vector<192x128xf32>
    %10 = arith.addf %7, %9 : vector<192x128xf32>
    %cst_6 = arith.constant 0.000000e+00 : f32
    %11 = vector.broadcast %cst_6 : f32 to vector<192x128xf32>
    %12 = arith.maximumf %10, %11 : vector<192x128xf32>
    %13 = tpu.iota {dimensions = array<i32: 0>} : vector<6x32x128xi32>
    %14 = vector.broadcast %0 : i32 to vector<6x32x128xi32>
    %15 = arith.addi %13, %14 : vector<6x32x128xi32>
    %16 = tpu.iota {dimensions = array<i32: 1>} : vector<6x32x128xi32>
    %c1_i32 = arith.constant 1 : i32
    %17 = vector.broadcast %c1_i32 : i32 to vector<6x32x128xi32>
    %18 = arith.cmpi sge, %15, %17 : vector<6x32x128xi32>
    %c17_i32 = arith.constant 17 : i32
    %19 = vector.broadcast %c17_i32 : i32 to vector<6x32x128xi32>
    %20 = arith.cmpi slt, %15, %19 : vector<6x32x128xi32>
    %21 = arith.andi %18, %20 : vector<6x32x128xi1>
    %c8_i32 = arith.constant 8 : i32
    %22 = vector.broadcast %c8_i32 : i32 to vector<6x32x128xi32>
    %23 = arith.cmpi sge, %16, %22 : vector<6x32x128xi32>
    %24 = arith.andi %21, %23 : vector<6x32x128xi1>
    %c24_i32 = arith.constant 24 : i32
    %25 = vector.broadcast %c24_i32 : i32 to vector<6x32x128xi32>
    %26 = arith.cmpi slt, %16, %25 : vector<6x32x128xi32>
    %27 = arith.andi %24, %26 : vector<6x32x128xi1>
    %28 = vector.shape_cast %12 : vector<192x128xf32> to vector<6x32x128xf32>
    %cst_7 = arith.constant 0.000000e+00 : f32
    %29 = vector.broadcast %cst_7 : f32 to vector<6x32x128xf32>
    %30 = arith.select %27, %28, %29 : vector<6x32x128xi1>, vector<6x32x128xf32>
    %31 = vector.shape_cast %30 : vector<6x32x128xf32> to vector<192x128xf32>
    %cst_8 = arith.constant 0.000000e+00 : f32
    %32 = vector.broadcast %cst_8 : f32 to vector<1x128xf32>
    %33 = arith.truncf %31 : vector<192x128xf32> to vector<192x128xbf16>
    %c0_9 = arith.constant 0 : index
    %c0_10 = arith.constant 0 : index
    %34 = vector.load %arg11[%c0_9, %c0_10] : memref<192x128xbf16, #tpu.memory_space<vmem>>, vector<192x128xbf16>
    tpu.vector_store %arg11[%c0_9, %c0_10], %33 {strides = array<i32>} : memref<192x128xbf16, #tpu.memory_space<vmem>>, vector<192x128xbf16>,
    %35 = vector.extract_strided_slice %31 {offsets = [0, 0], sizes = [191, 128], strides = [1, 1]} : vector<192x128xf32> to vector<191x128xf32>
    %36 = tpu.concatenate %32, %35 in 0 : vector<1x128xf32>, vector<191x128xf32> -> vector<192x128xf32>
    %37 = arith.truncf %36 : vector<192x128xf32> to vector<192x128xbf16>
    %c0_11 = arith.constant 0 : index
    %c0_12 = arith.constant 0 : index
    %38 = vector.load %arg10[%c0_11, %c0_12] : memref<192x128xbf16, #tpu.memory_space<vmem>>, vector<192x128xbf16>
    tpu.vector_store %arg10[%c0_11, %c0_12], %37 {strides = array<i32>} : memref<192x128xbf16, #tpu.memory_space<vmem>>, vector<192x128xbf16>,
    %39 = vector.extract_strided_slice %31 {offsets = [1, 0], sizes = [191, 128], strides = [1, 1]} : vector<192x128xf32> to vector<191x128xf32>
    %40 = tpu.concatenate %39, %32 in 0 : vector<191x128xf32>, vector<1x128xf32> -> vector<192x128xf32>
    %41 = arith.truncf %40 : vector<192x128xf32> to vector<192x128xbf16>
    %c0_13 = arith.constant 0 : index
    %c0_14 = arith.constant 0 : index
    %42 = vector.load %arg12[%c0_13, %c0_14] : memref<192x128xbf16, #tpu.memory_space<vmem>>, vector<192x128xbf16>
    tpu.vector_store %arg12[%c0_13, %c0_14], %41 {strides = array<i32>} : memref<192x128xbf16, #tpu.memory_space<vmem>>, vector<192x128xbf16>,
    %c0_15 = arith.constant 0 : index
    %c0_16 = arith.constant 0 : index
    %43 = vector.load %arg10[%c0_15, %c0_16] : memref<192x128xbf16, #tpu.memory_space<vmem>>, vector<128x128xbf16>
    %c0_17 = arith.constant 0 : index
    %c0_18 = arith.constant 0 : index
    %c0_19 = arith.constant 0 : index
    %44 = vector.load %arg5[%c0_17, %c0_18, %c0_19] : memref<9x128x128xbf16, #tpu.memory_space<vmem>>, vector<1x128x128xbf16>
    %45 = vector.shape_cast %44 : vector<1x128x128xbf16> to vector<128x128xbf16>
    %cst_20 = arith.constant dense<0.000000e+00> : vector<128x128xf32>
    %46 = tpu.matmul %43, %45, %cst_20 {dimension_numbers = #tpu.dot_dimension_numbers<[1], [0], [0], [1], [0, 0, 1, 1], [], []>} : vector<128x128xbf16>, vector<128x128xbf16>, vector<128x128xf32> -> vector<128x128xf32>
    %c0_21 = arith.constant 0 : index
    %c0_22 = arith.constant 0 : index
    %47 = vector.load %arg13[%c0_21, %c0_22] : memref<128x128xf32, #tpu.memory_space<vmem>>, vector<128x128xf32>
    tpu.vector_store %arg13[%c0_21, %c0_22], %46 {strides = array<i32>} : memref<128x128xf32, #tpu.memory_space<vmem>>, vector<128x128xf32>,
    %c0_23 = arith.constant 0 : index
    %c0_24 = arith.constant 0 : index
    %48 = vector.load %arg11[%c0_23, %c0_24] : memref<192x128xbf16, #tpu.memory_space<vmem>>, vector<128x128xbf16>
    %c1 = arith.constant 1 : index
    %c0_25 = arith.constant 0 : index
    %c0_26 = arith.constant 0 : index
    %49 = vector.load %arg5[%c1, %c0_25, %c0_26] : memref<9x128x128xbf16, #tpu.memory_space<vmem>>, vector<1x128x128xbf16>
    %50 = vector.shape_cast %49 : vector<1x128x128xbf16> to vector<128x128xbf16>
    %cst_27 = arith.constant dense<0.000000e+00> : vector<128x128xf32>
    %51 = tpu.matmul %48, %50, %cst_27 {dimension_numbers = #tpu.dot_dimension_numbers<[1], [0], [0], [1], [0, 0, 1, 1], [], []>} : vector<128x128xbf16>, vector<128x128xbf16>, vector<128x128xf32> -> vector<128x128xf32>
    %c0_28 = arith.constant 0 : index
    %c0_29 = arith.constant 0 : index
    %52 = vector.load %arg13[%c0_28, %c0_29] : memref<128x128xf32, #tpu.memory_space<vmem>>, vector<128x128xf32>
    %53 = arith.addf %52, %51 : vector<128x128xf32>
    %c0_30 = arith.constant 0 : index
    %c0_31 = arith.constant 0 : index
    %54 = vector.load %arg13[%c0_30, %c0_31] : memref<128x128xf32, #tpu.memory_space<vmem>>, vector<128x128xf32>
    tpu.vector_store %arg13[%c0_30, %c0_31], %53 {strides = array<i32>} : memref<128x128xf32, #tpu.memory_space<vmem>>, vector<128x128xf32>,
    %c0_32 = arith.constant 0 : index
    %c0_33 = arith.constant 0 : index
    %55 = vector.load %arg12[%c0_32, %c0_33] : memref<192x128xbf16, #tpu.memory_space<vmem>>, vector<128x128xbf16>
    %c2 = arith.constant 2 : index
    %c0_34 = arith.constant 0 : index
    %c0_35 = arith.constant 0 : index
    %56 = vector.load %arg5[%c2, %c0_34, %c0_35] : memref<9x128x128xbf16, #tpu.memory_space<vmem>>, vector<1x128x128xbf16>
    %57 = vector.shape_cast %56 : vector<1x128x128xbf16> to vector<128x128xbf16>
    %cst_36 = arith.constant dense<0.000000e+00> : vector<128x128xf32>
    %58 = tpu.matmul %55, %57, %cst_36 {dimension_numbers = #tpu.dot_dimension_numbers<[1], [0], [0], [1], [0, 0, 1, 1], [], []>} : vector<128x128xbf16>, vector<128x128xbf16>, vector<128x128xf32> -> vector<128x128xf32>
    %c0_37 = arith.constant 0 : index
    %c0_38 = arith.constant 0 : index
    %59 = vector.load %arg13[%c0_37, %c0_38] : memref<128x128xf32, #tpu.memory_space<vmem>>, vector<128x128xf32>
    %60 = arith.addf %59, %58 : vector<128x128xf32>
    %c0_39 = arith.constant 0 : index
    %c0_40 = arith.constant 0 : index
    %61 = vector.load %arg13[%c0_39, %c0_40] : memref<128x128xf32, #tpu.memory_space<vmem>>, vector<128x128xf32>
    tpu.vector_store %arg13[%c0_39, %c0_40], %60 {strides = array<i32>} : memref<128x128xf32, #tpu.memory_space<vmem>>, vector<128x128xf32>,
    %c32 = arith.constant 32 : index
    %c0_41 = arith.constant 0 : index
    %62 = vector.load %arg10[%c32, %c0_41] : memref<192x128xbf16, #tpu.memory_space<vmem>>, vector<128x128xbf16>
    %c3 = arith.constant 3 : index
    %c0_42 = arith.constant 0 : index
    %c0_43 = arith.constant 0 : index
    %63 = vector.load %arg5[%c3, %c0_42, %c0_43] : memref<9x128x128xbf16, #tpu.memory_space<vmem>>, vector<1x128x128xbf16>
    %64 = vector.shape_cast %63 : vector<1x128x128xbf16> to vector<128x128xbf16>
    %cst_44 = arith.constant dense<0.000000e+00> : vector<128x128xf32>
    %65 = tpu.matmul %62, %64, %cst_44 {dimension_numbers = #tpu.dot_dimension_numbers<[1], [0], [0], [1], [0, 0, 1, 1], [], []>} : vector<128x128xbf16>, vector<128x128xbf16>, vector<128x128xf32> -> vector<128x128xf32>
    %c0_45 = arith.constant 0 : index
    %c0_46 = arith.constant 0 : index
    %66 = vector.load %arg13[%c0_45, %c0_46] : memref<128x128xf32, #tpu.memory_space<vmem>>, vector<128x128xf32>
    %67 = arith.addf %66, %65 : vector<128x128xf32>
    %c0_47 = arith.constant 0 : index
    %c0_48 = arith.constant 0 : index
    %68 = vector.load %arg13[%c0_47, %c0_48] : memref<128x128xf32, #tpu.memory_space<vmem>>, vector<128x128xf32>
    tpu.vector_store %arg13[%c0_47, %c0_48], %67 {strides = array<i32>} : memref<128x128xf32, #tpu.memory_space<vmem>>, vector<128x128xf32>,
    %c32_49 = arith.constant 32 : index
    %c0_50 = arith.constant 0 : index
    %69 = vector.load %arg11[%c32_49, %c0_50] : memref<192x128xbf16, #tpu.memory_space<vmem>>, vector<128x128xbf16>
    %c4 = arith.constant 4 : index
    %c0_51 = arith.constant 0 : index
    %c0_52 = arith.constant 0 : index
    %70 = vector.load %arg5[%c4, %c0_51, %c0_52] : memref<9x128x128xbf16, #tpu.memory_space<vmem>>, vector<1x128x128xbf16>
    %71 = vector.shape_cast %70 : vector<1x128x128xbf16> to vector<128x128xbf16>
    %cst_53 = arith.constant dense<0.000000e+00> : vector<128x128xf32>
    %72 = tpu.matmul %69, %71, %cst_53 {dimension_numbers = #tpu.dot_dimension_numbers<[1], [0], [0], [1], [0, 0, 1, 1], [], []>} : vector<128x128xbf16>, vector<128x128xbf16>, vector<128x128xf32> -> vector<128x128xf32>
    %c0_54 = arith.constant 0 : index
    %c0_55 = arith.constant 0 : index
    %73 = vector.load %arg13[%c0_54, %c0_55] : memref<128x128xf32, #tpu.memory_space<vmem>>, vector<128x128xf32>
    %74 = arith.addf %73, %72 : vector<128x128xf32>
    %c0_56 = arith.constant 0 : index
    %c0_57 = arith.constant 0 : index
    %75 = vector.load %arg13[%c0_56, %c0_57] : memref<128x128xf32, #tpu.memory_space<vmem>>, vector<128x128xf32>
    tpu.vector_store %arg13[%c0_56, %c0_57], %74 {strides = array<i32>} : memref<128x128xf32, #tpu.memory_space<vmem>>, vector<128x128xf32>,
    %c32_58 = arith.constant 32 : index
    %c0_59 = arith.constant 0 : index
    %76 = vector.load %arg12[%c32_58, %c0_59] : memref<192x128xbf16, #tpu.memory_space<vmem>>, vector<128x128xbf16>
    %c5 = arith.constant 5 : index
    %c0_60 = arith.constant 0 : index
    %c0_61 = arith.constant 0 : index
    %77 = vector.load %arg5[%c5, %c0_60, %c0_61] : memref<9x128x128xbf16, #tpu.memory_space<vmem>>, vector<1x128x128xbf16>
    %78 = vector.shape_cast %77 : vector<1x128x128xbf16> to vector<128x128xbf16>
    %cst_62 = arith.constant dense<0.000000e+00> : vector<128x128xf32>
    %79 = tpu.matmul %76, %78, %cst_62 {dimension_numbers = #tpu.dot_dimension_numbers<[1], [0], [0], [1], [0, 0, 1, 1], [], []>} : vector<128x128xbf16>, vector<128x128xbf16>, vector<128x128xf32> -> vector<128x128xf32>
    %c0_63 = arith.constant 0 : index
    %c0_64 = arith.constant 0 : index
    %80 = vector.load %arg13[%c0_63, %c0_64] : memref<128x128xf32, #tpu.memory_space<vmem>>, vector<128x128xf32>
    %81 = arith.addf %80, %79 : vector<128x128xf32>
    %c0_65 = arith.constant 0 : index
    %c0_66 = arith.constant 0 : index
    %82 = vector.load %arg13[%c0_65, %c0_66] : memref<128x128xf32, #tpu.memory_space<vmem>>, vector<128x128xf32>
    tpu.vector_store %arg13[%c0_65, %c0_66], %81 {strides = array<i32>} : memref<128x128xf32, #tpu.memory_space<vmem>>, vector<128x128xf32>,
    %c64 = arith.constant 64 : index
    %c0_67 = arith.constant 0 : index
    %83 = vector.load %arg10[%c64, %c0_67] : memref<192x128xbf16, #tpu.memory_space<vmem>>, vector<128x128xbf16>
    %c6 = arith.constant 6 : index
    %c0_68 = arith.constant 0 : index
    %c0_69 = arith.constant 0 : index
    %84 = vector.load %arg5[%c6, %c0_68, %c0_69] : memref<9x128x128xbf16, #tpu.memory_space<vmem>>, vector<1x128x128xbf16>
    %85 = vector.shape_cast %84 : vector<1x128x128xbf16> to vector<128x128xbf16>
    %cst_70 = arith.constant dense<0.000000e+00> : vector<128x128xf32>
    %86 = tpu.matmul %83, %85, %cst_70 {dimension_numbers = #tpu.dot_dimension_numbers<[1], [0], [0], [1], [0, 0, 1, 1], [], []>} : vector<128x128xbf16>, vector<128x128xbf16>, vector<128x128xf32> -> vector<128x128xf32>
    %c0_71 = arith.constant 0 : index
    %c0_72 = arith.constant 0 : index
    %87 = vector.load %arg13[%c0_71, %c0_72] : memref<128x128xf32, #tpu.memory_space<vmem>>, vector<128x128xf32>
    %88 = arith.addf %87, %86 : vector<128x128xf32>
    %c0_73 = arith.constant 0 : index
    %c0_74 = arith.constant 0 : index
    %89 = vector.load %arg13[%c0_73, %c0_74] : memref<128x128xf32, #tpu.memory_space<vmem>>, vector<128x128xf32>
    tpu.vector_store %arg13[%c0_73, %c0_74], %88 {strides = array<i32>} : memref<128x128xf32, #tpu.memory_space<vmem>>, vector<128x128xf32>,
    %c64_75 = arith.constant 64 : index
    %c0_76 = arith.constant 0 : index
    %90 = vector.load %arg11[%c64_75, %c0_76] : memref<192x128xbf16, #tpu.memory_space<vmem>>, vector<128x128xbf16>
    %c7 = arith.constant 7 : index
    %c0_77 = arith.constant 0 : index
    %c0_78 = arith.constant 0 : index
    %91 = vector.load %arg5[%c7, %c0_77, %c0_78] : memref<9x128x128xbf16, #tpu.memory_space<vmem>>, vector<1x128x128xbf16>
    %92 = vector.shape_cast %91 : vector<1x128x128xbf16> to vector<128x128xbf16>
    %cst_79 = arith.constant dense<0.000000e+00> : vector<128x128xf32>
    %93 = tpu.matmul %90, %92, %cst_79 {dimension_numbers = #tpu.dot_dimension_numbers<[1], [0], [0], [1], [0, 0, 1, 1], [], []>} : vector<128x128xbf16>, vector<128x128xbf16>, vector<128x128xf32> -> vector<128x128xf32>
    %c0_80 = arith.constant 0 : index
    %c0_81 = arith.constant 0 : index
    %94 = vector.load %arg13[%c0_80, %c0_81] : memref<128x128xf32, #tpu.memory_space<vmem>>, vector<128x128xf32>
    %95 = arith.addf %94, %93 : vector<128x128xf32>
    %c0_82 = arith.constant 0 : index
    %c0_83 = arith.constant 0 : index
    %96 = vector.load %arg13[%c0_82, %c0_83] : memref<128x128xf32, #tpu.memory_space<vmem>>, vector<128x128xf32>
    tpu.vector_store %arg13[%c0_82, %c0_83], %95 {strides = array<i32>} : memref<128x128xf32, #tpu.memory_space<vmem>>, vector<128x128xf32>,
    %c64_84 = arith.constant 64 : index
    %c0_85 = arith.constant 0 : index
    %97 = vector.load %arg12[%c64_84, %c0_85] : memref<192x128xbf16, #tpu.memory_space<vmem>>, vector<128x128xbf16>
    %c8 = arith.constant 8 : index
    %c0_86 = arith.constant 0 : index
    %c0_87 = arith.constant 0 : index
    %98 = vector.load %arg5[%c8, %c0_86, %c0_87] : memref<9x128x128xbf16, #tpu.memory_space<vmem>>, vector<1x128x128xbf16>
    %99 = vector.shape_cast %98 : vector<1x128x128xbf16> to vector<128x128xbf16>
    %cst_88 = arith.constant dense<0.000000e+00> : vector<128x128xf32>
    %100 = tpu.matmul %97, %99, %cst_88 {dimension_numbers = #tpu.dot_dimension_numbers<[1], [0], [0], [1], [0, 0, 1, 1], [], []>} : vector<128x128xbf16>, vector<128x128xbf16>, vector<128x128xf32> -> vector<128x128xf32>
    %c0_89 = arith.constant 0 : index
    %c0_90 = arith.constant 0 : index
    %101 = vector.load %arg13[%c0_89, %c0_90] : memref<128x128xf32, #tpu.memory_space<vmem>>, vector<128x128xf32>
    %102 = arith.addf %101, %100 : vector<128x128xf32>
    %c0_91 = arith.constant 0 : index
    %c0_92 = arith.constant 0 : index
    %103 = vector.load %arg13[%c0_91, %c0_92] : memref<128x128xf32, #tpu.memory_space<vmem>>, vector<128x128xf32>
    tpu.vector_store %arg13[%c0_91, %c0_92], %102 {strides = array<i32>} : memref<128x128xf32, #tpu.memory_space<vmem>>, vector<128x128xf32>,
    %c0_93 = arith.constant 0 : index
    %c0_94 = arith.constant 0 : index
    %104 = vector.load %arg13[%c0_93, %c0_94] : memref<128x128xf32, #tpu.memory_space<vmem>>, vector<128x128xf32>
    %c0_95 = arith.constant 0 : index
    %c0_96 = arith.constant 0 : index
    %105 = vector.load %arg6[%c0_95, %c0_96] : memref<1x128xf32, #tpu.memory_space<vmem>>, vector<1x128xf32>
    %106 = vector.broadcast %105 : vector<1x128xf32> to vector<128x128xf32>
    %107 = arith.addf %104, %106 : vector<128x128xf32>
    %cst_97 = arith.constant 0.000000e+00 : f32
    %108 = vector.broadcast %cst_97 : f32 to vector<128x128xf32>
    %109 = arith.maximumf %107, %108 : vector<128x128xf32>
    %110 = arith.truncf %109 : vector<128x128xf32> to vector<128x128xbf16>
    %c1_i32_98 = arith.constant 1 : i32
    %111 = arith.addi %0, %c1_i32_98 : i32
    %c0_99 = arith.constant 0 : index
    %112 = arith.index_cast %111 : i32 to index
    %c0_100 = arith.constant 0 : index
    %c0_101 = arith.constant 0 : index
    %113 = vector.load %arg2[%c0_99, %112, %c0_100, %c0_101] : memref<1x18x32x128xf32, #tpu.memory_space<vmem>>, vector<1x4x32x128xf32>
    %114 = vector.shape_cast %113 : vector<1x4x32x128xf32> to vector<4x32x128xf32>
    %115 = vector.shape_cast %114 : vector<4x32x128xf32> to vector<128x128xf32>
    %c0_102 = arith.constant 0 : index
    %c0_103 = arith.constant 0 : index
    %116 = vector.load %arg7[%c0_102, %c0_103] : memref<128x128xbf16, #tpu.memory_space<vmem>>, vector<128x128xbf16>
    %cst_104 = arith.constant dense<0.000000e+00> : vector<128x128xf32>
    %117 = tpu.matmul %110, %116, %cst_104 {dimension_numbers = #tpu.dot_dimension_numbers<[1], [0], [0], [1], [0, 0, 1, 1], [], []>} : vector<128x128xbf16>, vector<128x128xbf16>, vector<128x128xf32> -> vector<128x128xf32>
    %c0_105 = arith.constant 0 : index
    %c0_106 = arith.constant 0 : index
    %118 = vector.load %arg8[%c0_105, %c0_106] : memref<1x128xf32, #tpu.memory_space<vmem>>, vector<1x128xf32>
    %119 = vector.broadcast %118 : vector<1x128xf32> to vector<128x128xf32>
    %120 = arith.addf %117, %119 : vector<128x128xf32>
    %121 = arith.addf %120, %115 : vector<128x128xf32>
    %cst_107 = arith.constant 0.000000e+00 : f32
    %122 = vector.broadcast %cst_107 : f32 to vector<128x128xf32>
    %123 = arith.maximumf %121, %122 : vector<128x128xf32>
    %124 = vector.shape_cast %123 : vector<128x128xf32> to vector<4x32x128xf32>
    %c0_108 = arith.constant 0 : index
    %c0_109 = arith.constant 0 : index
    %c0_110 = arith.constant 0 : index
    %c0_111 = arith.constant 0 : index
    %125 = vector.load %arg9[%c0_108, %c0_109, %c0_110, %c0_111] : memref<1x4x32x128xf32, #tpu.memory_space<vmem>>, vector<1x4x32x128xf32>
    %126 = vector.shape_cast %125 : vector<1x4x32x128xf32> to vector<4x32x128xf32>
    %127 = vector.shape_cast %124 : vector<4x32x128xf32> to vector<1x4x32x128xf32>
    tpu.vector_store %arg9[%c0_108, %c0_109, %c0_110, %c0_111], %127 {strides = array<i32>} : memref<1x4x32x128xf32, #tpu.memory_space<vmem>>, vector<1x4x32x128xf32>,
    return
  }
  func.func @transform_0(%arg0: i32, %arg1: i32) -> (i32, i32, i32, i32) {
    %c0_i32 = arith.constant 0 : i32
    %c0_i32_0 = arith.constant 0 : i32
    %c0_i32_1 = arith.constant 0 : i32
    %c0_i32_2 = arith.constant 0 : i32
    return %arg0, %c0_i32, %c0_i32_0, %c0_i32_1 : i32, i32, i32, i32
  }
  func.func @transform_1(%arg0: i32, %arg1: i32) -> (i32, i32) {
    %c0_i32 = arith.constant 0 : i32
    %c0_i32_0 = arith.constant 0 : i32
    %c0_i32_1 = arith.constant 0 : i32
    return %c0_i32, %c0_i32_0 : i32, i32
  }
  func.func @transform_2(%arg0: i32, %arg1: i32) -> (i32, i32) {
    %c0_i32 = arith.constant 0 : i32
    %c0_i32_0 = arith.constant 0 : i32
    %c0_i32_1 = arith.constant 0 : i32
    return %c0_i32, %c0_i32_0 : i32, i32
  }
  func.func @transform_3(%arg0: i32, %arg1: i32) -> (i32, i32, i32) {
    %c0_i32 = arith.constant 0 : i32
    %c0_i32_0 = arith.constant 0 : i32
    %c0_i32_1 = arith.constant 0 : i32
    %c0_i32_2 = arith.constant 0 : i32
    return %c0_i32, %c0_i32_0, %c0_i32_1 : i32, i32, i32
  }
  func.func @transform_4(%arg0: i32, %arg1: i32) -> (i32, i32) {
    %c0_i32 = arith.constant 0 : i32
    %c0_i32_0 = arith.constant 0 : i32
    %c0_i32_1 = arith.constant 0 : i32
    return %c0_i32, %c0_i32_0 : i32, i32
  }
  func.func @transform_5(%arg0: i32, %arg1: i32) -> (i32, i32) {
    %c0_i32 = arith.constant 0 : i32
    %c0_i32_0 = arith.constant 0 : i32
    %c0_i32_1 = arith.constant 0 : i32
    return %c0_i32, %c0_i32_0 : i32, i32
  }
  func.func @transform_6(%arg0: i32, %arg1: i32) -> (i32, i32) {
    %c0_i32 = arith.constant 0 : i32
    %c0_i32_0 = arith.constant 0 : i32
    %c0_i32_1 = arith.constant 0 : i32
    return %c0_i32, %c0_i32_0 : i32, i32
  }
  func.func @transform_7(%arg0: i32, %arg1: i32) -> (i32, i32, i32, i32) {
    %c0_i32 = arith.constant 0 : i32
    %c0_i32_0 = arith.constant 0 : i32
    %c0_i32_1 = arith.constant 0 : i32
    return %arg0, %arg1, %c0_i32, %c0_i32_0 : i32, i32, i32, i32
  }
}

</mosaic_0001>

<llo_original>
// kernel: bottleneck_forward.1
$region0: #{bottleneck_forward.1}
  #allocation0 [shape = 'u32[]', space=smem, size = 0x4, offset = 0x4, fixed_abs, tag = 'smem constant byte address 0x4 - core index']
  #allocation1 [shape = 'u32[144,128]{1,0:T(1,128)}', space=vmem, size = 0x12000, scoped, tag = 'internal scratch']
  #allocation2 [shape = 'bf16[192,128]{1,0:T(16,128)(2,1)}', space=vmem, size = 0xc000, scoped, tag = 'scratch operand']
  #allocation3 [shape = 'bf16[192,128]{1,0:T(16,128)(2,1)}', space=vmem, size = 0xc000, scoped, tag = 'scratch operand']
  #allocation4 [shape = 'bf16[192,128]{1,0:T(16,128)(2,1)}', space=vmem, size = 0xc000, scoped, tag = 'scratch operand']
  #allocation5 [shape = 'f32[128,128]{1,0:T(8,128)}', space=vmem, size = 0x10000, scoped, tag = 'scratch operand']
  %s0 = inlined_call_operand.vmem [shape: f32[2,18,32,128], index: 0, kind: input, shape index: {}]
  %s1 = inlined_call_operand.vmem [shape: bf16[128,128], index: 1, kind: input, shape index: {}]
  %s2 = inlined_call_operand.vmem [shape: f32[1,128], index: 2, kind: input, shape index: {}]
  %s3 = inlined_call_operand.vmem [shape: bf16[9,128,128], index: 3, kind: input, shape index: {}]
  %s4 = inlined_call_operand.vmem [shape: f32[1,128], index: 4, kind: input, shape index: {}]
  %s5 = inlined_call_operand.vmem [shape: bf16[128,128], index: 5, kind: input, shape index: {}]
  %s6 = inlined_call_operand.vmem [shape: f32[1,128], index: 6, kind: input, shape index: {}]
  %s7 = inlined_call_operand.vmem [shape: f32[2,16,32,128], index: 7, kind: output, shape index: {}]
  %s8 = sld [smem:[#allocation0]]
  $region61: #{bottleneck_forward.1} parent=0
    _
  %s10 = ssub.s32 1, %s8
  %s11 = scalar_select 0, %s10, %s8
  loop: start=0, step=1, limit=10
  $region2: #{bottleneck_forward.1} parent=0 // loop_pre_header
    _
  $region3: #{bottleneck_forward.1} parent=0 // loop_header
    %s13 = sphi 0, %s17
    %p14 = scmp.ge.s32.totalorder %s13, 10
    %s20 = sphi 0, %s32
    %s21 = sphi 0, %s28
    %s22 = sphi 0, %s20
    %s23 = sphi 0, %s21
    %s24 = sphi 0, %s22
    %s25 = sphi 0, %s23
    %s35 = sphi 0, %s37
    %s38 = sphi 0, %s35
    %s39 = sphi 0, %s38
    %s55 = sphi 0, %s39
    %s59 = sphi 0, %s59
    %s61 = sphi 0, %s59
    %s62 = sphi 0, %s61
    %s76 = sphi 0, %s62
    %s80 = sphi 0, %s80
    %s82 = sphi 0, %s80
    %s83 = sphi 0, %s82
    %s97 = sphi 0, %s83
    %s101 = sphi 0, %s101
    %s103 = sphi 0, %s101
    %s104 = sphi 0, %s103
    %s118 = sphi 0, %s104
    %s122 = sphi 0, %s122
    %s124 = sphi 0, %s122
    %s125 = sphi 0, %s124
    %s139 = sphi 0, %s125
    %s143 = sphi 0, %s143
    %s145 = sphi 0, %s143
    %s146 = sphi 0, %s145
    %s160 = sphi 0, %s146
    %s164 = sphi 0, %s164
    %s166 = sphi 0, %s164
    %s167 = sphi 0, %s166
    %s181 = sphi 0, %s167
    %s189 = sphi 0, %s191
    %s192 = sphi 0, %s189
    %s193 = sphi 0, %s192
    %s209 = sphi 0, %s193
  $region4: #{bottleneck_forward.1} parent=0 // loop_header_branch
    %16 = sbr.rel (%p14) target = $region8
  $region5: #{bottleneck_forward.1} parent=0 // loop_body
    %s18 = ssub.s32 %s13, 1
    %s19 = ssub.s32 %s13, 2
    %s26 = sadd.s32 1, %s21
    %p27 = scmp.ge.s32.totalorder %s26, 4
    %s28 = scalar_select %p27, 0, %s26
    %s29 = sadd.s32 1, %s20
    %s30 = scalar_select %p27, %s29, %s20
    %p31 = scmp.ge.s32.totalorder %s30, 2
    %s32 = scalar_select %p31, 0, %s30
    %s33 = ssub.s32 %s20, %s32
    %p34 = scmp.eq.s32.totalorder %s33, 0
    %s36 = sadd.s32 %s35, 1
    %s37 = scalar_select %p34, %s35, %s36
    %p40 = pneg %p34
    %p41 = scmp.eq.s32.totalorder %s13, 7
    %p42 = por %p40, %p41
    %p43 = scmp.ne.s32.totalorder %s35, %s38
    %p44 = scmp.eq.s32.totalorder %s13, 0
    %p45 = por %p43, %p44
    %p46 = scmp.ne.s32.totalorder %s35, %s38
    %p47 = scmp.eq.s32.totalorder %s18, 7
    %p48 = por %p46, %p47
    %p49 = scmp.ne.s32.totalorder %s38, %s39
    %p50 = scmp.eq.s32.totalorder %s18, 0
    %p51 = por %p49, %p50
    %p52 = scmp.ne.s32.totalorder %s38, %s39
    %p53 = scmp.eq.s32.totalorder %s19, 7
    %p54 = por %p52, %p53
    %p56 = scmp.ne.s32.totalorder %s39, %s55
    %p57 = scmp.eq.s32.totalorder %s19, 0
    %p58 = por %p56, %p57
    %s60 = sadd.s32 %s59, 1
    %p63 = scmp.eq.s32.totalorder %s13, 7
    %p64 = scmp.ne.s32.totalorder %s59, %s61
    %p65 = scmp.eq.s32.totalorder %s13, 0
    %p66 = por %p64, %p65
    %p67 = scmp.ne.s32.totalorder %s59, %s61
    %p68 = scmp.eq.s32.totalorder %s18, 7
    %p69 = por %p67, %p68
    %p70 = scmp.ne.s32.totalorder %s61, %s62
    %p71 = scmp.eq.s32.totalorder %s18, 0
    %p72 = por %p70, %p71
    %p73 = scmp.ne.s32.totalorder %s61, %s62
    %p74 = scmp.eq.s32.totalorder %s19, 7
    %p75 = por %p73, %p74
    %p77 = scmp.ne.s32.totalorder %s62, %s76
    %p78 = scmp.eq.s32.totalorder %s19, 0
    %p79 = por %p77, %p78
    %s81 = sadd.s32 %s80, 1
    %p84 = scmp.eq.s32.totalorder %s13, 7
    %p85 = scmp.ne.s32.totalorder %s80, %s82
    %p86 = scmp.eq.s32.totalorder %s13, 0
    %p87 = por %p85, %p86
    %p88 = scmp.ne.s32.totalorder %s80, %s82
    %p89 = scmp.eq.s32.totalorder %s18, 7
    %p90 = por %p88, %p89
    %p91 = scmp.ne.s32.totalorder %s82, %s83
    %p92 = scmp.eq.s32.totalorder %s18, 0
    %p93 = por %p91, %p92
    %p94 = scmp.ne.s32.totalorder %s82, %s83
    %p95 = scmp.eq.s32.totalorder %s19, 7
    %p96 = por %p94, %p95
    %p98 = scmp.ne.s32.totalorder %s83, %s97
    %p99 = scmp.eq.s32.totalorder %s19, 0
    %p100 = por %p98, %p99
    %s102 = sadd.s32 %s101, 1
    %p105 = scmp.eq.s32.totalorder %s13, 7
    %p106 = scmp.ne.s32.totalorder %s101, %s103
    %p107 = scmp.eq.s32.totalorder %s13, 0
    %p108 = por %p106, %p107
    %p109 = scmp.ne.s32.totalorder %s101, %s103
    %p110 = scmp.eq.s32.totalorder %s18, 7
    %p111 = por %p109, %p110
    %p112 = scmp.ne.s32.totalorder %s103, %s104
    %p113 = scmp.eq.s32.totalorder %s18, 0
    %p114 = por %p112, %p113
    %p115 = scmp.ne.s32.totalorder %s103, %s104
    %p116 = scmp.eq.s32.totalorder %s19, 7
    %p117 = por %p115, %p116
    %p119 = scmp.ne.s32.totalorder %s104, %s118
    %p120 = scmp.eq.s32.totalorder %s19, 0
    %p121 = por %p119, %p120
    %s123 = sadd.s32 %s122, 1
    %p126 = scmp.eq.s32.totalorder %s13, 7
    %p127 = scmp.ne.s32.totalorder %s122, %s124
    %p128 = scmp.eq.s32.totalorder %s13, 0
    %p129 = por %p127, %p128
    %p130 = scmp.ne.s32.totalorder %s122, %s124
    %p131 = scmp.eq.s32.totalorder %s18, 7
    %p132 = por %p130, %p131
    %p133 = scmp.ne.s32.totalorder %s124, %s125
    %p134 = scmp.eq.s32.totalorder %s18, 0
    %p135 = por %p133, %p134
    %p136 = scmp.ne.s32.totalorder %s124, %s125
    %p137 = scmp.eq.s32.totalorder %s19, 7
    %p138 = por %p136, %p137
    %p140 = scmp.ne.s32.totalorder %s125, %s139
    %p141 = scmp.eq.s32.totalorder %s19, 0
    %p142 = por %p140, %p141
    %s144 = sadd.s32 %s143, 1
    %p147 = scmp.eq.s32.totalorder %s13, 7
    %p148 = scmp.ne.s32.totalorder %s143, %s145
    %p149 = scmp.eq.s32.totalorder %s13, 0
    %p150 = por %p148, %p149
    %p151 = scmp.ne.s32.totalorder %s143, %s145
    %p152 = scmp.eq.s32.totalorder %s18, 7
    %p153 = por %p151, %p152
    %p154 = scmp.ne.s32.totalorder %s145, %s146
    %p155 = scmp.eq.s32.totalorder %s18, 0
    %p156 = por %p154, %p155
    %p157 = scmp.ne.s32.totalorder %s145, %s146
    %p158 = scmp.eq.s32.totalorder %s19, 7
    %p159 = por %p157, %p158
    %p161 = scmp.ne.s32.totalorder %s146, %s160
    %p162 = scmp.eq.s32.totalorder %s19, 0
    %p163 = por %p161, %p162
    %s165 = sadd.s32 %s164, 1
    %p168 = scmp.eq.s32.totalorder %s13, 7
    %p169 = scmp.ne.s32.totalorder %s164, %s166
    %p170 = scmp.eq.s32.totalorder %s13, 0
    %p171 = por %p169, %p170
    %p172 = scmp.ne.s32.totalorder %s164, %s166
    %p173 = scmp.eq.s32.totalorder %s18, 7
    %p174 = por %p172, %p173
    %p175 = scmp.ne.s32.totalorder %s166, %s167
    %p176 = scmp.eq.s32.totalorder %s18, 0
    %p177 = por %p175, %p176
    %p178 = scmp.ne.s32.totalorder %s166, %s167
    %p179 = scmp.eq.s32.totalorder %s19, 7
    %p180 = por %p178, %p179
    %p182 = scmp.ne.s32.totalorder %s167, %s181
    %p183 = scmp.eq.s32.totalorder %s19, 0
    %p184 = por %p182, %p183
    %s185 = ssub.s32 %s20, %s32
    %s186 = ssub.s32 %s21, %s28
    %s187 = sor.u32 %s185, %s186
    %p188 = scmp.eq.s32.totalorder %s187, 0
    %s190 = sadd.s32 %s189, 1
    %s191 = scalar_select %p188, %s189, %s190
    %p194 = pneg %p188
    %p195 = scmp.eq.s32.totalorder %s13, 7
    %p196 = por %p194, %p195
    %p197 = scmp.ne.s32.totalorder %s189, %s192
    %p198 = scmp.eq.s32.totalorder %s13, 0
    %p199 = por %p197, %p198
    %p200 = scmp.ne.s32.totalorder %s189, %s192
    %p201 = scmp.eq.s32.totalorder %s18, 7
    %p202 = por %p200, %p201
    %p203 = scmp.ne.s32.totalorder %s192, %s193
    %p204 = scmp.eq.s32.totalorder %s18, 0
    %p205 = por %p203, %p204
    %p206 = scmp.ne.s32.totalorder %s192, %s193
    %p207 = scmp.eq.s32.totalorder %s19, 7
    %p208 = por %p206, %p207
    %p210 = scmp.ne.s32.totalorder %s193, %s209
    %p211 = scmp.eq.s32.totalorder %s19, 0
    %p212 = por %p210, %p211
    %p213 = scmp.le.s32.totalorder 1, %s13
    %p214 = scmp.lt.s32.totalorder %s13, 9
    %p215 = pnand %p213, %p214
    %p216 = pneg %p215
    // Predicated region
    $region9: #{bottleneck_forward.1} parent=5 // pred_check
      _
    $region10: #{bottleneck_forward.1} parent=5 // pred_check_branch
      %218 = sbr.rel (%p215) target = $region12
    $region11: #{bottleneck_forward.1} parent=5 // pred_region
      %s219 = ssub.s32 %s13, 1
      // Predicated region
      $region13: #{bottleneck_forward.1} parent=11 // pred_check
        %p220 = pneg %p72
      $region14: #{bottleneck_forward.1} parent=11 // pred_check_branch
        %222 = sbr.rel (%p220) target = $region16
      $region15: #{bottleneck_forward.1} parent=11 // pred_region
        _
      $region16: #{bottleneck_forward.1} parent=11 // pred_fallthru
        _
      // Predicated region
      $region17: #{bottleneck_forward.1} parent=11 // pred_check
        %p223 = pneg %p93
      $region18: #{bottleneck_forward.1} parent=11 // pred_check_branch
        %225 = sbr.rel (%p223) target = $region20
      $region19: #{bottleneck_forward.1} parent=11 // pred_region
        _
      $region20: #{bottleneck_forward.1} parent=11 // pred_fallthru
        _
      // Predicated region
      $region21: #{bottleneck_forward.1} parent=11 // pred_check
        %p226 = pneg %p114
      $region22: #{bottleneck_forward.1} parent=11 // pred_check_branch
        %228 = sbr.rel (%p226) target = $region24
      $region23: #{bottleneck_forward.1} parent=11 // pred_region
        _
      $region24: #{bottleneck_forward.1} parent=11 // pred_fallthru
        _
      // Predicated region
      $region25: #{bottleneck_forward.1} parent=11 // pred_check
        %p229 = pneg %p135
      $region26: #{bottleneck_forward.1} parent=11 // pred_check_branch
        %231 = sbr.rel (%p229) target = $region28
      $region27: #{bottleneck_forward.1} parent=11 // pred_region
        _
      $region28: #{bottleneck_forward.1} parent=11 // pred_fallthru
        _
      // Predicated region
      $region29: #{bottleneck_forward.1} parent=11 // pred_check
        %p232 = pneg %p156
      $region30: #{bottleneck_forward.1} parent=11 // pred_check_branch
        %234 = sbr.rel (%p232) target = $region32
      $region31: #{bottleneck_forward.1} parent=11 // pred_region
        _
      $region32: #{bottleneck_forward.1} parent=11 // pred_fallthru
        _
      // Predicated region
      $region33: #{bottleneck_forward.1} parent=11 // pred_check
        %p235 = pneg %p177
      $region34: #{bottleneck_forward.1} parent=11 // pred_check_branch
        %237 = sbr.rel (%p235) target = $region36
      $region35: #{bottleneck_forward.1} parent=11 // pred_region
        _
      $region36: #{bottleneck_forward.1} parent=11 // pred_fallthru
        _
    $region12: #{bottleneck_forward.1} parent=5 // pred_fallthru
      _
    %p238 = scmp.lt.s32.totalorder %s13, 8
    // Predicated region
    $region37: #{bottleneck_forward.1} parent=5 // pred_check
      %p239 = pneg %p238
    $region38: #{bottleneck_forward.1} parent=5 // pred_check_branch
      %241 = sbr.rel (%p239) target = $region40
    $region39: #{bottleneck_forward.1} parent=5 // pred_region
      // Predicated region
      $region41: #{bottleneck_forward.1} parent=39 // pred_check
        %p242 = pneg %p45
      $region42: #{bottleneck_forward.1} parent=39 // pred_check_branch
        %244 = sbr.rel (%p242) target = $region44
      $region43: #{bottleneck_forward.1} parent=39 // pred_region
        %p245 = scmp.lt.s32.totalorder %s20, 1
        %s246 = scalar_select %p245, %s20, 1
        %s247 = smul.addr %s246, 72
        %s248 = smul.addr %s247, 8
        %s249 = scalar_lea.vmem %s0, %s248
      $region44: #{bottleneck_forward.1} parent=39 // pred_fallthru
        _
    $region40: #{bottleneck_forward.1} parent=5 // pred_fallthru
      _
    %p250 = scmp.le.s32.totalorder 1, %s13
    %p251 = scmp.lt.s32.totalorder %s13, 9
    %p252 = pnand %p250, %p251
    %p253 = pneg %p252
    // Predicated region
    $region45: #{bottleneck_forward.1} parent=5 // pred_check
      _
    $region46: #{bottleneck_forward.1} parent=5 // pred_check_branch
      %255 = sbr.rel (%p252) target = $region48
    $region47: #{bottleneck_forward.1} parent=5 // pred_region
      %s256 = ssub.s32 %s13, 1
      %p257 = scmp.lt.s32.totalorder %s22, 1
      %s258 = scalar_select %p257, %s22, 1
      %s259 = smul.addr %s258, 72
      %s260 = smul.addr %s259, 8
      %s261 = scalar_lea.vmem %s0, %s260
      %p262 = pneg %p51
      %p263 = pneg %p48
      %p264 = pneg %p72
      %p265 = pneg %p69
      %p266 = pneg %p93
      %p267 = pneg %p90
      %p268 = pneg %p114
      %p269 = pneg %p111
      %p270 = pneg %p135
      %p271 = pneg %p132
      %p272 = pneg %p156
      %p273 = pneg %p153
      %p274 = pneg %p177
      %p275 = pneg %p174
      %p276 = pneg %p205
      %p277 = pneg %p202
      %s278 = smul.u32 4, %s23
      %p279 = scmp.lt.s32.totalorder %s22, 1
      %s280 = scalar_select %p279, %s22, 1
      %p281 = scmp.lt.s32.totalorder %s278, 15
      %s282 = scalar_select %p281, %s278, 15
      %s283 = smul.addr %s282, 4
      %s284 = smul.addr %s280, 64
      %s285 = sadd.s32 %s283, %s284
      %s286 = smul.addr %s285, 8
      %s287 = scalar_lea.vmem %s7, %s286
      %p288 = scmp.lt.s32.totalorder %s22, 1
      %s289 = scalar_select %p288, %s22, 1
      %s290 = smul.addr %s289, 72
      %s291 = smul.addr %s290, 8
      %s292 = scalar_lea.vmem %s0, %s291
      %s293 = smul.u32 4, %s23
      %p294 = scmp.lt.s32.totalorder %s22, 1
      %s295 = scalar_select %p294, %s22, 1
      %p296 = scmp.lt.s32.totalorder %s293, 15
      %s297 = scalar_select %p296, %s293, 15
      %s298 = smul.addr %s297, 4
      %s299 = smul.addr %s295, 64
      %s300 = sadd.s32 %s298, %s299
      %s301 = smul.addr %s300, 8
      %s302 = scalar_lea.vmem %s7, %s301
      %s303 = smul.u32 4, %s23
      %s305 = smul.u32 %s23, 4
      %s306 = smul.u32 %s305, 32
      %s307 = scalar_lea.vmem %s292, %s306
      %v308 = vld [vmem:[%s307] sm:$0xff]
      %v309 = vld [vmem:[%s307 + $0x8] sm:$0xff]
      %v310 = vld [vmem:[%s307 + $0x10] sm:$0xff]
      %v311 = vld [vmem:[%s307 + $0x18] sm:$0xff]
      %v312 = vld [vmem:[%s307 + $0x20] sm:$0xff]
      %v313 = vld [vmem:[%s307 + $0x28] sm:$0xff]
      %v314 = vld [vmem:[%s307 + $0x30] sm:$0xff]
      %v315 = vld [vmem:[%s307 + $0x38] sm:$0xff]
      %v316 = vld [vmem:[%s307 + $0x40] sm:$0xff]
      %v317 = vld [vmem:[%s307 + $0x48] sm:$0xff]
      %v318 = vld [vmem:[%s307 + $0x50] sm:$0xff]
      %v319 = vld [vmem:[%s307 + $0x58] sm:$0xff]
      %v320 = vld [vmem:[%s307 + $0x60] sm:$0xff]
      %v321 = vld [vmem:[%s307 + $0x68] sm:$0xff]
      %v322 = vld [vmem:[%s307 + $0x70] sm:$0xff]
      %v323 = vld [vmem:[%s307 + $0x78] sm:$0xff]
      %v324 = vld [vmem:[%s307 + $0x80] sm:$0xff]
      %v325 = vld [vmem:[%s307 + $0x88] sm:$0xff]
      %v326 = vld [vmem:[%s307 + $0x90] sm:$0xff]
      %v327 = vld [vmem:[%s307 + $0x98] sm:$0xff]
      %v328 = vld [vmem:[%s307 + $0xa0] sm:$0xff]
      %v329 = vld [vmem:[%s307 + $0xa8] sm:$0xff]
      %v330 = vld [vmem:[%s307 + $0xb0] sm:$0xff]
      %v331 = vld [vmem:[%s307 + $0xb8] sm:$0xff]
      %v332 = vpack.c.bf16 %v309, %v308
      %v333 = vpack.c.bf16 %v311, %v310
      %v334 = vpack.c.bf16 %v313, %v312
      %v335 = vpack.c.bf16 %v315, %v314
      %v336 = vpack.c.bf16 %v317, %v316
      %v337 = vpack.c.bf16 %v319, %v318
      %v338 = vpack.c.bf16 %v321, %v320
      %v339 = vpack.c.bf16 %v323, %v322
      %v340 = vpack.c.bf16 %v325, %v324
      %v341 = vpack.c.bf16 %v327, %v326
      %v342 = vpack.c.bf16 %v329, %v328
      %v343 = vpack.c.bf16 %v331, %v330
      %v344 = vld [vmem:[%s1] sm:$0xf]
      %v345 = vld [vmem:[%s1 + $0x4] sm:$0xf]
      %v346 = vld [vmem:[%s1 + $0x8] sm:$0xf]
      %v347 = vld [vmem:[%s1 + $0xc] sm:$0xf]
      %v348 = vld [vmem:[%s1 + $0x10] sm:$0xf]
      %v349 = vld [vmem:[%s1 + $0x14] sm:$0xf]
      %v350 = vld [vmem:[%s1 + $0x18] sm:$0xf]
      %v351 = vld [vmem:[%s1 + $0x1c] sm:$0xf]
      %v352 = vld [vmem:[%s1 + $0x20] sm:$0xf]
      %v353 = vld [vmem:[%s1 + $0x24] sm:$0xf]
      %v354 = vld [vmem:[%s1 + $0x28] sm:$0xf]
      %v355 = vld [vmem:[%s1 + $0x2c] sm:$0xf]
      %v356 = vld [vmem:[%s1 + $0x30] sm:$0xf]
      %v357 = vld [vmem:[%s1 + $0x34] sm:$0xf]
      %v358 = vld [vmem:[%s1 + $0x38] sm:$0xf]
      %v359 = vld [vmem:[%s1 + $0x3c] sm:$0xf]
      %v360 = vld [vmem:[%s2] sm:$0x1]
      %v362 = vlaneseq
      %v363 = vshrl.u32 %v362, 7
      %v364 = vsub.s32 0, %v363
      %v365 = vrot.slane %v360, %v364
      %v383 = vunpack.c.l.b16 %v344
      %v384 = vunpack.c.l.b16 %v345
      %v385 = vunpack.c.l.b16 %v346
      %v386 = vunpack.c.l.b16 %v347
      %v387 = vunpack.c.l.b16 %v348
      %v388 = vunpack.c.l.b16 %v349
      %v389 = vunpack.c.l.b16 %v350
      %v390 = vunpack.c.l.b16 %v351
      %v391 = vunpack.c.l.b16 %v352
      %v392 = vunpack.c.l.b16 %v353
      %v393 = vunpack.c.l.b16 %v354
      %v394 = vunpack.c.l.b16 %v355
      %v395 = vunpack.c.l.b16 %v356
      %v396 = vunpack.c.l.b16 %v357
      %v397 = vunpack.c.l.b16 %v358
      %v398 = vunpack.c.l.b16 %v359
      %v399 = vpack.c.b16 %v384, %v383
      %v400 = vpack.c.b16 %v386, %v385
      %v401 = vpack.c.b16 %v388, %v387
      %v402 = vpack.c.b16 %v390, %v389
      %v403 = vpack.c.b16 %v392, %v391
      %v404 = vpack.c.b16 %v394, %v393
      %v405 = vpack.c.b16 %v396, %v395
      %v406 = vpack.c.b16 %v398, %v397
      %415 = vmatprep.subr.bf16.mxu0 0
      %416 = vmatpush1.bf16.msra.mxu0 %v399
      %417 = vmatprep.subr.bf16.mxu0 0
      %418 = vmatpush1.bf16.msra.mxu0 %v400
      %419 = vmatprep.subr.bf16.mxu0 0
      %420 = vmatpush1.bf16.msra.mxu0 %v401
      %421 = vmatprep.subr.bf16.mxu0 0
      %422 = vmatpush1.bf16.msra.mxu0 %v402
      %423 = vmatprep.subr.bf16.mxu0 0
      %424 = vmatpush1.bf16.msra.mxu0 %v403
      %425 = vmatprep.subr.bf16.mxu0 0
      %426 = vmatpush1.bf16.msra.mxu0 %v404
      %427 = vmatprep.subr.bf16.mxu0 0
      %428 = vmatpush1.bf16.msra.mxu0 %v405
      %429 = vmatprep.subr.bf16.mxu0 0
      %430 = vmatpush1.bf16.msra.mxu0 %v406
      %431 = vmatprep.subr.bf16.mxu0 0
      %432 = vmatpush1.bf16.msra.mxu0 0
      %433 = vmatprep.subr.bf16.mxu0 0
      %434 = vmatpush1.bf16.msra.mxu0 0
      %435 = vmatprep.subr.bf16.mxu0 0
      %436 = vmatpush1.bf16.msra.mxu0 0
      %437 = vmatprep.subr.bf16.mxu0 0
      %438 = vmatpush1.bf16.msra.mxu0 0
      %439 = vmatprep.subr.bf16.mxu0 0
      %440 = vmatpush1.bf16.msra.mxu0 0
      %441 = vmatprep.subr.bf16.mxu0 0
      %442 = vmatpush1.bf16.msra.mxu0 0
      %443 = vmatprep.subr.bf16.mxu0 0
      %444 = vmatpush1.bf16.msra.mxu0 0
      %445 = vmatprep.subr.bf16.mxu0 0
      %446 = vmatpush1.bf16.msra.mxu0 0
      %447 = vmatprep.mubr.bf16.mxu0 0
      %448 = vmatmul.mubr.bf16.gmra.mrb[0].mxu0 %v332
      %v449 = vpop.f32.mrb[0].mxu0
      %v450 = vadd.f32 %v365, %v449
      %v451 = vpop.f32.mrb[0].mxu0
      %v452 = vpop.f32.mrb[0].mxu0
      %v453 = vadd.f32 %v365, %v452
      %v454 = vpop.f32.mrb[0].mxu0
      %455 = vmatprep.mubr.bf16.mxu0 0
      %456 = vmatmul.mubr.bf16.gmra.mrb[0].mxu0 %v333
      %v457 = vpop.f32.mrb[0].mxu0
      %v458 = vadd.f32 %v365, %v457
      %v459 = vpop.f32.mrb[0].mxu0
      %v460 = vpop.f32.mrb[0].mxu0
      %v461 = vadd.f32 %v365, %v460
      %v462 = vpop.f32.mrb[0].mxu0
      %463 = vmatprep.mubr.bf16.mxu0 0
      %464 = vmatmul.mubr.bf16.gmra.mrb[0].mxu0 %v334
      %v465 = vpop.f32.mrb[0].mxu0
      %v466 = vadd.f32 %v365, %v465
      %v467 = vpop.f32.mrb[0].mxu0
      %v468 = vpop.f32.mrb[0].mxu0
      %v469 = vadd.f32 %v365, %v468
      %v470 = vpop.f32.mrb[0].mxu0
      %471 = vmatprep.mubr.bf16.mxu0 0
      %472 = vmatmul.mubr.bf16.gmra.mrb[0].mxu0 %v335
      %v473 = vpop.f32.mrb[0].mxu0
      %v474 = vadd.f32 %v365, %v473
      %v475 = vpop.f32.mrb[0].mxu0
      %v476 = vpop.f32.mrb[0].mxu0
      %v477 = vadd.f32 %v365, %v476
      %v478 = vpop.f32.mrb[0].mxu0
      %479 = vmatprep.mubr.bf16.mxu0 0
      %480 = vmatmul.mubr.bf16.gmra.mrb[0].mxu0 %v336
      %v481 = vpop.f32.mrb[0].mxu0
      %v482 = vadd.f32 %v365, %v481
      %v483 = vpop.f32.mrb[0].mxu0
      %v484 = vpop.f32.mrb[0].mxu0
      %v485 = vadd.f32 %v365, %v484
      %v486 = vpop.f32.mrb[0].mxu0
      %487 = vmatprep.mubr.bf16.mxu0 0
      %488 = vmatmul.mubr.bf16.gmra.mrb[0].mxu0 %v337
      %v489 = vpop.f32.mrb[0].mxu0
      %v490 = vadd.f32 %v365, %v489
      %v491 = vpop.f32.mrb[0].mxu0
      %v492 = vpop.f32.mrb[0].mxu0
      %v493 = vadd.f32 %v365, %v492
      %v494 = vpop.f32.mrb[0].mxu0
      %495 = vmatprep.mubr.bf16.mxu0 0
      %496 = vmatmul.mubr.bf16.gmra.mrb[0].mxu0 %v338
      %v497 = vpop.f32.mrb[0].mxu0
      %v498 = vadd.f32 %v365, %v497
      %v499 = vpop.f32.mrb[0].mxu0
      %v500 = vpop.f32.mrb[0].mxu0
      %v501 = vadd.f32 %v365, %v500
      %v502 = vpop.f32.mrb[0].mxu0
      %503 = vmatprep.mubr.bf16.mxu0 0
      %504 = vmatmul.mubr.bf16.gmra.mrb[0].mxu0 %v339
      %v505 = vpop.f32.mrb[0].mxu0
      %v506 = vadd.f32 %v365, %v505
      %v507 = vpop.f32.mrb[0].mxu0
      %v508 = vpop.f32.mrb[0].mxu0
      %v509 = vadd.f32 %v365, %v508
      %v510 = vpop.f32.mrb[0].mxu0
      %511 = vmatprep.mubr.bf16.mxu0 0
      %512 = vmatmul.mubr.bf16.gmra.mrb[0].mxu0 %v340
      %v513 = vpop.f32.mrb[0].mxu0
      %v514 = vadd.f32 %v365, %v513
      %v515 = vpop.f32.mrb[0].mxu0
      %v516 = vpop.f32.mrb[0].mxu0
      %v517 = vadd.f32 %v365, %v516
      %v518 = vpop.f32.mrb[0].mxu0
      %519 = vmatprep.mubr.bf16.mxu0 0
      %520 = vmatmul.mubr.bf16.gmra.mrb[0].mxu0 %v341
      %v521 = vpop.f32.mrb[0].mxu0
      %v522 = vadd.f32 %v365, %v521
      %v523 = vpop.f32.mrb[0].mxu0
      %v524 = vpop.f32.mrb[0].mxu0
      %v525 = vadd.f32 %v365, %v524
      %v526 = vpop.f32.mrb[0].mxu0
      %527 = vmatprep.mubr.bf16.mxu0 0
      %528 = vmatmul.mubr.bf16.gmra.mrb[0].mxu0 %v342
      %v529 = vpop.f32.mrb[0].mxu0
      %v530 = vadd.f32 %v365, %v529
      %v531 = vpop.f32.mrb[0].mxu0
      %v532 = vpop.f32.mrb[0].mxu0
      %v533 = vadd.f32 %v365, %v532
      %v534 = vpop.f32.mrb[0].mxu0
      %535 = vmatprep.mubr.bf16.mxu0 0
      %536 = vmatmul.mubr.bf16.gmra.mrb[0].mxu0 %v343
      %v537 = vpop.f32.mrb[0].mxu0
      %v538 = vadd.f32 %v365, %v537
      %v539 = vpop.f32.mrb[0].mxu0
      %v540 = vpop.f32.mrb[0].mxu0
      %v541 = vadd.f32 %v365, %v540
      %v542 = vpop.f32.mrb[0].mxu0
      %543 = vdwg.mxu0
      %v544 = vmax.f32 %v450, 0.0
      %v545 = vmax.f32 %v453, 0.0
      %v546 = vmax.f32 %v458, 0.0
      %v547 = vmax.f32 %v461, 0.0
      %v548 = vmax.f32 %v466, 0.0
      %v549 = vmax.f32 %v469, 0.0
      %v550 = vmax.f32 %v474, 0.0
      %v551 = vmax.f32 %v477, 0.0
      %v552 = vmax.f32 %v482, 0.0
      %v553 = vmax.f32 %v485, 0.0
      %v554 = vmax.f32 %v490, 0.0
      %v555 = vmax.f32 %v493, 0.0
      %v556 = vmax.f32 %v498, 0.0
      %v557 = vmax.f32 %v501, 0.0
      %v558 = vmax.f32 %v506, 0.0
      %v559 = vmax.f32 %v509, 0.0
      %v560 = vmax.f32 %v514, 0.0
      %v561 = vmax.f32 %v517, 0.0
      %v562 = vmax.f32 %v522, 0.0
      %v563 = vmax.f32 %v525, 0.0
      %v564 = vmax.f32 %v530, 0.0
      %v565 = vmax.f32 %v533, 0.0
      %v566 = vmax.f32 %v538, 0.0
      %v567 = vmax.f32 %v541, 0.0
      %v568 = vstv %s305
      %v569 = vadd.s32 %v568, 1
      %v570 = vadd.s32 %v568, 2
      %v571 = vadd.s32 %v568, 3
      %v572 = vadd.s32 %v568, 4
      %v573 = vadd.s32 %v568, 5
      %v574 = vlaneseq
      %v575 = vshrl.u32 %v574, 7
      %v576 = vadd.s32 %v575, 8
      %v577 = vadd.s32 %v575, 16
      %v578 = vadd.s32 %v575, 24
      %vm579 = vcmp.ge.s32.totalorder %v568, 1
      %vm580 = vcmp.ge.s32.totalorder %v569, 1
      %vm581 = vcmp.ge.s32.totalorder %v570, 1
      %vm582 = vcmp.ge.s32.totalorder %v571, 1
      %vm583 = vcmp.ge.s32.totalorder %v572, 1
      %vm584 = vcmp.ge.s32.totalorder %v573, 1
      %vm585 = vcmp.lt.s32.totalorder %v568, 17
      %vm586 = vcmp.lt.s32.totalorder %v569, 17
      %vm587 = vcmp.lt.s32.totalorder %v570, 17
      %vm588 = vcmp.lt.s32.totalorder %v571, 17
      %vm589 = vcmp.lt.s32.totalorder %v572, 17
      %vm590 = vcmp.lt.s32.totalorder %v573, 17
      %vm591 = vmand %vm579, %vm585
      %vm592 = vmand %vm580, %vm586
      %vm593 = vmand %vm581, %vm587
      %vm594 = vmand %vm582, %vm588
      %vm595 = vmand %vm583, %vm589
      %vm596 = vmand %vm584, %vm590
      %vm597 = vcmp.ge.s32.totalorder %v575, 8
      %vm598 = vcmp.ge.s32.totalorder %v576, 8
      %vm599 = vcmp.ge.s32.totalorder %v577, 8
      %vm600 = vcmp.ge.s32.totalorder %v578, 8
      %vm601 = vmand %vm591, %vm597
      %vm602 = vmand %vm591, %vm598
      %vm603 = vmand %vm591, %vm599
      %vm604 = vmand %vm591, %vm600
      %vm605 = vmand %vm592, %vm597
      %vm606 = vmand %vm592, %vm598
      %vm607 = vmand %vm592, %vm599
      %vm608 = vmand %vm592, %vm600
      %vm609 = vmand %vm593, %vm597
      %vm610 = vmand %vm593, %vm598
      %vm611 = vmand %vm593, %vm599
      %vm612 = vmand %vm593, %vm600
      %vm613 = vmand %vm594, %vm597
      %vm614 = vmand %vm594, %vm598
      %vm615 = vmand %vm594, %vm599
      %vm616 = vmand %vm594, %vm600
      %vm617 = vmand %vm595, %vm597
      %vm618 = vmand %vm595, %vm598
      %vm619 = vmand %vm595, %vm599
      %vm620 = vmand %vm595, %vm600
      %vm621 = vmand %vm596, %vm597
      %vm622 = vmand %vm596, %vm598
      %vm623 = vmand %vm596, %vm599
      %vm624 = vmand %vm596, %vm600
      %vm625 = vcmp.lt.s32.totalorder %v575, 24
      %vm626 = vcmp.lt.s32.totalorder %v576, 24
      %vm627 = vcmp.lt.s32.totalorder %v577, 24
      %vm628 = vcmp.lt.s32.totalorder %v578, 24
      %vm629 = vmand %vm601, %vm625
      %vm630 = vmand %vm602, %vm626
      %vm631 = vmand %vm603, %vm627
      %vm632 = vmand %vm604, %vm628
      %vm633 = vmand %vm605, %vm625
      %vm634 = vmand %vm606, %vm626
      %vm635 = vmand %vm607, %vm627
      %vm636 = vmand %vm608, %vm628
      %vm637 = vmand %vm609, %vm625
      %vm638 = vmand %vm610, %vm626
      %vm639 = vmand %vm611, %vm627
      %vm640 = vmand %vm612, %vm628
      %vm641 = vmand %vm613, %vm625
      %vm642 = vmand %vm614, %vm626
      %vm643 = vmand %vm615, %vm627
      %vm644 = vmand %vm616, %vm628
      %vm645 = vmand %vm617, %vm625
      %vm646 = vmand %vm618, %vm626
      %vm647 = vmand %vm619, %vm627
      %vm648 = vmand %vm620, %vm628
      %vm649 = vmand %vm621, %vm625
      %vm650 = vmand %vm622, %vm626
      %vm651 = vmand %vm623, %vm627
      %vm652 = vmand %vm624, %vm628
      %v653 = vsel %vm629, %v544, 0.0
      %v654 = vsel %vm630, %v545, 0.0
      %v655 = vsel %vm631, %v546, 0.0
      %v656 = vsel %vm632, %v547, 0.0
      %v657 = vsel %vm633, %v548, 0.0
      %v658 = vsel %vm634, %v549, 0.0
      %v659 = vsel %vm635, %v550, 0.0
      %v660 = vsel %vm636, %v551, 0.0
      %v661 = vsel %vm637, %v552, 0.0
      %v662 = vsel %vm638, %v553, 0.0
      %v663 = vsel %vm639, %v554, 0.0
      %v664 = vsel %vm640, %v555, 0.0
      %v665 = vsel %vm641, %v556, 0.0
      %v666 = vsel %vm642, %v557, 0.0
      %v667 = vsel %vm643, %v558, 0.0
      %v668 = vsel %vm644, %v559, 0.0
      %v669 = vsel %vm645, %v560, 0.0
      %v670 = vsel %vm646, %v561, 0.0
      %v671 = vsel %vm647, %v562, 0.0
      %v672 = vsel %vm648, %v563, 0.0
      %v673 = vsel %vm649, %v564, 0.0
      %v674 = vsel %vm650, %v565, 0.0
      %v675 = vsel %vm651, %v566, 0.0
      %v676 = vsel %vm652, %v567, 0.0
      %v677 = vpack.c.bf16 %v654, %v653
      %v678 = vpack.c.bf16 %v656, %v655
      %v679 = vpack.c.bf16 %v658, %v657
      %v680 = vpack.c.bf16 %v660, %v659
      %v681 = vpack.c.bf16 %v662, %v661
      %v682 = vpack.c.bf16 %v664, %v663
      %v683 = vpack.c.bf16 %v666, %v665
      %v684 = vpack.c.bf16 %v668, %v667
      %v685 = vpack.c.bf16 %v670, %v669
      %v686 = vpack.c.bf16 %v672, %v671
      %v687 = vpack.c.bf16 %v674, %v673
      %v688 = vpack.c.bf16 %v676, %v675
      %689 = vst [vmem:[#allocation3] sm:$0xff] %v677
      %690 = vst [vmem:[#allocation3 + $0x8] sm:$0xff] %v678
      %691 = vst [vmem:[#allocation3 + $0x10] sm:$0xff] %v679
      %692 = vst [vmem:[#allocation3 + $0x18] sm:$0xff] %v680
      %693 = vst [vmem:[#allocation3 + $0x20] sm:$0xff] %v681
      %694 = vst [vmem:[#allocation3 + $0x28] sm:$0xff] %v682
      %695 = vst [vmem:[#allocation3 + $0x30] sm:$0xff] %v683
      %696 = vst [vmem:[#allocation3 + $0x38] sm:$0xff] %v684
      %697 = vst [vmem:[#allocation3 + $0x40] sm:$0xff] %v685
      %698 = vst [vmem:[#allocation3 + $0x48] sm:$0xff] %v686
      %699 = vst [vmem:[#allocation3 + $0x50] sm:$0xff] %v687
      %700 = vst [vmem:[#allocation3 + $0x58] sm:$0xff] %v688
      %vm725 = vcmask 1040384
      %v726 = vrot.slane %v653, 7
      %v727 = vrot.slane %v654, 7
      %v728 = vsel %vm725, %v726, %v727
      %v729 = vrot.slane %v655, 7
      %v730 = vsel %vm725, %v727, %v729
      %v731 = vrot.slane %v656, 7
      %v732 = vsel %vm725, %v729, %v731
      %v733 = vrot.slane %v657, 7
      %v734 = vsel %vm725, %v731, %v733
      %v735 = vrot.slane %v658, 7
      %v736 = vsel %vm725, %v733, %v735
      %v737 = vrot.slane %v659, 7
      %v738 = vsel %vm725, %v735, %v737
      %v739 = vrot.slane %v660, 7
      %v740 = vsel %vm725, %v737, %v739
      %v741 = vrot.slane %v661, 7
      %v742 = vsel %vm725, %v739, %v741
      %v743 = vrot.slane %v662, 7
      %v744 = vsel %vm725, %v741, %v743
      %v745 = vrot.slane %v663, 7
      %v746 = vsel %vm725, %v743, %v745
      %v747 = vrot.slane %v664, 7
      %v748 = vsel %vm725, %v745, %v747
      %v749 = vrot.slane %v665, 7
      %v750 = vsel %vm725, %v747, %v749
      %v751 = vrot.slane %v666, 7
      %v752 = vsel %vm725, %v749, %v751
      %v753 = vrot.slane %v667, 7
      %v754 = vsel %vm725, %v751, %v753
      %v755 = vrot.slane %v668, 7
      %v756 = vsel %vm725, %v753, %v755
      %v757 = vrot.slane %v669, 7
      %v758 = vsel %vm725, %v755, %v757
      %v759 = vrot.slane %v670, 7
      %v760 = vsel %vm725, %v757, %v759
      %v761 = vrot.slane %v671, 7
      %v762 = vsel %vm725, %v759, %v761
      %v763 = vrot.slane %v672, 7
      %v764 = vsel %vm725, %v761, %v763
      %v765 = vrot.slane %v673, 7
      %v766 = vsel %vm725, %v763, %v765
      %v767 = vrot.slane %v674, 7
      %v768 = vsel %vm725, %v765, %v767
      %v769 = vrot.slane %v675, 7
      %v770 = vsel %vm725, %v767, %v769
      %v771 = vrot.slane %v676, 7
      %v772 = vsel %vm725, %v769, %v771
      %v797 = vsel %vm725, 0.0, %v726
      %v798 = vpack.c.bf16 %v728, %v797
      %v799 = vpack.c.bf16 %v732, %v730
      %v800 = vpack.c.bf16 %v736, %v734
      %v801 = vpack.c.bf16 %v740, %v738
      %v802 = vpack.c.bf16 %v744, %v742
      %v803 = vpack.c.bf16 %v748, %v746
      %v804 = vpack.c.bf16 %v752, %v750
      %v805 = vpack.c.bf16 %v756, %v754
      %v806 = vpack.c.bf16 %v760, %v758
      %v807 = vpack.c.bf16 %v764, %v762
      %v808 = vpack.c.bf16 %v768, %v766
      %v809 = vpack.c.bf16 %v772, %v770
      %810 = vst [vmem:[#allocation2] sm:$0xff] %v798
      %811 = vst [vmem:[#allocation2 + $0x8] sm:$0xff] %v799
      %812 = vst [vmem:[#allocation2 + $0x10] sm:$0xff] %v800
      %813 = vst [vmem:[#allocation2 + $0x18] sm:$0xff] %v801
      %814 = vst [vmem:[#allocation2 + $0x20] sm:$0xff] %v802
      %815 = vst [vmem:[#allocation2 + $0x28] sm:$0xff] %v803
      %816 = vst [vmem:[#allocation2 + $0x30] sm:$0xff] %v804
      %817 = vst [vmem:[#allocation2 + $0x38] sm:$0xff] %v805
      %818 = vst [vmem:[#allocation2 + $0x40] sm:$0xff] %v806
      %819 = vst [vmem:[#allocation2 + $0x48] sm:$0xff] %v807
      %820 = vst [vmem:[#allocation2 + $0x50] sm:$0xff] %v808
      %821 = vst [vmem:[#allocation2 + $0x58] sm:$0xff] %v809
      %vm822 = vcmask 1046528
      %v823 = vrot.slane %v653, 1
      %v824 = vrot.slane %v654, 1
      %v825 = vsel %vm822, %v823, %v824
      %v826 = vrot.slane %v655, 1
      %v827 = vsel %vm822, %v824, %v826
      %v828 = vrot.slane %v656, 1
      %v829 = vsel %vm822, %v826, %v828
      %v830 = vrot.slane %v657, 1
      %v831 = vsel %vm822, %v828, %v830
      %v832 = vrot.slane %v658, 1
      %v833 = vsel %vm822, %v830, %v832
      %v834 = vrot.slane %v659, 1
      %v835 = vsel %vm822, %v832, %v834
      %v836 = vrot.slane %v660, 1
      %v837 = vsel %vm822, %v834, %v836
      %v838 = vrot.slane %v661, 1
      %v839 = vsel %vm822, %v836, %v838
      %v840 = vrot.slane %v662, 1
      %v841 = vsel %vm822, %v838, %v840
      %v842 = vrot.slane %v663, 1
      %v843 = vsel %vm822, %v840, %v842
      %v844 = vrot.slane %v664, 1
      %v845 = vsel %vm822, %v842, %v844
      %v846 = vrot.slane %v665, 1
      %v847 = vsel %vm822, %v844, %v846
      %v848 = vrot.slane %v666, 1
      %v849 = vsel %vm822, %v846, %v848
      %v850 = vrot.slane %v667, 1
      %v851 = vsel %vm822, %v848, %v850
      %v852 = vrot.slane %v668, 1
      %v853 = vsel %vm822, %v850, %v852
      %v854 = vrot.slane %v669, 1
      %v855 = vsel %vm822, %v852, %v854
      %v856 = vrot.slane %v670, 1
      %v857 = vsel %vm822, %v854, %v856
      %v858 = vrot.slane %v671, 1
      %v859 = vsel %vm822, %v856, %v858
      %v860 = vrot.slane %v672, 1
      %v861 = vsel %vm822, %v858, %v860
      %v862 = vrot.slane %v673, 1
      %v863 = vsel %vm822, %v860, %v862
      %v864 = vrot.slane %v674, 1
      %v865 = vsel %vm822, %v862, %v864
      %v866 = vrot.slane %v675, 1
      %v867 = vsel %vm822, %v864, %v866
      %v868 = vrot.slane %v676, 1
      %v869 = vsel %vm822, %v866, %v868
      %v894 = vsel %vm822, %v868, 0.0
      %v895 = vpack.c.bf16 %v827, %v825
      %v896 = vpack.c.bf16 %v831, %v829
      %v897 = vpack.c.bf16 %v835, %v833
      %v898 = vpack.c.bf16 %v839, %v837
      %v899 = vpack.c.bf16 %v843, %v841
      %v900 = vpack.c.bf16 %v847, %v845
      %v901 = vpack.c.bf16 %v851, %v849
      %v902 = vpack.c.bf16 %v855, %v853
      %v903 = vpack.c.bf16 %v859, %v857
      %v904 = vpack.c.bf16 %v863, %v861
      %v905 = vpack.c.bf16 %v867, %v865
      %v906 = vpack.c.bf16 %v894, %v869
      %907 = vst [vmem:[#allocation4] sm:$0xff] %v895
      %908 = vst [vmem:[#allocation4 + $0x8] sm:$0xff] %v896
      %909 = vst [vmem:[#allocation4 + $0x10] sm:$0xff] %v897
      %910 = vst [vmem:[#allocation4 + $0x18] sm:$0xff] %v898
      %911 = vst [vmem:[#allocation4 + $0x20] sm:$0xff] %v899
      %912 = vst [vmem:[#allocation4 + $0x28] sm:$0xff] %v900
      %913 = vst [vmem:[#allocation4 + $0x30] sm:$0xff] %v901
      %914 = vst [vmem:[#allocation4 + $0x38] sm:$0xff] %v902
      %915 = vst [vmem:[#allocation4 + $0x40] sm:$0xff] %v903
      %916 = vst [vmem:[#allocation4 + $0x48] sm:$0xff] %v904
      %917 = vst [vmem:[#allocation4 + $0x50] sm:$0xff] %v905
      %918 = vst [vmem:[#allocation4 + $0x58] sm:$0xff] %v906
      %v919 = vld [vmem:[#allocation2] sm:$0xff]
      %v920 = vld [vmem:[#allocation2 + $0x8] sm:$0xff]
      %v921 = vld [vmem:[#allocation2 + $0x10] sm:$0xff]
      %v922 = vld [vmem:[#allocation2 + $0x18] sm:$0xff]
      %v923 = vld [vmem:[#allocation2 + $0x20] sm:$0xff]
      %v924 = vld [vmem:[#allocation2 + $0x28] sm:$0xff]
      %v925 = vld [vmem:[#allocation2 + $0x30] sm:$0xff]
      %v926 = vld [vmem:[#allocation2 + $0x38] sm:$0xff]
      %v927 = vld [vmem:[%s3] sm:$0xf]
      %v928 = vld [vmem:[%s3 + $0x4] sm:$0xf]
      %v929 = vld [vmem:[%s3 + $0x8] sm:$0xf]
      %v930 = vld [vmem:[%s3 + $0xc] sm:$0xf]
      %v931 = vld [vmem:[%s3 + $0x10] sm:$0xf]
      %v932 = vld [vmem:[%s3 + $0x14] sm:$0xf]
      %v933 = vld [vmem:[%s3 + $0x18] sm:$0xf]
      %v934 = vld [vmem:[%s3 + $0x1c] sm:$0xf]
      %v935 = vld [vmem:[%s3 + $0x20] sm:$0xf]
      %v936 = vld [vmem:[%s3 + $0x24] sm:$0xf]
      %v937 = vld [vmem:[%s3 + $0x28] sm:$0xf]
      %v938 = vld [vmem:[%s3 + $0x2c] sm:$0xf]
      %v939 = vld [vmem:[%s3 + $0x30] sm:$0xf]
      %v940 = vld [vmem:[%s3 + $0x34] sm:$0xf]
      %v941 = vld [vmem:[%s3 + $0x38] sm:$0xf]
      %v942 = vld [vmem:[%s3 + $0x3c] sm:$0xf]
      %v959 = vunpack.c.l.b16 %v927
      %v960 = vunpack.c.l.b16 %v928
      %v961 = vunpack.c.l.b16 %v929
      %v962 = vunpack.c.l.b16 %v930
      %v963 = vunpack.c.l.b16 %v931
      %v964 = vunpack.c.l.b16 %v932
      %v965 = vunpack.c.l.b16 %v933
      %v966 = vunpack.c.l.b16 %v934
      %v967 = vunpack.c.l.b16 %v935
      %v968 = vunpack.c.l.b16 %v936
      %v969 = vunpack.c.l.b16 %v937
      %v970 = vunpack.c.l.b16 %v938
      %v971 = vunpack.c.l.b16 %v939
      %v972 = vunpack.c.l.b16 %v940
      %v973 = vunpack.c.l.b16 %v941
      %v974 = vunpack.c.l.b16 %v942
      %v975 = vpack.c.b16 %v960, %v959
      %v976 = vpack.c.b16 %v962, %v961
      %v977 = vpack.c.b16 %v964, %v963
      %v978 = vpack.c.b16 %v966, %v965
      %v979 = vpack.c.b16 %v968, %v967
      %v980 = vpack.c.b16 %v970, %v969
      %v981 = vpack.c.b16 %v972, %v971
      %v982 = vpack.c.b16 %v974, %v973
      %991 = vmatprep.subr.bf16.mxu0 0
      %992 = vmatpush1.bf16.msra.mxu0 %v975
      %993 = vmatprep.subr.bf16.mxu0 0
      %994 = vmatpush1.bf16.msra.mxu0 %v976
      %995 = vmatprep.subr.bf16.mxu0 0
      %996 = vmatpush1.bf16.msra.mxu0 %v977
      %997 = vmatprep.subr.bf16.mxu0 0
      %998 = vmatpush1.bf16.msra.mxu0 %v978
      %999 = vmatprep.subr.bf16.mxu0 0
      %1000 = vmatpush1.bf16.msra.mxu0 %v979
      %1001 = vmatprep.subr.bf16.mxu0 0
      %1002 = vmatpush1.bf16.msra.mxu0 %v980
      %1003 = vmatprep.subr.bf16.mxu0 0
      %1004 = vmatpush1.bf16.msra.mxu0 %v981
      %1005 = vmatprep.subr.bf16.mxu0 0
      %1006 = vmatpush1.bf16.msra.mxu0 %v982
      %1007 = vmatprep.subr.bf16.mxu0 0
      %1008 = vmatpush1.bf16.msra.mxu0 0
      %1009 = vmatprep.subr.bf16.mxu0 0
      %1010 = vmatpush1.bf16.msra.mxu0 0
      %1011 = vmatprep.subr.bf16.mxu0 0
      %1012 = vmatpush1.bf16.msra.mxu0 0
      %1013 = vmatprep.subr.bf16.mxu0 0
      %1014 = vmatpush1.bf16.msra.mxu0 0
      %1015 = vmatprep.subr.bf16.mxu0 0
      %1016 = vmatpush1.bf16.msra.mxu0 0
      %1017 = vmatprep.subr.bf16.mxu0 0
      %1018 = vmatpush1.bf16.msra.mxu0 0
      %1019 = vmatprep.subr.bf16.mxu0 0
      %1020 = vmatpush1.bf16.msra.mxu0 0
      %1021 = vmatprep.subr.bf16.mxu0 0
      %1022 = vmatpush1.bf16.msra.mxu0 0
      %1023 = vmatprep.mubr.bf16.mxu0 0
      %1024 = vmatmul.mubr.bf16.gmra.mrb[0].mxu0 %v919
      %v1025 = vpop.f32.mrb[0].mxu0
      %v1026 = vadd.f32 0.0, %v1025
      %v1027 = vpop.f32.mrb[0].mxu0
      %v1028 = vpop.f32.mrb[0].mxu0
      %v1029 = vadd.f32 0.0, %v1028
      %v1030 = vpop.f32.mrb[0].mxu0
      %1031 = vmatprep.mubr.bf16.mxu0 0
      %1032 = vmatmul.mubr.bf16.gmra.mrb[0].mxu0 %v920
      %v1033 = vpop.f32.mrb[0].mxu0
      %v1034 = vadd.f32 0.0, %v1033
      %v1035 = vpop.f32.mrb[0].mxu0
      %v1036 = vpop.f32.mrb[0].mxu0
      %v1037 = vadd.f32 0.0, %v1036
      %v1038 = vpop.f32.mrb[0].mxu0
      %1039 = vmatprep.mubr.bf16.mxu0 0
      %1040 = vmatmul.mubr.bf16.gmra.mrb[0].mxu0 %v921
      %v1041 = vpop.f32.mrb[0].mxu0
      %v1042 = vadd.f32 0.0, %v1041
      %v1043 = vpop.f32.mrb[0].mxu0
      %v1044 = vpop.f32.mrb[0].mxu0
      %v1045 = vadd.f32 0.0, %v1044
      %v1046 = vpop.f32.mrb[0].mxu0
      %1047 = vmatprep.mubr.bf16.mxu0 0
      %1048 = vmatmul.mubr.bf16.gmra.mrb[0].mxu0 %v922
      %v1049 = vpop.f32.mrb[0].mxu0
      %v1050 = vadd.f32 0.0, %v1049
      %v1051 = vpop.f32.mrb[0].mxu0
      %v1052 = vpop.f32.mrb[0].mxu0
      %v1053 = vadd.f32 0.0, %v1052
      %v1054 = vpop.f32.mrb[0].mxu0
      %1055 = vmatprep.mubr.bf16.mxu0 0
      %1056 = vmatmul.mubr.bf16.gmra.mrb[0].mxu0 %v923
      %v1057 = vpop.f32.mrb[0].mxu0
      %v1058 = vadd.f32 0.0, %v1057
      %v1059 = vpop.f32.mrb[0].mxu0
      %v1060 = vpop.f32.mrb[0].mxu0
      %v1061 = vadd.f32 0.0, %v1060
      %v1062 = vpop.f32.mrb[0].mxu0
      %1063 = vmatprep.mubr.bf16.mxu0 0
      %1064 = vmatmul.mubr.bf16.gmra.mrb[0].mxu0 %v924
      %v1065 = vpop.f32.mrb[0].mxu0
      %v1066 = vadd.f32 0.0, %v1065
      %v1067 = vpop.f32.mrb[0].mxu0
      %v1068 = vpop.f32.mrb[0].mxu0
      %v1069 = vadd.f32 0.0, %v1068
      %v1070 = vpop.f32.mrb[0].mxu0
      %1071 = vmatprep.mubr.bf16.mxu0 0
      %1072 = vmatmul.mubr.bf16.gmra.mrb[0].mxu0 %v925
      %v1073 = vpop.f32.mrb[0].mxu0
      %v1074 = vadd.f32 0.0, %v1073
      %v1075 = vpop.f32.mrb[0].mxu0
      %v1076 = vpop.f32.mrb[0].mxu0
      %v1077 = vadd.f32 0.0, %v1076
      %v1078 = vpop.f32.mrb[0].mxu0
      %1079 = vmatprep.mubr.bf16.mxu0 0
      %1080 = vmatmul.mubr.bf16.gmra.mrb[0].mxu0 %v926
      %v1081 = vpop.f32.mrb[0].mxu0
      %v1082 = vadd.f32 0.0, %v1081
      %v1083 = vpop.f32.mrb[0].mxu0
      %v1084 = vpop.f32.mrb[0].mxu0
      %v1085 = vadd.f32 0.0, %v1084
      %v1086 = vpop.f32.mrb[0].mxu0
      %1087 = vdwg.mxu0
      %1088 = vst [vmem:[#allocation5] sm:$0xff] %v1026
      %1089 = vst [vmem:[#allocation5 + $0x8] sm:$0xff] %v1029
      %1090 = vst [vmem:[#allocation5 + $0x10] sm:$0xff] %v1034
      %1091 = vst [vmem:[#allocation5 + $0x18] sm:$0xff] %v1037
      %1092 = vst [vmem:[#allocation5 + $0x20] sm:$0xff] %v1042
      %1093 = vst [vmem:[#allocation5 + $0x28] sm:$0xff] %v1045
      %1094 = vst [vmem:[#allocation5 + $0x30] sm:$0xff] %v1050
      %1095 = vst [vmem:[#allocation5 + $0x38] sm:$0xff] %v1053
      %1096 = vst [vmem:[#allocation5 + $0x40] sm:$0xff] %v1058
      %1097 = vst [vmem:[#allocation5 + $0x48] sm:$0xff] %v1061
      %1098 = vst [vmem:[#allocation5 + $0x50] sm:$0xff] %v1066
      %1099 = vst [vmem:[#allocation5 + $0x58] sm:$0xff] %v1069
      %1100 = vst [vmem:[#allocation5 + $0x60] sm:$0xff] %v1074
      %1101 = vst [vmem:[#allocation5 + $0x68] sm:$0xff] %v1077
      %1102 = vst [vmem:[#allocation5 + $0x70] sm:$0xff] %v1082
      %1103 = vst [vmem:[#allocation5 + $0x78] sm:$0xff] %v1085
      %v1104 = vld [vmem:[#allocation3] sm:$0xff]
      %v1105 = vld [vmem:[#allocation3 + $0x8] sm:$0xff]
      %v1106 = vld [vmem:[#allocation3 + $0x10] sm:$0xff]
      %v1107 = vld [vmem:[#allocation3 + $0x18] sm:$0xff]
      %v1108 = vld [vmem:[#allocation3 + $0x20] sm:$0xff]
      %v1109 = vld [vmem:[#allocation3 + $0x28] sm:$0xff]
      %v1110 = vld [vmem:[#allocation3 + $0x30] sm:$0xff]
      %v1111 = vld [vmem:[#allocation3 + $0x38] sm:$0xff]
      %s1112 = scalar_lea.vmem %s3, 64
      %v1113 = vld [vmem:[%s1112] sm:$0xf]
      %v1114 = vld [vmem:[%s1112 + $0x4] sm:$0xf]
      %v1115 = vld [vmem:[%s1112 + $0x8] sm:$0xf]
      %v1116 = vld [vmem:[%s1112 + $0xc] sm:$0xf]
      %v1117 = vld [vmem:[%s1112 + $0x10] sm:$0xf]
      %v1118 = vld [vmem:[%s1112 + $0x14] sm:$0xf]
      %v1119 = vld [vmem:[%s1112 + $0x18] sm:$0xf]
      %v1120 = vld [vmem:[%s1112 + $0x1c] sm:$0xf]
      %v1121 = vld [vmem:[%s1112 + $0x20] sm:$0xf]
      %v1122 = vld [vmem:[%s1112 + $0x24] sm:$0xf]
      %v1123 = vld [vmem:[%s1112 + $0x28] sm:$0xf]
      %v1124 = vld [vmem:[%s1112 + $0x2c] sm:$0xf]
      %v1125 = vld [vmem:[%s1112 + $0x30] sm:$0xf]
      %v1126 = vld [vmem:[%s1112 + $0x34] sm:$0xf]
      %v1127 = vld [vmem:[%s1112 + $0x38] sm:$0xf]
      %v1128 = vld [vmem:[%s1112 + $0x3c] sm:$0xf]
      %v1145 = vunpack.c.l.b16 %v1113
      %v1146 = vunpack.c.l.b16 %v1114
      %v1147 = vunpack.c.l.b16 %v1115
      %v1148 = vunpack.c.l.b16 %v1116
      %v1149 = vunpack.c.l.b16 %v1117
      %v1150 = vunpack.c.l.b16 %v1118
      %v1151 = vunpack.c.l.b16 %v1119
      %v1152 = vunpack.c.l.b16 %v1120
      %v1153 = vunpack.c.l.b16 %v1121
      %v1154 = vunpack.c.l.b16 %v1122
      %v1155 = vunpack.c.l.b16 %v1123
      %v1156 = vunpack.c.l.b16 %v1124
      %v1157 = vunpack.c.l.b16 %v1125
      %v1158 = vunpack.c.l.b16 %v1126
      %v1159 = vunpack.c.l.b16 %v1127
      %v1160 = vunpack.c.l.b16 %v1128
      %v1161 = vpack.c.b16 %v1146, %v1145
      %v1162 = vpack.c.b16 %v1148, %v1147
      %v1163 = vpack.c.b16 %v1150, %v1149
      %v1164 = vpack.c.b16 %v1152, %v1151
      %v1165 = vpack.c.b16 %v1154, %v1153
      %v1166 = vpack.c.b16 %v1156, %v1155
      %v1167 = vpack.c.b16 %v1158, %v1157
      %v1168 = vpack.c.b16 %v1160, %v1159
      %1177 = vmatprep.subr.bf16.mxu0 0
      %1178 = vmatpush1.bf16.msra.mxu0 %v1161
      %1179 = vmatprep.subr.bf16.mxu0 0
      %1180 = vmatpush1.bf16.msra.mxu0 %v1162
      %1181 = vmatprep.subr.bf16.mxu0 0
      %1182 = vmatpush1.bf16.msra.mxu0 %v1163
      %1183 = vmatprep.subr.bf16.mxu0 0
      %1184 = vmatpush1.bf16.msra.mxu0 %v1164
      %1185 = vmatprep.subr.bf16.mxu0 0
      %1186 = vmatpush1.bf16.msra.mxu0 %v1165
      %1187 = vmatprep.subr.bf16.mxu0 0
      %1188 = vmatpush1.bf16.msra.mxu0 %v1166
      %1189 = vmatprep.subr.bf16.mxu0 0
      %1190 = vmatpush1.bf16.msra.mxu0 %v1167
      %1191 = vmatprep.subr.bf16.mxu0 0
      %1192 = vmatpush1.bf16.msra.mxu0 %v1168
      %1193 = vmatprep.subr.bf16.mxu0 0
      %1194 = vmatpush1.bf16.msra.mxu0 0
      %1195 = vmatprep.subr.bf16.mxu0 0
      %1196 = vmatpush1.bf16.msra.mxu0 0
      %1197 = vmatprep.subr.bf16.mxu0 0
      %1198 = vmatpush1.bf16.msra.mxu0 0
      %1199 = vmatprep.subr.bf16.mxu0 0
      %1200 = vmatpush1.bf16.msra.mxu0 0
      %1201 = vmatprep.subr.bf16.mxu0 0
      %1202 = vmatpush1.bf16.msra.mxu0 0
      %1203 = vmatprep.subr.bf16.mxu0 0
      %1204 = vmatpush1.bf16.msra.mxu0 0
      %1205 = vmatprep.subr.bf16.mxu0 0
      %1206 = vmatpush1.bf16.msra.mxu0 0
      %1207 = vmatprep.subr.bf16.mxu0 0
      %1208 = vmatpush1.bf16.msra.mxu0 0
      %1209 = vmatprep.mubr.bf16.mxu0 0
      %1210 = vmatmul.mubr.bf16.gmra.mrb[0].mxu0 %v1104
      %v1211 = vpop.f32.mrb[0].mxu0
      %v1212 = vadd.f32 0.0, %v1211
      %v1213 = vpop.f32.mrb[0].mxu0
      %v1214 = vpop.f32.mrb[0].mxu0
      %v1215 = vadd.f32 0.0, %v1214
      %v1216 = vpop.f32.mrb[0].mxu0
      %1217 = vmatprep.mubr.bf16.mxu0 0
      %1218 = vmatmul.mubr.bf16.gmra.mrb[0].mxu0 %v1105
      %v1219 = vpop.f32.mrb[0].mxu0
      %v1220 = vadd.f32 0.0, %v1219
      %v1221 = vpop.f32.mrb[0].mxu0
      %v1222 = vpop.f32.mrb[0].mxu0
      %v1223 = vadd.f32 0.0, %v1222
      %v1224 = vpop.f32.mrb[0].mxu0
      %1225 = vmatprep.mubr.bf16.mxu0 0
      %1226 = vmatmul.mubr.bf16.gmra.mrb[0].mxu0 %v1106
      %v1227 = vpop.f32.mrb[0].mxu0
      %v1228 = vadd.f32 0.0, %v1227
      %v1229 = vpop.f32.mrb[0].mxu0
      %v1230 = vpop.f32.mrb[0].mxu0
      %v1231 = vadd.f32 0.0, %v1230
      %v1232 = vpop.f32.mrb[0].mxu0
      %1233 = vmatprep.mubr.bf16.mxu0 0
      %1234 = vmatmul.mubr.bf16.gmra.mrb[0].mxu0 %v1107
      %v1235 = vpop.f32.mrb[0].mxu0
      %v1236 = vadd.f32 0.0, %v1235
      %v1237 = vpop.f32.mrb[0].mxu0
      %v1238 = vpop.f32.mrb[0].mxu0
      %v1239 = vadd.f32 0.0, %v1238
      %v1240 = vpop.f32.mrb[0].mxu0
      %1241 = vmatprep.mubr.bf16.mxu0 0
      %1242 = vmatmul.mubr.bf16.gmra.mrb[0].mxu0 %v1108
      %v1243 = vpop.f32.mrb[0].mxu0
      %v1244 = vadd.f32 0.0, %v1243
      %v1245 = vpop.f32.mrb[0].mxu0
      %v1246 = vpop.f32.mrb[0].mxu0
      %v1247 = vadd.f32 0.0, %v1246
      %v1248 = vpop.f32.mrb[0].mxu0
      %1249 = vmatprep.mubr.bf16.mxu0 0
      %1250 = vmatmul.mubr.bf16.gmra.mrb[0].mxu0 %v1109
      %v1251 = vpop.f32.mrb[0].mxu0
      %v1252 = vadd.f32 0.0, %v1251
      %v1253 = vpop.f32.mrb[0].mxu0
      %v1254 = vpop.f32.mrb[0].mxu0
      %v1255 = vadd.f32 0.0, %v1254
      %v1256 = vpop.f32.mrb[0].mxu0
      %1257 = vmatprep.mubr.bf16.mxu0 0
      %1258 = vmatmul.mubr.bf16.gmra.mrb[0].mxu0 %v1110
      %v1259 = vpop.f32.mrb[0].mxu0
      %v1260 = vadd.f32 0.0, %v1259
      %v1261 = vpop.f32.mrb[0].mxu0
      %v1262 = vpop.f32.mrb[0].mxu0
      %v1263 = vadd.f32 0.0, %v1262
      %v1264 = vpop.f32.mrb[0].mxu0
      %1265 = vmatprep.mubr.bf16.mxu0 0
      %1266 = vmatmul.mubr.bf16.gmra.mrb[0].mxu0 %v1111
      %v1267 = vpop.f32.mrb[0].mxu0
      %v1268 = vadd.f32 0.0, %v1267
      %v1269 = vpop.f32.mrb[0].mxu0
      %v1270 = vpop.f32.mrb[0].mxu0
      %v1271 = vadd.f32 0.0, %v1270
      %v1272 = vpop.f32.mrb[0].mxu0
      %1273 = vdwg.mxu0
      %v1274 = vld [vmem:[#allocation5] sm:$0xff]
      %v1275 = vld [vmem:[#allocation5 + $0x8] sm:$0xff]
      %v1276 = vld [vmem:[#allocation5 + $0x10] sm:$0xff]
      %v1277 = vld [vmem:[#allocation5 + $0x18] sm:$0xff]
      %v1278 = vld [vmem:[#allocation5 + $0x20] sm:$0xff]
      %v1279 = vld [vmem:[#allocation5 + $0x28] sm:$0xff]
      %v1280 = vld [vmem:[#allocation5 + $0x30] sm:$0xff]
      %v1281 = vld [vmem:[#allocation5 + $0x38] sm:$0xff]
      %v1282 = vld [vmem:[#allocation5 + $0x40] sm:$0xff]
      %v1283 = vld [vmem:[#allocation5 + $0x48] sm:$0xff]
      %v1284 = vld [vmem:[#allocation5 + $0x50] sm:$0xff]
      %v1285 = vld [vmem:[#allocation5 + $0x58] sm:$0xff]
      %v1286 = vld [vmem:[#allocation5 + $0x60] sm:$0xff]
      %v1287 = vld [vmem:[#allocation5 + $0x68] sm:$0xff]
      %v1288 = vld [vmem:[#allocation5 + $0x70] sm:$0xff]
      %v1289 = vld [vmem:[#allocation5 + $0x78] sm:$0xff]
      %v1290 = vadd.f32 %v1274, %v1212
      %v1291 = vadd.f32 %v1275, %v1215
      %v1292 = vadd.f32 %v1276, %v1220
      %v1293 = vadd.f32 %v1277, %v1223
      %v1294 = vadd.f32 %v1278, %v1228
      %v1295 = vadd.f32 %v1279, %v1231
      %v1296 = vadd.f32 %v1280, %v1236
      %v1297 = vadd.f32 %v1281, %v1239
      %v1298 = vadd.f32 %v1282, %v1244
      %v1299 = vadd.f32 %v1283, %v1247
      %v1300 = vadd.f32 %v1284, %v1252
      %v1301 = vadd.f32 %v1285, %v1255
      %v1302 = vadd.f32 %v1286, %v1260
      %v1303 = vadd.f32 %v1287, %v1263
      %v1304 = vadd.f32 %v1288, %v1268
      %v1305 = vadd.f32 %v1289, %v1271
      %1306 = vst [vmem:[#allocation5] sm:$0xff] %v1290
      %1307 = vst [vmem:[#allocation5 + $0x8] sm:$0xff] %v1291
      %1308 = vst [vmem:[#allocation5 + $0x10] sm:$0xff] %v1292
      %1309 = vst [vmem:[#allocation5 + $0x18] sm:$0xff] %v1293
      %1310 = vst [vmem:[#allocation5 + $0x20] sm:$0xff] %v1294
      %1311 = vst [vmem:[#allocation5 + $0x28] sm:$0xff] %v1295
      %1312 = vst [vmem:[#allocation5 + $0x30] sm:$0xff] %v1296
      %1313 = vst [vmem:[#allocation5 + $0x38] sm:$0xff] %v1297
      %1314 = vst [vmem:[#allocation5 + $0x40] sm:$0xff] %v1298
      %1315 = vst [vmem:[#allocation5 + $0x48] sm:$0xff] %v1299
      %1316 = vst [vmem:[#allocation5 + $0x50] sm:$0xff] %v1300
      %1317 = vst [vmem:[#allocation5 + $0x58] sm:$0xff] %v1301
      %1318 = vst [vmem:[#allocation5 + $0x60] sm:$0xff] %v1302
      %1319 = vst [vmem:[#allocation5 + $0x68] sm:$0xff] %v1303
      %1320 = vst [vmem:[#allocation5 + $0x70] sm:$0xff] %v1304
      %1321 = vst [vmem:[#allocation5 + $0x78] sm:$0xff] %v1305
      %v1322 = vld [vmem:[#allocation4] sm:$0xff]
      %v1323 = vld [vmem:[#allocation4 + $0x8] sm:$0xff]
      %v1324 = vld [vmem:[#allocation4 + $0x10] sm:$0xff]
      %v1325 = vld [vmem:[#allocation4 + $0x18] sm:$0xff]
      %v1326 = vld [vmem:[#allocation4 + $0x20] sm:$0xff]
      %v1327 = vld [vmem:[#allocation4 + $0x28] sm:$0xff]
      %v1328 = vld [vmem:[#allocation4 + $0x30] sm:$0xff]
      %v1329 = vld [vmem:[#allocation4 + $0x38] sm:$0xff]
      %s1330 = scalar_lea.vmem %s3, 128
      %v1331 = vld [vmem:[%s1330] sm:$0xf]
      %v1332 = vld [vmem:[%s1330 + $0x4] sm:$0xf]
      %v1333 = vld [vmem:[%s1330 + $0x8] sm:$0xf]
      %v1334 = vld [vmem:[%s1330 + $0xc] sm:$0xf]
      %v1335 = vld [vmem:[%s1330 + $0x10] sm:$0xf]
      %v1336 = vld [vmem:[%s1330 + $0x14] sm:$0xf]
      %v1337 = vld [vmem:[%s1330 + $0x18] sm:$0xf]
      %v1338 = vld [vmem:[%s1330 + $0x1c] sm:$0xf]
      %v1339 = vld [vmem:[%s1330 + $0x20] sm:$0xf]
      %v1340 = vld [vmem:[%s1330 + $0x24] sm:$0xf]
      %v1341 = vld [vmem:[%s1330 + $0x28] sm:$0xf]
      %v1342 = vld [vmem:[%s1330 + $0x2c] sm:$0xf]
      %v1343 = vld [vmem:[%s1330 + $0x30] sm:$0xf]
      %v1344 = vld [vmem:[%s1330 + $0x34] sm:$0xf]
      %v1345 = vld [vmem:[%s1330 + $0x38] sm:$0xf]
      %v1346 = vld [vmem:[%s1330 + $0x3c] sm:$0xf]
      %v1363 = vunpack.c.l.b16 %v1331
      %v1364 = vunpack.c.l.b16 %v1332
      %v1365 = vunpack.c.l.b16 %v1333
      %v1366 = vunpack.c.l.b16 %v1334
      %v1367 = vunpack.c.l.b16 %v1335
      %v1368 = vunpack.c.l.b16 %v1336
      %v1369 = vunpack.c.l.b16 %v1337
      %v1370 = vunpack.c.l.b16 %v1338
      %v1371 = vunpack.c.l.b16 %v1339
      %v1372 = vunpack.c.l.b16 %v1340
      %v1373 = vunpack.c.l.b16 %v1341
      %v1374 = vunpack.c.l.b16 %v1342
      %v1375 = vunpack.c.l.b16 %v1343
      %v1376 = vunpack.c.l.b16 %v1344
      %v1377 = vunpack.c.l.b16 %v1345
      %v1378 = vunpack.c.l.b16 %v1346
      %v1379 = vpack.c.b16 %v1364, %v1363
      %v1380 = vpack.c.b16 %v1366, %v1365
      %v1381 = vpack.c.b16 %v1368, %v1367
      %v1382 = vpack.c.b16 %v1370, %v1369
      %v1383 = vpack.c.b16 %v1372, %v1371
      %v1384 = vpack.c.b16 %v1374, %v1373
      %v1385 = vpack.c.b16 %v1376, %v1375
      %v1386 = vpack.c.b16 %v1378, %v1377
      %1395 = vmatprep.subr.bf16.mxu0 0
      %1396 = vmatpush1.bf16.msra.mxu0 %v1379
      %1397 = vmatprep.subr.bf16.mxu0 0
      %1398 = vmatpush1.bf16.msra.mxu0 %v1380
      %1399 = vmatprep.subr.bf16.mxu0 0
      %1400 = vmatpush1.bf16.msra.mxu0 %v1381
      %1401 = vmatprep.subr.bf16.mxu0 0
      %1402 = vmatpush1.bf16.msra.mxu0 %v1382
      %1403 = vmatprep.subr.bf16.mxu0 0
      %1404 = vmatpush1.bf16.msra.mxu0 %v1383
      %1405 = vmatprep.subr.bf16.mxu0 0
      %1406 = vmatpush1.bf16.msra.mxu0 %v1384
      %1407 = vmatprep.subr.bf16.mxu0 0
      %1408 = vmatpush1.bf16.msra.mxu0 %v1385
      %1409 = vmatprep.subr.bf16.mxu0 0
      %1410 = vmatpush1.bf16.msra.mxu0 %v1386
      %1411 = vmatprep.subr.bf16.mxu0 0
      %1412 = vmatpush1.bf16.msra.mxu0 0
      %1413 = vmatprep.subr.bf16.mxu0 0
      %1414 = vmatpush1.bf16.msra.mxu0 0
      %1415 = vmatprep.subr.bf16.mxu0 0
      %1416 = vmatpush1.bf16.msra.mxu0 0
      %1417 = vmatprep.subr.bf16.mxu0 0
      %1418 = vmatpush1.bf16.msra.mxu0 0
      %1419 = vmatprep.subr.bf16.mxu0 0
      %1420 = vmatpush1.bf16.msra.mxu0 0
      %1421 = vmatprep.subr.bf16.mxu0 0
      %1422 = vmatpush1.bf16.msra.mxu0 0
      %1423 = vmatprep.subr.bf16.mxu0 0
      %1424 = vmatpush1.bf16.msra.mxu0 0
      %1425 = vmatprep.subr.bf16.mxu0 0
      %1426 = vmatpush1.bf16.msra.mxu0 0
      %1427 = vmatprep.mubr.bf16.mxu0 0
      %1428 = vmatmul.mubr.bf16.gmra.mrb[0].mxu0 %v1322
      %v1429 = vpop.f32.mrb[0].mxu0
      %v1430 = vadd.f32 0.0, %v1429
      %v1431 = vpop.f32.mrb[0].mxu0
      %v1432 = vpop.f32.mrb[0].mxu0
      %v1433 = vadd.f32 0.0, %v1432
      %v1434 = vpop.f32.mrb[0].mxu0
      %1435 = vmatprep.mubr.bf16.mxu0 0
      %1436 = vmatmul.mubr.bf16.gmra.mrb[0].mxu0 %v1323
      %v1437 = vpop.f32.mrb[0].mxu0
      %v1438 = vadd.f32 0.0, %v1437
      %v1439 = vpop.f32.mrb[0].mxu0
      %v1440 = vpop.f32.mrb[0].mxu0
      %v1441 = vadd.f32 0.0, %v1440
      %v1442 = vpop.f32.mrb[0].mxu0
      %1443 = vmatprep.mubr.bf16.mxu0 0
      %1444 = vmatmul.mubr.bf16.gmra.mrb[0].mxu0 %v1324
      %v1445 = vpop.f32.mrb[0].mxu0
      %v1446 = vadd.f32 0.0, %v1445
      %v1447 = vpop.f32.mrb[0].mxu0
      %v1448 = vpop.f32.mrb[0].mxu0
      %v1449 = vadd.f32 0.0, %v1448
      %v1450 = vpop.f32.mrb[0].mxu0
      %1451 = vmatprep.mubr.bf16.mxu0 0
      %1452 = vmatmul.mubr.bf16.gmra.mrb[0].mxu0 %v1325
      %v1453 = vpop.f32.mrb[0].mxu0
      %v1454 = vadd.f32 0.0, %v1453
      %v1455 = vpop.f32.mrb[0].mxu0
      %v1456 = vpop.f32.mrb[0].mxu0
      %v1457 = vadd.f32 0.0, %v1456
      %v1458 = vpop.f32.mrb[0].mxu0
      %1459 = vmatprep.mubr.bf16.mxu0 0
      %1460 = vmatmul.mubr.bf16.gmra.mrb[0].mxu0 %v1326
      %v1461 = vpop.f32.mrb[0].mxu0
      %v1462 = vadd.f32 0.0, %v1461
      %v1463 = vpop.f32.mrb[0].mxu0
      %v1464 = vpop.f32.mrb[0].mxu0
      %v1465 = vadd.f32 0.0, %v1464
      %v1466 = vpop.f32.mrb[0].mxu0
      %1467 = vmatprep.mubr.bf16.mxu0 0
      %1468 = vmatmul.mubr.bf16.gmra.mrb[0].mxu0 %v1327
      %v1469 = vpop.f32.mrb[0].mxu0
      %v1470 = vadd.f32 0.0, %v1469
      %v1471 = vpop.f32.mrb[0].mxu0
      %v1472 = vpop.f32.mrb[0].mxu0
      %v1473 = vadd.f32 0.0, %v1472
      %v1474 = vpop.f32.mrb[0].mxu0
      %1475 = vmatprep.mubr.bf16.mxu0 0
      %1476 = vmatmul.mubr.bf16.gmra.mrb[0].mxu0 %v1328
      %v1477 = vpop.f32.mrb[0].mxu0
      %v1478 = vadd.f32 0.0, %v1477
      %v1479 = vpop.f32.mrb[0].mxu0
      %v1480 = vpop.f32.mrb[0].mxu0
      %v1481 = vadd.f32 0.0, %v1480
      %v1482 = vpop.f32.mrb[0].mxu0
      %1483 = vmatprep.mubr.bf16.mxu0 0
      %1484 = vmatmul.mubr.bf16.gmra.mrb[0].mxu0 %v1329
      %v1485 = vpop.f32.mrb[0].mxu0
      %v1486 = vadd.f32 0.0, %v1485
      %v1487 = vpop.f32.mrb[0].mxu0
      %v1488 = vpop.f32.mrb[0].mxu0
      %v1489 = vadd.f32 0.0, %v1488
      %v1490 = vpop.f32.mrb[0].mxu0
      %1491 = vdwg.mxu0
      %v1492 = vld [vmem:[#allocation5] sm:$0xff]
      %v1493 = vld [vmem:[#allocation5 + $0x8] sm:$0xff]
      %v1494 = vld [vmem:[#allocation5 + $0x10] sm:$0xff]
      %v1495 = vld [vmem:[#allocation5 + $0x18] sm:$0xff]
      %v1496 = vld [vmem:[#allocation5 + $0x20] sm:$0xff]
      %v1497 = vld [vmem:[#allocation5 + $0x28] sm:$0xff]
      %v1498 = vld [vmem:[#allocation5 + $0x30] sm:$0xff]
      %v1499 = vld [vmem:[#allocation5 + $0x38] sm:$0xff]
      %v1500 = vld [vmem:[#allocation5 + $0x40] sm:$0xff]
      %v1501 = vld [vmem:[#allocation5 + $0x48] sm:$0xff]
      %v1502 = vld [vmem:[#allocation5 + $0x50] sm:$0xff]
      %v1503 = vld [vmem:[#allocation5 + $0x58] sm:$0xff]
      %v1504 = vld [vmem:[#allocation5 + $0x60] sm:$0xff]
      %v1505 = vld [vmem:[#allocation5 + $0x68] sm:$0xff]
      %v1506 = vld [vmem:[#allocation5 + $0x70] sm:$0xff]
      %v1507 = vld [vmem:[#allocation5 + $0x78] sm:$0xff]
      %v1508 = vadd.f32 %v1492, %v1430
      %v1509 = vadd.f32 %v1493, %v1433
      %v1510 = vadd.f32 %v1494, %v1438
      %v1511 = vadd.f32 %v1495, %v1441
      %v1512 = vadd.f32 %v1496, %v1446
      %v1513 = vadd.f32 %v1497, %v1449
      %v1514 = vadd.f32 %v1498, %v1454
      %v1515 = vadd.f32 %v1499, %v1457
      %v1516 = vadd.f32 %v1500, %v1462
      %v1517 = vadd.f32 %v1501, %v1465
      %v1518 = vadd.f32 %v1502, %v1470
      %v1519 = vadd.f32 %v1503, %v1473
      %v1520 = vadd.f32 %v1504, %v1478
      %v1521 = vadd.f32 %v1505, %v1481
      %v1522 = vadd.f32 %v1506, %v1486
      %v1523 = vadd.f32 %v1507, %v1489
      %1524 = vst [vmem:[#allocation5] sm:$0xff] %v1508
      %1525 = vst [vmem:[#allocation5 + $0x8] sm:$0xff] %v1509
      %1526 = vst [vmem:[#allocation5 + $0x10] sm:$0xff] %v1510
      %1527 = vst [vmem:[#allocation5 + $0x18] sm:$0xff] %v1511
      %1528 = vst [vmem:[#allocation5 + $0x20] sm:$0xff] %v1512
      %1529 = vst [vmem:[#allocation5 + $0x28] sm:$0xff] %v1513
      %1530 = vst [vmem:[#allocation5 + $0x30] sm:$0xff] %v1514
      %1531 = vst [vmem:[#allocation5 + $0x38] sm:$0xff] %v1515
      %1532 = vst [vmem:[#allocation5 + $0x40] sm:$0xff] %v1516
      %1533 = vst [vmem:[#allocation5 + $0x48] sm:$0xff] %v1517
      %1534 = vst [vmem:[#allocation5 + $0x50] sm:$0xff] %v1518
      %1535 = vst [vmem:[#allocation5 + $0x58] sm:$0xff] %v1519
      %1536 = vst [vmem:[#allocation5 + $0x60] sm:$0xff] %v1520
      %1537 = vst [vmem:[#allocation5 + $0x68] sm:$0xff] %v1521
      %1538 = vst [vmem:[#allocation5 + $0x70] sm:$0xff] %v1522
      %1539 = vst [vmem:[#allocation5 + $0x78] sm:$0xff] %v1523
      %v1540 = vld [vmem:[#allocation2 + $0x10] sm:$0xff]
      %v1541 = vld [vmem:[#allocation2 + $0x18] sm:$0xff]
      %v1542 = vld [vmem:[#allocation2 + $0x20] sm:$0xff]
      %v1543 = vld [vmem:[#allocation2 + $0x28] sm:$0xff]
      %v1544 = vld [vmem:[#allocation2 + $0x30] sm:$0xff]
      %v1545 = vld [vmem:[#allocation2 + $0x38] sm:$0xff]
      %v1546 = vld [vmem:[#allocation2 + $0x40] sm:$0xff]
      %v1547 = vld [vmem:[#allocation2 + $0x48] sm:$0xff]
      %s1548 = scalar_lea.vmem %s3, 192
      %v1549 = vld [vmem:[%s1548] sm:$0xf]
      %v1550 = vld [vmem:[%s1548 + $0x4] sm:$0xf]
      %v1551 = vld [vmem:[%s1548 + $0x8] sm:$0xf]
      %v1552 = vld [vmem:[%s1548 + $0xc] sm:$0xf]
      %v1553 = vld [vmem:[%s1548 + $0x10] sm:$0xf]
      %v1554 = vld [vmem:[%s1548 + $0x14] sm:$0xf]
      %v1555 = vld [vmem:[%s1548 + $0x18] sm:$0xf]
      %v1556 = vld [vmem:[%s1548 + $0x1c] sm:$0xf]
      %v1557 = vld [vmem:[%s1548 + $0x20] sm:$0xf]
      %v1558 = vld [vmem:[%s1548 + $0x24] sm:$0xf]
      %v1559 = vld [vmem:[%s1548 + $0x28] sm:$0xf]
      %v1560 = vld [vmem:[%s1548 + $0x2c] sm:$0xf]
      %v1561 = vld [vmem:[%s1548 + $0x30] sm:$0xf]
      %v1562 = vld [vmem:[%s1548 + $0x34] sm:$0xf]
      %v1563 = vld [vmem:[%s1548 + $0x38] sm:$0xf]
      %v1564 = vld [vmem:[%s1548 + $0x3c] sm:$0xf]
      %v1581 = vunpack.c.l.b16 %v1549
      %v1582 = vunpack.c.l.b16 %v1550
      %v1583 = vunpack.c.l.b16 %v1551
      %v1584 = vunpack.c.l.b16 %v1552
      %v1585 = vunpack.c.l.b16 %v1553
      %v1586 = vunpack.c.l.b16 %v1554
      %v1587 = vunpack.c.l.b16 %v1555
      %v1588 = vunpack.c.l.b16 %v1556
      %v1589 = vunpack.c.l.b16 %v1557
      %v1590 = vunpack.c.l.b16 %v1558
      %v1591 = vunpack.c.l.b16 %v1559
      %v1592 = vunpack.c.l.b16 %v1560
      %v1593 = vunpack.c.l.b16 %v1561
      %v1594 = vunpack.c.l.b16 %v1562
      %v1595 = vunpack.c.l.b16 %v1563
      %v1596 = vunpack.c.l.b16 %v1564
      %v1597 = vpack.c.b16 %v1582, %v1581
      %v1598 = vpack.c.b16 %v1584, %v1583
      %v1599 = vpack.c.b16 %v1586, %v1585
      %v1600 = vpack.c.b16 %v1588, %v1587
      %v1601 = vpack.c.b16 %v1590, %v1589
      %v1602 = vpack.c.b16 %v1592, %v1591
      %v1603 = vpack.c.b16 %v1594, %v1593
      %v1604 = vpack.c.b16 %v1596, %v1595
      %1613 = vmatprep.subr.bf16.mxu0 0
      %1614 = vmatpush1.bf16.msra.mxu0 %v1597
      %1615 = vmatprep.subr.bf16.mxu0 0
      %1616 = vmatpush1.bf16.msra.mxu0 %v1598
      %1617 = vmatprep.subr.bf16.mxu0 0
      %1618 = vmatpush1.bf16.msra.mxu0 %v1599
      %1619 = vmatprep.subr.bf16.mxu0 0
      %1620 = vmatpush1.bf16.msra.mxu0 %v1600
      %1621 = vmatprep.subr.bf16.mxu0 0
      %1622 = vmatpush1.bf16.msra.mxu0 %v1601
      %1623 = vmatprep.subr.bf16.mxu0 0
      %1624 = vmatpush1.bf16.msra.mxu0 %v1602
      %1625 = vmatprep.subr.bf16.mxu0 0
      %1626 = vmatpush1.bf16.msra.mxu0 %v1603
      %1627 = vmatprep.subr.bf16.mxu0 0
      %1628 = vmatpush1.bf16.msra.mxu0 %v1604
      %1629 = vmatprep.subr.bf16.mxu0 0
      %1630 = vmatpush1.bf16.msra.mxu0 0
      %1631 = vmatprep.subr.bf16.mxu0 0
      %1632 = vmatpush1.bf16.msra.mxu0 0
      %1633 = vmatprep.subr.bf16.mxu0 0
      %1634 = vmatpush1.bf16.msra.mxu0 0
      %1635 = vmatprep.subr.bf16.mxu0 0
      %1636 = vmatpush1.bf16.msra.mxu0 0
      %1637 = vmatprep.subr.bf16.mxu0 0
      %1638 = vmatpush1.bf16.msra.mxu0 0
      %1639 = vmatprep.subr.bf16.mxu0 0
      %1640 = vmatpush1.bf16.msra.mxu0 0
      %1641 = vmatprep.subr.bf16.mxu0 0
      %1642 = vmatpush1.bf16.msra.mxu0 0
      %1643 = vmatprep.subr.bf16.mxu0 0
      %1644 = vmatpush1.bf16.msra.mxu0 0
      %1645 = vmatprep.mubr.bf16.mxu0 0
      %1646 = vmatmul.mubr.bf16.gmra.mrb[0].mxu0 %v1540
      %v1647 = vpop.f32.mrb[0].mxu0
      %v1648 = vadd.f32 0.0, %v1647
      %v1649 = vpop.f32.mrb[0].mxu0
      %v1650 = vpop.f32.mrb[0].mxu0
      %v1651 = vadd.f32 0.0, %v1650
      %v1652 = vpop.f32.mrb[0].mxu0
      %1653 = vmatprep.mubr.bf16.mxu0 0
      %1654 = vmatmul.mubr.bf16.gmra.mrb[0].mxu0 %v1541
      %v1655 = vpop.f32.mrb[0].mxu0
      %v1656 = vadd.f32 0.0, %v1655
      %v1657 = vpop.f32.mrb[0].mxu0
      %v1658 = vpop.f32.mrb[0].mxu0
      %v1659 = vadd.f32 0.0, %v1658
      %v1660 = vpop.f32.mrb[0].mxu0
      %1661 = vmatprep.mubr.bf16.mxu0 0
      %1662 = vmatmul.mubr.bf16.gmra.mrb[0].mxu0 %v1542
      %v1663 = vpop.f32.mrb[0].mxu0
      %v1664 = vadd.f32 0.0, %v1663
      %v1665 = vpop.f32.mrb[0].mxu0
      %v1666 = vpop.f32.mrb[0].mxu0
      %v1667 = vadd.f32 0.0, %v1666
      %v1668 = vpop.f32.mrb[0].mxu0
      %1669 = vmatprep.mubr.bf16.mxu0 0
      %1670 = vmatmul.mubr.bf16.gmra.mrb[0].mxu0 %v1543
      %v1671 = vpop.f32.mrb[0].mxu0
      %v1672 = vadd.f32 0.0, %v1671
      %v1673 = vpop.f32.mrb[0].mxu0
      %v1674 = vpop.f32.mrb[0].mxu0
      %v1675 = vadd.f32 0.0, %v1674
      %v1676 = vpop.f32.mrb[0].mxu0
      %1677 = vmatprep.mubr.bf16.mxu0 0
      %1678 = vmatmul.mubr.bf16.gmra.mrb[0].mxu0 %v1544
      %v1679 = vpop.f32.mrb[0].mxu0
      %v1680 = vadd.f32 0.0, %v1679
      %v1681 = vpop.f32.mrb[0].mxu0
      %v1682 = vpop.f32.mrb[0].mxu0
      %v1683 = vadd.f32 0.0, %v1682
      %v1684 = vpop.f32.mrb[0].mxu0
      %1685 = vmatprep.mubr.bf16.mxu0 0
      %1686 = vmatmul.mubr.bf16.gmra.mrb[0].mxu0 %v1545
      %v1687 = vpop.f32.mrb[0].mxu0
      %v1688 = vadd.f32 0.0, %v1687
      %v1689 = vpop.f32.mrb[0].mxu0
      %v1690 = vpop.f32.mrb[0].mxu0
      %v1691 = vadd.f32 0.0, %v1690
      %v1692 = vpop.f32.mrb[0].mxu0
      %1693 = vmatprep.mubr.bf16.mxu0 0
      %1694 = vmatmul.mubr.bf16.gmra.mrb[0].mxu0 %v1546
      %v1695 = vpop.f32.mrb[0].mxu0
      %v1696 = vadd.f32 0.0, %v1695
      %v1697 = vpop.f32.mrb[0].mxu0
      %v1698 = vpop.f32.mrb[0].mxu0
      %v1699 = vadd.f32 0.0, %v1698
      %v1700 = vpop.f32.mrb[0].mxu0
      %1701 = vmatprep.mubr.bf16.mxu0 0
      %1702 = vmatmul.mubr.bf16.gmra.mrb[0].mxu0 %v1547
      %v1703 = vpop.f32.mrb[0].mxu0
      %v1704 = vadd.f32 0.0, %v1703
      %v1705 = vpop.f32.mrb[0].mxu0
      %v1706 = vpop.f32.mrb[0].mxu0
      %v1707 = vadd.f32 0.0, %v1706
      %v1708 = vpop.f32.mrb[0].mxu0
      %1709 = vdwg.mxu0
      %v1710 = vld [vmem:[#allocation5] sm:$0xff]
      %v1711 = vld [vmem:[#allocation5 + $0x8] sm:$0xff]
      %v1712 = vld [vmem:[#allocation5 + $0x10] sm:$0xff]
      %v1713 = vld [vmem:[#allocation5 + $0x18] sm:$0xff]
      %v1714 = vld [vmem:[#allocation5 + $0x20] sm:$0xff]
      %v1715 = vld [vmem:[#allocation5 + $0x28] sm:$0xff]
      %v1716 = vld [vmem:[#allocation5 + $0x30] sm:$0xff]
      %v1717 = vld [vmem:[#allocation5 + $0x38] sm:$0xff]
      %v1718 = vld [vmem:[#allocation5 + $0x40] sm:$0xff]
      %v1719 = vld [vmem:[#allocation5 + $0x48] sm:$0xff]
      %v1720 = vld [vmem:[#allocation5 + $0x50] sm:$0xff]
      %v1721 = vld [vmem:[#allocation5 + $0x58] sm:$0xff]
      %v1722 = vld [vmem:[#allocation5 + $0x60] sm:$0xff]
      %v1723 = vld [vmem:[#allocation5 + $0x68] sm:$0xff]
      %v1724 = vld [vmem:[#allocation5 + $0x70] sm:$0xff]
      %v1725 = vld [vmem:[#allocation5 + $0x78] sm:$0xff]
      %v1726 = vadd.f32 %v1710, %v1648
      %v1727 = vadd.f32 %v1711, %v1651
      %v1728 = vadd.f32 %v1712, %v1656
      %v1729 = vadd.f32 %v1713, %v1659
      %v1730 = vadd.f32 %v1714, %v1664
      %v1731 = vadd.f32 %v1715, %v1667
      %v1732 = vadd.f32 %v1716, %v1672
      %v1733 = vadd.f32 %v1717, %v1675
      %v1734 = vadd.f32 %v1718, %v1680
      %v1735 = vadd.f32 %v1719, %v1683
      %v1736 = vadd.f32 %v1720, %v1688
      %v1737 = vadd.f32 %v1721, %v1691
      %v1738 = vadd.f32 %v1722, %v1696
      %v1739 = vadd.f32 %v1723, %v1699
      %v1740 = vadd.f32 %v1724, %v1704
      %v1741 = vadd.f32 %v1725, %v1707
      %1742 = vst [vmem:[#allocation5] sm:$0xff] %v1726
      %1743 = vst [vmem:[#allocation5 + $0x8] sm:$0xff] %v1727
      %1744 = vst [vmem:[#allocation5 + $0x10] sm:$0xff] %v1728
      %1745 = vst [vmem:[#allocation5 + $0x18] sm:$0xff] %v1729
      %1746 = vst [vmem:[#allocation5 + $0x20] sm:$0xff] %v1730
      %1747 = vst [vmem:[#allocation5 + $0x28] sm:$0xff] %v1731
      %1748 = vst [vmem:[#allocation5 + $0x30] sm:$0xff] %v1732
      %1749 = vst [vmem:[#allocation5 + $0x38] sm:$0xff] %v1733
      %1750 = vst [vmem:[#allocation5 + $0x40] sm:$0xff] %v1734
      %1751 = vst [vmem:[#allocation5 + $0x48] sm:$0xff] %v1735
      %1752 = vst [vmem:[#allocation5 + $0x50] sm:$0xff] %v1736
      %1753 = vst [vmem:[#allocation5 + $0x58] sm:$0xff] %v1737
      %1754 = vst [vmem:[#allocation5 + $0x60] sm:$0xff] %v1738
      %1755 = vst [vmem:[#allocation5 + $0x68] sm:$0xff] %v1739
      %1756 = vst [vmem:[#allocation5 + $0x70] sm:$0xff] %v1740
      %1757 = vst [vmem:[#allocation5 + $0x78] sm:$0xff] %v1741
      %v1758 = vld [vmem:[#allocation3 + $0x10] sm:$0xff]
      %v1759 = vld [vmem:[#allocation3 + $0x18] sm:$0xff]
      %v1760 = vld [vmem:[#allocation3 + $0x20] sm:$0xff]
      %v1761 = vld [vmem:[#allocation3 + $0x28] sm:$0xff]
      %v1762 = vld [vmem:[#allocation3 + $0x30] sm:$0xff]
      %v1763 = vld [vmem:[#allocation3 + $0x38] sm:$0xff]
      %v1764 = vld [vmem:[#allocation3 + $0x40] sm:$0xff]
      %v1765 = vld [vmem:[#allocation3 + $0x48] sm:$0xff]
      %s1766 = scalar_lea.vmem %s3, 256
      %v1767 = vld [vmem:[%s1766] sm:$0xf]
      %v1768 = vld [vmem:[%s1766 + $0x4] sm:$0xf]
      %v1769 = vld [vmem:[%s1766 + $0x8] sm:$0xf]
      %v1770 = vld [vmem:[%s1766 + $0xc] sm:$0xf]
      %v1771 = vld [vmem:[%s1766 + $0x10] sm:$0xf]
      %v1772 = vld [vmem:[%s1766 + $0x14] sm:$0xf]
      %v1773 = vld [vmem:[%s1766 + $0x18] sm:$0xf]
      %v1774 = vld [vmem:[%s1766 + $0x1c] sm:$0xf]
      %v1775 = vld [vmem:[%s1766 + $0x20] sm:$0xf]
      %v1776 = vld [vmem:[%s1766 + $0x24] sm:$0xf]
      %v1777 = vld [vmem:[%s1766 + $0x28] sm:$0xf]
      %v1778 = vld [vmem:[%s1766 + $0x2c] sm:$0xf]
      %v1779 = vld [vmem:[%s1766 + $0x30] sm:$0xf]
      %v1780 = vld [vmem:[%s1766 + $0x34] sm:$0xf]
      %v1781 = vld [vmem:[%s1766 + $0x38] sm:$0xf]
      %v1782 = vld [vmem:[%s1766 + $0x3c] sm:$0xf]
      %v1799 = vunpack.c.l.b16 %v1767
      %v1800 = vunpack.c.l.b16 %v1768
      %v1801 = vunpack.c.l.b16 %v1769
      %v1802 = vunpack.c.l.b16 %v1770
      %v1803 = vunpack.c.l.b16 %v1771
      %v1804 = vunpack.c.l.b16 %v1772
      %v1805 = vunpack.c.l.b16 %v1773
      %v1806 = vunpack.c.l.b16 %v1774
      %v1807 = vunpack.c.l.b16 %v1775
      %v1808 = vunpack.c.l.b16 %v1776
      %v1809 = vunpack.c.l.b16 %v1777
      %v1810 = vunpack.c.l.b16 %v1778
      %v1811 = vunpack.c.l.b16 %v1779
      %v1812 = vunpack.c.l.b16 %v1780
      %v1813 = vunpack.c.l.b16 %v1781
      %v1814 = vunpack.c.l.b16 %v1782
      %v1815 = vpack.c.b16 %v1800, %v1799
      %v1816 = vpack.c.b16 %v1802, %v1801
      %v1817 = vpack.c.b16 %v1804, %v1803
      %v1818 = vpack.c.b16 %v1806, %v1805
      %v1819 = vpack.c.b16 %v1808, %v1807
      %v1820 = vpack.c.b16 %v1810, %v1809
      %v1821 = vpack.c.b16 %v1812, %v1811
      %v1822 = vpack.c.b16 %v1814, %v1813
      %1831 = vmatprep.subr.bf16.mxu0 0
      %1832 = vmatpush1.bf16.msra.mxu0 %v1815
      %1833 = vmatprep.subr.bf16.mxu0 0
      %1834 = vmatpush1.bf16.msra.mxu0 %v1816
      %1835 = vmatprep.subr.bf16.mxu0 0
      %1836 = vmatpush1.bf16.msra.mxu0 %v1817
      %1837 = vmatprep.subr.bf16.mxu0 0
      %1838 = vmatpush1.bf16.msra.mxu0 %v1818
      %1839 = vmatprep.subr.bf16.mxu0 0
      %1840 = vmatpush1.bf16.msra.mxu0 %v1819
      %1841 = vmatprep.subr.bf16.mxu0 0
      %1842 = vmatpush1.bf16.msra.mxu0 %v1820
      %1843 = vmatprep.subr.bf16.mxu0 0
      %1844 = vmatpush1.bf16.msra.mxu0 %v1821
      %1845 = vmatprep.subr.bf16.mxu0 0
      %1846 = vmatpush1.bf16.msra.mxu0 %v1822
      %1847 = vmatprep.subr.bf16.mxu0 0
      %1848 = vmatpush1.bf16.msra.mxu0 0
      %1849 = vmatprep.subr.bf16.mxu0 0
      %1850 = vmatpush1.bf16.msra.mxu0 0
      %1851 = vmatprep.subr.bf16.mxu0 0
      %1852 = vmatpush1.bf16.msra.mxu0 0
      %1853 = vmatprep.subr.bf16.mxu0 0
      %1854 = vmatpush1.bf16.msra.mxu0 0
      %1855 = vmatprep.subr.bf16.mxu0 0
      %1856 = vmatpush1.bf16.msra.mxu0 0
      %1857 = vmatprep.subr.bf16.mxu0 0
      %1858 = vmatpush1.bf16.msra.mxu0 0
      %1859 = vmatprep.subr.bf16.mxu0 0
      %1860 = vmatpush1.bf16.msra.mxu0 0
      %1861 = vmatprep.subr.bf16.mxu0 0
      %1862 = vmatpush1.bf16.msra.mxu0 0
      %1863 = vmatprep.mubr.bf16.mxu0 0
      %1864 = vmatmul.mubr.bf16.gmra.mrb[0].mxu0 %v1758
      %v1865 = vpop.f32.mrb[0].mxu0
      %v1866 = vadd.f32 0.0, %v1865
      %v1867 = vpop.f32.mrb[0].mxu0
      %v1868 = vpop.f32.mrb[0].mxu0
      %v1869 = vadd.f32 0.0, %v1868
      %v1870 = vpop.f32.mrb[0].mxu0
      %1871 = vmatprep.mubr.bf16.mxu0 0
      %1872 = vmatmul.mubr.bf16.gmra.mrb[0].mxu0 %v1759
      %v1873 = vpop.f32.mrb[0].mxu0
      %v1874 = vadd.f32 0.0, %v1873
      %v1875 = vpop.f32.mrb[0].mxu0
      %v1876 = vpop.f32.mrb[0].mxu0
      %v1877 = vadd.f32 0.0, %v1876
      %v1878 = vpop.f32.mrb[0].mxu0
      %1879 = vmatprep.mubr.bf16.mxu0 0
      %1880 = vmatmul.mubr.bf16.gmra.mrb[0].mxu0 %v1760
      %v1881 = vpop.f32.mrb[0].mxu0
      %v1882 = vadd.f32 0.0, %v1881
      %v1883 = vpop.f32.mrb[0].mxu0
      %v1884 = vpop.f32.mrb[0].mxu0
      %v1885 = vadd.f32 0.0, %v1884
      %v1886 = vpop.f32.mrb[0].mxu0
      %1887 = vmatprep.mubr.bf16.mxu0 0
      %1888 = vmatmul.mubr.bf16.gmra.mrb[0].mxu0 %v1761
      %v1889 = vpop.f32.mrb[0].mxu0
      %v1890 = vadd.f32 0.0, %v1889
      %v1891 = vpop.f32.mrb[0].mxu0
      %v1892 = vpop.f32.mrb[0].mxu0
      %v1893 = vadd.f32 0.0, %v1892
      %v1894 = vpop.f32.mrb[0].mxu0
      %1895 = vmatprep.mubr.bf16.mxu0 0
      %1896 = vmatmul.mubr.bf16.gmra.mrb[0].mxu0 %v1762
      %v1897 = vpop.f32.mrb[0].mxu0
      %v1898 = vadd.f32 0.0, %v1897
      %v1899 = vpop.f32.mrb[0].mxu0
      %v1900 = vpop.f32.mrb[0].mxu0
      %v1901 = vadd.f32 0.0, %v1900
      %v1902 = vpop.f32.mrb[0].mxu0
      %1903 = vmatprep.mubr.bf16.mxu0 0
      %1904 = vmatmul.mubr.bf16.gmra.mrb[0].mxu0 %v1763
      %v1905 = vpop.f32.mrb[0].mxu0
      %v1906 = vadd.f32 0.0, %v1905
      %v1907 = vpop.f32.mrb[0].mxu0
      %v1908 = vpop.f32.mrb[0].mxu0
      %v1909 = vadd.f32 0.0, %v1908
      %v1910 = vpop.f32.mrb[0].mxu0
      %1911 = vmatprep.mubr.bf16.mxu0 0
      %1912 = vmatmul.mubr.bf16.gmra.mrb[0].mxu0 %v1764
      %v1913 = vpop.f32.mrb[0].mxu0
      %v1914 = vadd.f32 0.0, %v1913
      %v1915 = vpop.f32.mrb[0].mxu0
      %v1916 = vpop.f32.mrb[0].mxu0
      %v1917 = vadd.f32 0.0, %v1916
      %v1918 = vpop.f32.mrb[0].mxu0
      %1919 = vmatprep.mubr.bf16.mxu0 0
      %1920 = vmatmul.mubr.bf16.gmra.mrb[0].mxu0 %v1765
      %v1921 = vpop.f32.mrb[0].mxu0
      %v1922 = vadd.f32 0.0, %v1921
      %v1923 = vpop.f32.mrb[0].mxu0
      %v1924 = vpop.f32.mrb[0].mxu0
      %v1925 = vadd.f32 0.0, %v1924
      %v1926 = vpop.f32.mrb[0].mxu0
      %1927 = vdwg.mxu0
      %v1928 = vld [vmem:[#allocation5] sm:$0xff]
      %v1929 = vld [vmem:[#allocation5 + $0x8] sm:$0xff]
      %v1930 = vld [vmem:[#allocation5 + $0x10] sm:$0xff]
      %v1931 = vld [vmem:[#allocation5 + $0x18] sm:$0xff]
      %v1932 = vld [vmem:[#allocation5 + $0x20] sm:$0xff]
      %v1933 = vld [vmem:[#allocation5 + $0x28] sm:$0xff]
      %v1934 = vld [vmem:[#allocation5 + $0x30] sm:$0xff]
      %v1935 = vld [vmem:[#allocation5 + $0x38] sm:$0xff]
      %v1936 = vld [vmem:[#allocation5 + $0x40] sm:$0xff]
      %v1937 = vld [vmem:[#allocation5 + $0x48] sm:$0xff]
      %v1938 = vld [vmem:[#allocation5 + $0x50] sm:$0xff]
      %v1939 = vld [vmem:[#allocation5 + $0x58] sm:$0xff]
      %v1940 = vld [vmem:[#allocation5 + $0x60] sm:$0xff]
      %v1941 = vld [vmem:[#allocation5 + $0x68] sm:$0xff]
      %v1942 = vld [vmem:[#allocation5 + $0x70] sm:$0xff]
      %v1943 = vld [vmem:[#allocation5 + $0x78] sm:$0xff]
      %v1944 = vadd.f32 %v1928, %v1866
      %v1945 = vadd.f32 %v1929, %v1869
      %v1946 = vadd.f32 %v1930, %v1874
      %v1947 = vadd.f32 %v1931, %v1877
      %v1948 = vadd.f32 %v1932, %v1882
      %v1949 = vadd.f32 %v1933, %v1885
      %v1950 = vadd.f32 %v1934, %v1890
      %v1951 = vadd.f32 %v1935, %v1893
      %v1952 = vadd.f32 %v1936, %v1898
      %v1953 = vadd.f32 %v1937, %v1901
      %v1954 = vadd.f32 %v1938, %v1906
      %v1955 = vadd.f32 %v1939, %v1909
      %v1956 = vadd.f32 %v1940, %v1914
      %v1957 = vadd.f32 %v1941, %v1917
      %v1958 = vadd.f32 %v1942, %v1922
      %v1959 = vadd.f32 %v1943, %v1925
      %1960 = vst [vmem:[#allocation5] sm:$0xff] %v1944
      %1961 = vst [vmem:[#allocation5 + $0x8] sm:$0xff] %v1945
      %1962 = vst [vmem:[#allocation5 + $0x10] sm:$0xff] %v1946
      %1963 = vst [vmem:[#allocation5 + $0x18] sm:$0xff] %v1947
      %1964 = vst [vmem:[#allocation5 + $0x20] sm:$0xff] %v1948
      %1965 = vst [vmem:[#allocation5 + $0x28] sm:$0xff] %v1949
      %1966 = vst [vmem:[#allocation5 + $0x30] sm:$0xff] %v1950
      %1967 = vst [vmem:[#allocation5 + $0x38] sm:$0xff] %v1951
      %1968 = vst [vmem:[#allocation5 + $0x40] sm:$0xff] %v1952
      %1969 = vst [vmem:[#allocation5 + $0x48] sm:$0xff] %v1953
      %1970 = vst [vmem:[#allocation5 + $0x50] sm:$0xff] %v1954
      %1971 = vst [vmem:[#allocation5 + $0x58] sm:$0xff] %v1955
      %1972 = vst [vmem:[#allocation5 + $0x60] sm:$0xff] %v1956
      %1973 = vst [vmem:[#allocation5 + $0x68] sm:$0xff] %v1957
      %1974 = vst [vmem:[#allocation5 + $0x70] sm:$0xff] %v1958
      %1975 = vst [vmem:[#allocation5 + $0x78] sm:$0xff] %v1959
      %v1976 = vld [vmem:[#allocation4 + $0x10] sm:$0xff]
      %v1977 = vld [vmem:[#allocation4 + $0x18] sm:$0xff]
      %v1978 = vld [vmem:[#allocation4 + $0x20] sm:$0xff]
      %v1979 = vld [vmem:[#allocation4 + $0x28] sm:$0xff]
      %v1980 = vld [vmem:[#allocation4 + $0x30] sm:$0xff]
      %v1981 = vld [vmem:[#allocation4 + $0x38] sm:$0xff]
      %v1982 = vld [vmem:[#allocation4 + $0x40] sm:$0xff]
      %v1983 = vld [vmem:[#allocation4 + $0x48] sm:$0xff]
      %s1984 = scalar_lea.vmem %s3, 320
      %v1985 = vld [vmem:[%s1984] sm:$0xf]
      %v1986 = vld [vmem:[%s1984 + $0x4] sm:$0xf]
      %v1987 = vld [vmem:[%s1984 + $0x8] sm:$0xf]
      %v1988 = vld [vmem:[%s1984 + $0xc] sm:$0xf]
      %v1989 = vld [vmem:[%s1984 + $0x10] sm:$0xf]
      %v1990 = vld [vmem:[%s1984 + $0x14] sm:$0xf]
      %v1991 = vld [vmem:[%s1984 + $0x18] sm:$0xf]
      %v1992 = vld [vmem:[%s1984 + $0x1c] sm:$0xf]
      %v1993 = vld [vmem:[%s1984 + $0x20] sm:$0xf]
      %v1994 = vld [vmem:[%s1984 + $0x24] sm:$0xf]
      %v1995 = vld [vmem:[%s1984 + $0x28] sm:$0xf]
      %v1996 = vld [vmem:[%s1984 + $0x2c] sm:$0xf]
      %v1997 = vld [vmem:[%s1984 + $0x30] sm:$0xf]
      %v1998 = vld [vmem:[%s1984 + $0x34] sm:$0xf]
      %v1999 = vld [vmem:[%s1984 + $0x38] sm:$0xf]
      %v2000 = vld [vmem:[%s1984 + $0x3c] sm:$0xf]
      %v2017 = vunpack.c.l.b16 %v1985
      %v2018 = vunpack.c.l.b16 %v1986
      %v2019 = vunpack.c.l.b16 %v1987
      %v2020 = vunpack.c.l.b16 %v1988
      %v2021 = vunpack.c.l.b16 %v1989
      %v2022 = vunpack.c.l.b16 %v1990
      %v2023 = vunpack.c.l.b16 %v1991
      %v2024 = vunpack.c.l.b16 %v1992
      %v2025 = vunpack.c.l.b16 %v1993
      %v2026 = vunpack.c.l.b16 %v1994
      %v2027 = vunpack.c.l.b16 %v1995
      %v2028 = vunpack.c.l.b16 %v1996
      %v2029 = vunpack.c.l.b16 %v1997
      %v2030 = vunpack.c.l.b16 %v1998
      %v2031 = vunpack.c.l.b16 %v1999
      %v2032 = vunpack.c.l.b16 %v2000
      %v2033 = vpack.c.b16 %v2018, %v2017
      %v2034 = vpack.c.b16 %v2020, %v2019
      %v2035 = vpack.c.b16 %v2022, %v2021
      %v2036 = vpack.c.b16 %v2024, %v2023
      %v2037 = vpack.c.b16 %v2026, %v2025
      %v2038 = vpack.c.b16 %v2028, %v2027
      %v2039 = vpack.c.b16 %v2030, %v2029
      %v2040 = vpack.c.b16 %v2032, %v2031
      %2049 = vmatprep.subr.bf16.mxu0 0
      %2050 = vmatpush1.bf16.msra.mxu0 %v2033
      %2051 = vmatprep.subr.bf16.mxu0 0
      %2052 = vmatpush1.bf16.msra.mxu0 %v2034
      %2053 = vmatprep.subr.bf16.mxu0 0
      %2054 = vmatpush1.bf16.msra.mxu0 %v2035
      %2055 = vmatprep.subr.bf16.mxu0 0
      %2056 = vmatpush1.bf16.msra.mxu0 %v2036
      %2057 = vmatprep.subr.bf16.mxu0 0
      %2058 = vmatpush1.bf16.msra.mxu0 %v2037
      %2059 = vmatprep.subr.bf16.mxu0 0
      %2060 = vmatpush1.bf16.msra.mxu0 %v2038
      %2061 = vmatprep.subr.bf16.mxu0 0
      %2062 = vmatpush1.bf16.msra.mxu0 %v2039
      %2063 = vmatprep.subr.bf16.mxu0 0
      %2064 = vmatpush1.bf16.msra.mxu0 %v2040
      %2065 = vmatprep.subr.bf16.mxu0 0
      %2066 = vmatpush1.bf16.msra.mxu0 0
      %2067 = vmatprep.subr.bf16.mxu0 0
      %2068 = vmatpush1.bf16.msra.mxu0 0
      %2069 = vmatprep.subr.bf16.mxu0 0
      %2070 = vmatpush1.bf16.msra.mxu0 0
      %2071 = vmatprep.subr.bf16.mxu0 0
      %2072 = vmatpush1.bf16.msra.mxu0 0
      %2073 = vmatprep.subr.bf16.mxu0 0
      %2074 = vmatpush1.bf16.msra.mxu0 0
      %2075 = vmatprep.subr.bf16.mxu0 0
      %2076 = vmatpush1.bf16.msra.mxu0 0
      %2077 = vmatprep.subr.bf16.mxu0 0
      %2078 = vmatpush1.bf16.msra.mxu0 0
      %2079 = vmatprep.subr.bf16.mxu0 0
      %2080 = vmatpush1.bf16.msra.mxu0 0
      %2081 = vmatprep.mubr.bf16.mxu0 0
      %2082 = vmatmul.mubr.bf16.gmra.mrb[0].mxu0 %v1976
      %v2083 = vpop.f32.mrb[0].mxu0
      %v2084 = vadd.f32 0.0, %v2083
      %v2085 = vpop.f32.mrb[0].mxu0
      %v2086 = vpop.f32.mrb[0].mxu0
      %v2087 = vadd.f32 0.0, %v2086
      %v2088 = vpop.f32.mrb[0].mxu0
      %2089 = vmatprep.mubr.bf16.mxu0 0
      %2090 = vmatmul.mubr.bf16.gmra.mrb[0].mxu0 %v1977
      %v2091 = vpop.f32.mrb[0].mxu0
      %v2092 = vadd.f32 0.0, %v2091
      %v2093 = vpop.f32.mrb[0].mxu0
      %v2094 = vpop.f32.mrb[0].mxu0
      %v2095 = vadd.f32 0.0, %v2094
      %v2096 = vpop.f32.mrb[0].mxu0
      %2097 = vmatprep.mubr.bf16.mxu0 0
      %2098 = vmatmul.mubr.bf16.gmra.mrb[0].mxu0 %v1978
      %v2099 = vpop.f32.mrb[0].mxu0
      %v2100 = vadd.f32 0.0, %v2099
      %v2101 = vpop.f32.mrb[0].mxu0
      %v2102 = vpop.f32.mrb[0].mxu0
      %v2103 = vadd.f32 0.0, %v2102
      %v2104 = vpop.f32.mrb[0].mxu0
      %2105 = vmatprep.mubr.bf16.mxu0 0
      %2106 = vmatmul.mubr.bf16.gmra.mrb[0].mxu0 %v1979
      %v2107 = vpop.f32.mrb[0].mxu0
      %v2108 = vadd.f32 0.0, %v2107
      %v2109 = vpop.f32.mrb[0].mxu0
      %v2110 = vpop.f32.mrb[0].mxu0
      %v2111 = vadd.f32 0.0, %v2110
      %v2112 = vpop.f32.mrb[0].mxu0
      %2113 = vmatprep.mubr.bf16.mxu0 0
      %2114 = vmatmul.mubr.bf16.gmra.mrb[0].mxu0 %v1980
      %v2115 = vpop.f32.mrb[0].mxu0
      %v2116 = vadd.f32 0.0, %v2115
      %v2117 = vpop.f32.mrb[0].mxu0
      %v2118 = vpop.f32.mrb[0].mxu0
      %v2119 = vadd.f32 0.0, %v2118
      %v2120 = vpop.f32.mrb[0].mxu0
      %2121 = vmatprep.mubr.bf16.mxu0 0
      %2122 = vmatmul.mubr.bf16.gmra.mrb[0].mxu0 %v1981
      %v2123 = vpop.f32.mrb[0].mxu0
      %v2124 = vadd.f32 0.0, %v2123
      %v2125 = vpop.f32.mrb[0].mxu0
      %v2126 = vpop.f32.mrb[0].mxu0
      %v2127 = vadd.f32 0.0, %v2126
      %v2128 = vpop.f32.mrb[0].mxu0
      %2129 = vmatprep.mubr.bf16.mxu0 0
      %2130 = vmatmul.mubr.bf16.gmra.mrb[0].mxu0 %v1982
      %v2131 = vpop.f32.mrb[0].mxu0
      %v2132 = vadd.f32 0.0, %v2131
      %v2133 = vpop.f32.mrb[0].mxu0
      %v2134 = vpop.f32.mrb[0].mxu0
      %v2135 = vadd.f32 0.0, %v2134
      %v2136 = vpop.f32.mrb[0].mxu0
      %2137 = vmatprep.mubr.bf16.mxu0 0
      %2138 = vmatmul.mubr.bf16.gmra.mrb[0].mxu0 %v1983
      %v2139 = vpop.f32.mrb[0].mxu0
      %v2140 = vadd.f32 0.0, %v2139
      %v2141 = vpop.f32.mrb[0].mxu0
      %v2142 = vpop.f32.mrb[0].mxu0
      %v2143 = vadd.f32 0.0, %v2142
      %v2144 = vpop.f32.mrb[0].mxu0
      %2145 = vdwg.mxu0
      %v2146 = vld [vmem:[#allocation5] sm:$0xff]
      %v2147 = vld [vmem:[#allocation5 + $0x8] sm:$0xff]
      %v2148 = vld [vmem:[#allocation5 + $0x10] sm:$0xff]
      %v2149 = vld [vmem:[#allocation5 + $0x18] sm:$0xff]
      %v2150 = vld [vmem:[#allocation5 + $0x20] sm:$0xff]
      %v2151 = vld [vmem:[#allocation5 + $0x28] sm:$0xff]
      %v2152 = vld [vmem:[#allocation5 + $0x30] sm:$0xff]
      %v2153 = vld [vmem:[#allocation5 + $0x38] sm:$0xff]
      %v2154 = vld [vmem:[#allocation5 + $0x40] sm:$0xff]
      %v2155 = vld [vmem:[#allocation5 + $0x48] sm:$0xff]
      %v2156 = vld [vmem:[#allocation5 + $0x50] sm:$0xff]
      %v2157 = vld [vmem:[#allocation5 + $0x58] sm:$0xff]
      %v2158 = vld [vmem:[#allocation5 + $0x60] sm:$0xff]
      %v2159 = vld [vmem:[#allocation5 + $0x68] sm:$0xff]
      %v2160 = vld [vmem:[#allocation5 + $0x70] sm:$0xff]
      %v2161 = vld [vmem:[#allocation5 + $0x78] sm:$0xff]
      %v2162 = vadd.f32 %v2146, %v2084
      %v2163 = vadd.f32 %v2147, %v2087
      %v2164 = vadd.f32 %v2148, %v2092
      %v2165 = vadd.f32 %v2149, %v2095
      %v2166 = vadd.f32 %v2150, %v2100
      %v2167 = vadd.f32 %v2151, %v2103
      %v2168 = vadd.f32 %v2152, %v2108
      %v2169 = vadd.f32 %v2153, %v2111
      %v2170 = vadd.f32 %v2154, %v2116
      %v2171 = vadd.f32 %v2155, %v2119
      %v2172 = vadd.f32 %v2156, %v2124
      %v2173 = vadd.f32 %v2157, %v2127
      %v2174 = vadd.f32 %v2158, %v2132
      %v2175 = vadd.f32 %v2159, %v2135
      %v2176 = vadd.f32 %v2160, %v2140
      %v2177 = vadd.f32 %v2161, %v2143
      %2178 = vst [vmem:[#allocation5] sm:$0xff] %v2162
      %2179 = vst [vmem:[#allocation5 + $0x8] sm:$0xff] %v2163
      %2180 = vst [vmem:[#allocation5 + $0x10] sm:$0xff] %v2164
      %2181 = vst [vmem:[#allocation5 + $0x18] sm:$0xff] %v2165
      %2182 = vst [vmem:[#allocation5 + $0x20] sm:$0xff] %v2166
      %2183 = vst [vmem:[#allocation5 + $0x28] sm:$0xff] %v2167
      %2184 = vst [vmem:[#allocation5 + $0x30] sm:$0xff] %v2168
      %2185 = vst [vmem:[#allocation5 + $0x38] sm:$0xff] %v2169
      %2186 = vst [vmem:[#allocation5 + $0x40] sm:$0xff] %v2170
      %2187 = vst [vmem:[#allocation5 + $0x48] sm:$0xff] %v2171
      %2188 = vst [vmem:[#allocation5 + $0x50] sm:$0xff] %v2172
      %2189 = vst [vmem:[#allocation5 + $0x58] sm:$0xff] %v2173
      %2190 = vst [vmem:[#allocation5 + $0x60] sm:$0xff] %v2174
      %2191 = vst [vmem:[#allocation5 + $0x68] sm:$0xff] %v2175
      %2192 = vst [vmem:[#allocation5 + $0x70] sm:$0xff] %v2176
      %2193 = vst [vmem:[#allocation5 + $0x78] sm:$0xff] %v2177
      %v2194 = vld [vmem:[#allocation2 + $0x20] sm:$0xff]
      %v2195 = vld [vmem:[#allocation2 + $0x28] sm:$0xff]
      %v2196 = vld [vmem:[#allocation2 + $0x30] sm:$0xff]
      %v2197 = vld [vmem:[#allocation2 + $0x38] sm:$0xff]
      %v2198 = vld [vmem:[#allocation2 + $0x40] sm:$0xff]
      %v2199 = vld [vmem:[#allocation2 + $0x48] sm:$0xff]
      %v2200 = vld [vmem:[#allocation2 + $0x50] sm:$0xff]
      %v2201 = vld [vmem:[#allocation2 + $0x58] sm:$0xff]
      %s2202 = scalar_lea.vmem %s3, 384
      %v2203 = vld [vmem:[%s2202] sm:$0xf]
      %v2204 = vld [vmem:[%s2202 + $0x4] sm:$0xf]
      %v2205 = vld [vmem:[%s2202 + $0x8] sm:$0xf]
      %v2206 = vld [vmem:[%s2202 + $0xc] sm:$0xf]
      %v2207 = vld [vmem:[%s2202 + $0x10] sm:$0xf]
      %v2208 = vld [vmem:[%s2202 + $0x14] sm:$0xf]
      %v2209 = vld [vmem:[%s2202 + $0x18] sm:$0xf]
      %v2210 = vld [vmem:[%s2202 + $0x1c] sm:$0xf]
      %v2211 = vld [vmem:[%s2202 + $0x20] sm:$0xf]
      %v2212 = vld [vmem:[%s2202 + $0x24] sm:$0xf]
      %v2213 = vld [vmem:[%s2202 + $0x28] sm:$0xf]
      %v2214 = vld [vmem:[%s2202 + $0x2c] sm:$0xf]
      %v2215 = vld [vmem:[%s2202 + $0x30] sm:$0xf]
      %v2216 = vld [vmem:[%s2202 + $0x34] sm:$0xf]
      %v2217 = vld [vmem:[%s2202 + $0x38] sm:$0xf]
      %v2218 = vld [vmem:[%s2202 + $0x3c] sm:$0xf]
      %v2235 = vunpack.c.l.b16 %v2203
      %v2236 = vunpack.c.l.b16 %v2204
      %v2237 = vunpack.c.l.b16 %v2205
      %v2238 = vunpack.c.l.b16 %v2206
      %v2239 = vunpack.c.l.b16 %v2207
      %v2240 = vunpack.c.l.b16 %v2208
      %v2241 = vunpack.c.l.b16 %v2209
      %v2242 = vunpack.c.l.b16 %v2210
      %v2243 = vunpack.c.l.b16 %v2211
      %v2244 = vunpack.c.l.b16 %v2212
      %v2245 = vunpack.c.l.b16 %v2213
      %v2246 = vunpack.c.l.b16 %v2214
      %v2247 = vunpack.c.l.b16 %v2215
      %v2248 = vunpack.c.l.b16 %v2216
      %v2249 = vunpack.c.l.b16 %v2217
      %v2250 = vunpack.c.l.b16 %v2218
      %v2251 = vpack.c.b16 %v2236, %v2235
      %v2252 = vpack.c.b16 %v2238, %v2237
      %v2253 = vpack.c.b16 %v2240, %v2239
      %v2254 = vpack.c.b16 %v2242, %v2241
      %v2255 = vpack.c.b16 %v2244, %v2243
      %v2256 = vpack.c.b16 %v2246, %v2245
      %v2257 = vpack.c.b16 %v2248, %v2247
      %v2258 = vpack.c.b16 %v2250, %v2249
      %2267 = vmatprep.subr.bf16.mxu0 0
      %2268 = vmatpush1.bf16.msra.mxu0 %v2251
      %2269 = vmatprep.subr.bf16.mxu0 0
      %2270 = vmatpush1.bf16.msra.mxu0 %v2252
      %2271 = vmatprep.subr.bf16.mxu0 0
      %2272 = vmatpush1.bf16.msra.mxu0 %v2253
      %2273 = vmatprep.subr.bf16.mxu0 0
      %2274 = vmatpush1.bf16.msra.mxu0 %v2254
      %2275 = vmatprep.subr.bf16.mxu0 0
      %2276 = vmatpush1.bf16.msra.mxu0 %v2255
      %2277 = vmatprep.subr.bf16.mxu0 0
      %2278 = vmatpush1.bf16.msra.mxu0 %v2256
      %2279 = vmatprep.subr.bf16.mxu0 0
      %2280 = vmatpush1.bf16.msra.mxu0 %v2257
      %2281 = vmatprep.subr.bf16.mxu0 0
      %2282 = vmatpush1.bf16.msra.mxu0 %v2258
      %2283 = vmatprep.subr.bf16.mxu0 0
      %2284 = vmatpush1.bf16.msra.mxu0 0
      %2285 = vmatprep.subr.bf16.mxu0 0
      %2286 = vmatpush1.bf16.msra.mxu0 0
      %2287 = vmatprep.subr.bf16.mxu0 0
      %2288 = vmatpush1.bf16.msra.mxu0 0
      %2289 = vmatprep.subr.bf16.mxu0 0
      %2290 = vmatpush1.bf16.msra.mxu0 0
      %2291 = vmatprep.subr.bf16.mxu0 0
      %2292 = vmatpush1.bf16.msra.mxu0 0
      %2293 = vmatprep.subr.bf16.mxu0 0
      %2294 = vmatpush1.bf16.msra.mxu0 0
      %2295 = vmatprep.subr.bf16.mxu0 0
      %2296 = vmatpush1.bf16.msra.mxu0 0
      %2297 = vmatprep.subr.bf16.mxu0 0
      %2298 = vmatpush1.bf16.msra.mxu0 0
      %2299 = vmatprep.mubr.bf16.mxu0 0
      %2300 = vmatmul.mubr.bf16.gmra.mrb[0].mxu0 %v2194
      %v2301 = vpop.f32.mrb[0].mxu0
      %v2302 = vadd.f32 0.0, %v2301
      %v2303 = vpop.f32.mrb[0].mxu0
      %v2304 = vpop.f32.mrb[0].mxu0
      %v2305 = vadd.f32 0.0, %v2304
      %v2306 = vpop.f32.mrb[0].mxu0
      %2307 = vmatprep.mubr.bf16.mxu0 0
      %2308 = vmatmul.mubr.bf16.gmra.mrb[0].mxu0 %v2195
      %v2309 = vpop.f32.mrb[0].mxu0
      %v2310 = vadd.f32 0.0, %v2309
      %v2311 = vpop.f32.mrb[0].mxu0
      %v2312 = vpop.f32.mrb[0].mxu0
      %v2313 = vadd.f32 0.0, %v2312
      %v2314 = vpop.f32.mrb[0].mxu0
      %2315 = vmatprep.mubr.bf16.mxu0 0
      %2316 = vmatmul.mubr.bf16.gmra.mrb[0].mxu0 %v2196
      %v2317 = vpop.f32.mrb[0].mxu0
      %v2318 = vadd.f32 0.0, %v2317
      %v2319 = vpop.f32.mrb[0].mxu0
      %v2320 = vpop.f32.mrb[0].mxu0
      %v2321 = vadd.f32 0.0, %v2320
      %v2322 = vpop.f32.mrb[0].mxu0
      %2323 = vmatprep.mubr.bf16.mxu0 0
      %2324 = vmatmul.mubr.bf16.gmra.mrb[0].mxu0 %v2197
      %v2325 = vpop.f32.mrb[0].mxu0
      %v2326 = vadd.f32 0.0, %v2325
      %v2327 = vpop.f32.mrb[0].mxu0
      %v2328 = vpop.f32.mrb[0].mxu0
      %v2329 = vadd.f32 0.0, %v2328
      %v2330 = vpop.f32.mrb[0].mxu0
      %2331 = vmatprep.mubr.bf16.mxu0 0
      %2332 = vmatmul.mubr.bf16.gmra.mrb[0].mxu0 %v2198
      %v2333 = vpop.f32.mrb[0].mxu0
      %v2334 = vadd.f32 0.0, %v2333
      %v2335 = vpop.f32.mrb[0].mxu0
      %v2336 = vpop.f32.mrb[0].mxu0
      %v2337 = vadd.f32 0.0, %v2336
      %v2338 = vpop.f32.mrb[0].mxu0
      %2339 = vmatprep.mubr.bf16.mxu0 0
      %2340 = vmatmul.mubr.bf16.gmra.mrb[0].mxu0 %v2199
      %v2341 = vpop.f32.mrb[0].mxu0
      %v2342 = vadd.f32 0.0, %v2341
      %v2343 = vpop.f32.mrb[0].mxu0
      %v2344 = vpop.f32.mrb[0].mxu0
      %v2345 = vadd.f32 0.0, %v2344
      %v2346 = vpop.f32.mrb[0].mxu0
      %2347 = vmatprep.mubr.bf16.mxu0 0
      %2348 = vmatmul.mubr.bf16.gmra.mrb[0].mxu0 %v2200
      %v2349 = vpop.f32.mrb[0].mxu0
      %v2350 = vadd.f32 0.0, %v2349
      %v2351 = vpop.f32.mrb[0].mxu0
      %v2352 = vpop.f32.mrb[0].mxu0
      %v2353 = vadd.f32 0.0, %v2352
      %v2354 = vpop.f32.mrb[0].mxu0
      %2355 = vmatprep.mubr.bf16.mxu0 0
      %2356 = vmatmul.mubr.bf16.gmra.mrb[0].mxu0 %v2201
      %v2357 = vpop.f32.mrb[0].mxu0
      %v2358 = vadd.f32 0.0, %v2357
      %v2359 = vpop.f32.mrb[0].mxu0
      %v2360 = vpop.f32.mrb[0].mxu0
      %v2361 = vadd.f32 0.0, %v2360
      %v2362 = vpop.f32.mrb[0].mxu0
      %2363 = vdwg.mxu0
      %v2364 = vld [vmem:[#allocation5] sm:$0xff]
      %v2365 = vld [vmem:[#allocation5 + $0x8] sm:$0xff]
      %v2366 = vld [vmem:[#allocation5 + $0x10] sm:$0xff]
      %v2367 = vld [vmem:[#allocation5 + $0x18] sm:$0xff]
      %v2368 = vld [vmem:[#allocation5 + $0x20] sm:$0xff]
      %v2369 = vld [vmem:[#allocation5 + $0x28] sm:$0xff]
      %v2370 = vld [vmem:[#allocation5 + $0x30] sm:$0xff]
      %v2371 = vld [vmem:[#allocation5 + $0x38] sm:$0xff]
      %v2372 = vld [vmem:[#allocation5 + $0x40] sm:$0xff]
      %v2373 = vld [vmem:[#allocation5 + $0x48] sm:$0xff]
      %v2374 = vld [vmem:[#allocation5 + $0x50] sm:$0xff]
      %v2375 = vld [vmem:[#allocation5 + $0x58] sm:$0xff]
      %v2376 = vld [vmem:[#allocation5 + $0x60] sm:$0xff]
      %v2377 = vld [vmem:[#allocation5 + $0x68] sm:$0xff]
      %v2378 = vld [vmem:[#allocation5 + $0x70] sm:$0xff]
      %v2379 = vld [vmem:[#allocation5 + $0x78] sm:$0xff]
      %v2380 = vadd.f32 %v2364, %v2302
      %v2381 = vadd.f32 %v2365, %v2305
      %v2382 = vadd.f32 %v2366, %v2310
      %v2383 = vadd.f32 %v2367, %v2313
      %v2384 = vadd.f32 %v2368, %v2318
      %v2385 = vadd.f32 %v2369, %v2321
      %v2386 = vadd.f32 %v2370, %v2326
      %v2387 = vadd.f32 %v2371, %v2329
      %v2388 = vadd.f32 %v2372, %v2334
      %v2389 = vadd.f32 %v2373, %v2337
      %v2390 = vadd.f32 %v2374, %v2342
      %v2391 = vadd.f32 %v2375, %v2345
      %v2392 = vadd.f32 %v2376, %v2350
      %v2393 = vadd.f32 %v2377, %v2353
      %v2394 = vadd.f32 %v2378, %v2358
      %v2395 = vadd.f32 %v2379, %v2361
      %2396 = vst [vmem:[#allocation5] sm:$0xff] %v2380
      %2397 = vst [vmem:[#allocation5 + $0x8] sm:$0xff] %v2381
      %2398 = vst [vmem:[#allocation5 + $0x10] sm:$0xff] %v2382
      %2399 = vst [vmem:[#allocation5 + $0x18] sm:$0xff] %v2383
      %2400 = vst [vmem:[#allocation5 + $0x20] sm:$0xff] %v2384
      %2401 = vst [vmem:[#allocation5 + $0x28] sm:$0xff] %v2385
      %2402 = vst [vmem:[#allocation5 + $0x30] sm:$0xff] %v2386
      %2403 = vst [vmem:[#allocation5 + $0x38] sm:$0xff] %v2387
      %2404 = vst [vmem:[#allocation5 + $0x40] sm:$0xff] %v2388
      %2405 = vst [vmem:[#allocation5 + $0x48] sm:$0xff] %v2389
      %2406 = vst [vmem:[#allocation5 + $0x50] sm:$0xff] %v2390
      %2407 = vst [vmem:[#allocation5 + $0x58] sm:$0xff] %v2391
      %2408 = vst [vmem:[#allocation5 + $0x60] sm:$0xff] %v2392
      %2409 = vst [vmem:[#allocation5 + $0x68] sm:$0xff] %v2393
      %2410 = vst [vmem:[#allocation5 + $0x70] sm:$0xff] %v2394
      %2411 = vst [vmem:[#allocation5 + $0x78] sm:$0xff] %v2395
      %v2412 = vld [vmem:[#allocation3 + $0x20] sm:$0xff]
      %v2413 = vld [vmem:[#allocation3 + $0x28] sm:$0xff]
      %v2414 = vld [vmem:[#allocation3 + $0x30] sm:$0xff]
      %v2415 = vld [vmem:[#allocation3 + $0x38] sm:$0xff]
      %v2416 = vld [vmem:[#allocation3 + $0x40] sm:$0xff]
      %v2417 = vld [vmem:[#allocation3 + $0x48] sm:$0xff]
      %v2418 = vld [vmem:[#allocation3 + $0x50] sm:$0xff]
      %v2419 = vld [vmem:[#allocation3 + $0x58] sm:$0xff]
      %s2420 = scalar_lea.vmem %s3, 448
      %v2421 = vld [vmem:[%s2420] sm:$0xf]
      %v2422 = vld [vmem:[%s2420 + $0x4] sm:$0xf]
      %v2423 = vld [vmem:[%s2420 + $0x8] sm:$0xf]
      %v2424 = vld [vmem:[%s2420 + $0xc] sm:$0xf]
      %v2425 = vld [vmem:[%s2420 + $0x10] sm:$0xf]
      %v2426 = vld [vmem:[%s2420 + $0x14] sm:$0xf]
      %v2427 = vld [vmem:[%s2420 + $0x18] sm:$0xf]
      %v2428 = vld [vmem:[%s2420 + $0x1c] sm:$0xf]
      %v2429 = vld [vmem:[%s2420 + $0x20] sm:$0xf]
      %v2430 = vld [vmem:[%s2420 + $0x24] sm:$0xf]
      %v2431 = vld [vmem:[%s2420 + $0x28] sm:$0xf]
      %v2432 = vld [vmem:[%s2420 + $0x2c] sm:$0xf]
      %v2433 = vld [vmem:[%s2420 + $0x30] sm:$0xf]
      %v2434 = vld [vmem:[%s2420 + $0x34] sm:$0xf]
      %v2435 = vld [vmem:[%s2420 + $0x38] sm:$0xf]
      %v2436 = vld [vmem:[%s2420 + $0x3c] sm:$0xf]
      %v2453 = vunpack.c.l.b16 %v2421
      %v2454 = vunpack.c.l.b16 %v2422
      %v2455 = vunpack.c.l.b16 %v2423
      %v2456 = vunpack.c.l.b16 %v2424
      %v2457 = vunpack.c.l.b16 %v2425
      %v2458 = vunpack.c.l.b16 %v2426
      %v2459 = vunpack.c.l.b16 %v2427
      %v2460 = vunpack.c.l.b16 %v2428
      %v2461 = vunpack.c.l.b16 %v2429
      %v2462 = vunpack.c.l.b16 %v2430
      %v2463 = vunpack.c.l.b16 %v2431
      %v2464 = vunpack.c.l.b16 %v2432
      %v2465 = vunpack.c.l.b16 %v2433
      %v2466 = vunpack.c.l.b16 %v2434
      %v2467 = vunpack.c.l.b16 %v2435
      %v2468 = vunpack.c.l.b16 %v2436
      %v2469 = vpack.c.b16 %v2454, %v2453
      %v2470 = vpack.c.b16 %v2456, %v2455
      %v2471 = vpack.c.b16 %v2458, %v2457
      %v2472 = vpack.c.b16 %v2460, %v2459
      %v2473 = vpack.c.b16 %v2462, %v2461
      %v2474 = vpack.c.b16 %v2464, %v2463
      %v2475 = vpack.c.b16 %v2466, %v2465
      %v2476 = vpack.c.b16 %v2468, %v2467
      %2485 = vmatprep.subr.bf16.mxu0 0
      %2486 = vmatpush1.bf16.msra.mxu0 %v2469
      %2487 = vmatprep.subr.bf16.mxu0 0
      %2488 = vmatpush1.bf16.msra.mxu0 %v2470
      %2489 = vmatprep.subr.bf16.mxu0 0
      %2490 = vmatpush1.bf16.msra.mxu0 %v2471
      %2491 = vmatprep.subr.bf16.mxu0 0
      %2492 = vmatpush1.bf16.msra.mxu0 %v2472
      %2493 = vmatprep.subr.bf16.mxu0 0
      %2494 = vmatpush1.bf16.msra.mxu0 %v2473
      %2495 = vmatprep.subr.bf16.mxu0 0
      %2496 = vmatpush1.bf16.msra.mxu0 %v2474
      %2497 = vmatprep.subr.bf16.mxu0 0
      %2498 = vmatpush1.bf16.msra.mxu0 %v2475
      %2499 = vmatprep.subr.bf16.mxu0 0
      %2500 = vmatpush1.bf16.msra.mxu0 %v2476
      %2501 = vmatprep.subr.bf16.mxu0 0
      %2502 = vmatpush1.bf16.msra.mxu0 0
      %2503 = vmatprep.subr.bf16.mxu0 0
      %2504 = vmatpush1.bf16.msra.mxu0 0
      %2505 = vmatprep.subr.bf16.mxu0 0
      %2506 = vmatpush1.bf16.msra.mxu0 0
      %2507 = vmatprep.subr.bf16.mxu0 0
      %2508 = vmatpush1.bf16.msra.mxu0 0
      %2509 = vmatprep.subr.bf16.mxu0 0
      %2510 = vmatpush1.bf16.msra.mxu0 0
      %2511 = vmatprep.subr.bf16.mxu0 0
      %2512 = vmatpush1.bf16.msra.mxu0 0
      %2513 = vmatprep.subr.bf16.mxu0 0
      %2514 = vmatpush1.bf16.msra.mxu0 0
      %2515 = vmatprep.subr.bf16.mxu0 0
      %2516 = vmatpush1.bf16.msra.mxu0 0
      %2517 = vmatprep.mubr.bf16.mxu0 0
      %2518 = vmatmul.mubr.bf16.gmra.mrb[0].mxu0 %v2412
      %v2519 = vpop.f32.mrb[0].mxu0
      %v2520 = vadd.f32 0.0, %v2519
      %v2521 = vpop.f32.mrb[0].mxu0
      %v2522 = vpop.f32.mrb[0].mxu0
      %v2523 = vadd.f32 0.0, %v2522
      %v2524 = vpop.f32.mrb[0].mxu0
      %2525 = vmatprep.mubr.bf16.mxu0 0
      %2526 = vmatmul.mubr.bf16.gmra.mrb[0].mxu0 %v2413
      %v2527 = vpop.f32.mrb[0].mxu0
      %v2528 = vadd.f32 0.0, %v2527
      %v2529 = vpop.f32.mrb[0].mxu0
      %v2530 = vpop.f32.mrb[0].mxu0
      %v2531 = vadd.f32 0.0, %v2530
      %v2532 = vpop.f32.mrb[0].mxu0
      %2533 = vmatprep.mubr.bf16.mxu0 0
      %2534 = vmatmul.mubr.bf16.gmra.mrb[0].mxu0 %v2414
      %v2535 = vpop.f32.mrb[0].mxu0
      %v2536 = vadd.f32 0.0, %v2535
      %v2537 = vpop.f32.mrb[0].mxu0
      %v2538 = vpop.f32.mrb[0].mxu0
      %v2539 = vadd.f32 0.0, %v2538
      %v2540 = vpop.f32.mrb[0].mxu0
      %2541 = vmatprep.mubr.bf16.mxu0 0
      %2542 = vmatmul.mubr.bf16.gmra.mrb[0].mxu0 %v2415
      %v2543 = vpop.f32.mrb[0].mxu0
      %v2544 = vadd.f32 0.0, %v2543
      %v2545 = vpop.f32.mrb[0].mxu0
      %v2546 = vpop.f32.mrb[0].mxu0
      %v2547 = vadd.f32 0.0, %v2546
      %v2548 = vpop.f32.mrb[0].mxu0
      %2549 = vmatprep.mubr.bf16.mxu0 0
      %2550 = vmatmul.mubr.bf16.gmra.mrb[0].mxu0 %v2416
      %v2551 = vpop.f32.mrb[0].mxu0
      %v2552 = vadd.f32 0.0, %v2551
      %v2553 = vpop.f32.mrb[0].mxu0
      %v2554 = vpop.f32.mrb[0].mxu0
      %v2555 = vadd.f32 0.0, %v2554
      %v2556 = vpop.f32.mrb[0].mxu0
      %2557 = vmatprep.mubr.bf16.mxu0 0
      %2558 = vmatmul.mubr.bf16.gmra.mrb[0].mxu0 %v2417
      %v2559 = vpop.f32.mrb[0].mxu0
      %v2560 = vadd.f32 0.0, %v2559
      %v2561 = vpop.f32.mrb[0].mxu0
      %v2562 = vpop.f32.mrb[0].mxu0
      %v2563 = vadd.f32 0.0, %v2562
      %v2564 = vpop.f32.mrb[0].mxu0
      %2565 = vmatprep.mubr.bf16.mxu0 0
      %2566 = vmatmul.mubr.bf16.gmra.mrb[0].mxu0 %v2418
      %v2567 = vpop.f32.mrb[0].mxu0
      %v2568 = vadd.f32 0.0, %v2567
      %v2569 = vpop.f32.mrb[0].mxu0
      %v2570 = vpop.f32.mrb[0].mxu0
      %v2571 = vadd.f32 0.0, %v2570
      %v2572 = vpop.f32.mrb[0].mxu0
      %2573 = vmatprep.mubr.bf16.mxu0 0
      %2574 = vmatmul.mubr.bf16.gmra.mrb[0].mxu0 %v2419
      %v2575 = vpop.f32.mrb[0].mxu0
      %v2576 = vadd.f32 0.0, %v2575
      %v2577 = vpop.f32.mrb[0].mxu0
      %v2578 = vpop.f32.mrb[0].mxu0
      %v2579 = vadd.f32 0.0, %v2578
      %v2580 = vpop.f32.mrb[0].mxu0
      %2581 = vdwg.mxu0
      %v2582 = vld [vmem:[#allocation5] sm:$0xff]
      %v2583 = vld [vmem:[#allocation5 + $0x8] sm:$0xff]
      %v2584 = vld [vmem:[#allocation5 + $0x10] sm:$0xff]
      %v2585 = vld [vmem:[#allocation5 + $0x18] sm:$0xff]
      %v2586 = vld [vmem:[#allocation5 + $0x20] sm:$0xff]
      %v2587 = vld [vmem:[#allocation5 + $0x28] sm:$0xff]
      %v2588 = vld [vmem:[#allocation5 + $0x30] sm:$0xff]
      %v2589 = vld [vmem:[#allocation5 + $0x38] sm:$0xff]
      %v2590 = vld [vmem:[#allocation5 + $0x40] sm:$0xff]
      %v2591 = vld [vmem:[#allocation5 + $0x48] sm:$0xff]
      %v2592 = vld [vmem:[#allocation5 + $0x50] sm:$0xff]
      %v2593 = vld [vmem:[#allocation5 + $0x58] sm:$0xff]
      %v2594 = vld [vmem:[#allocation5 + $0x60] sm:$0xff]
      %v2595 = vld [vmem:[#allocation5 + $0x68] sm:$0xff]
      %v2596 = vld [vmem:[#allocation5 + $0x70] sm:$0xff]
      %v2597 = vld [vmem:[#allocation5 + $0x78] sm:$0xff]
      %v2598 = vadd.f32 %v2582, %v2520
      %v2599 = vadd.f32 %v2583, %v2523
      %v2600 = vadd.f32 %v2584, %v2528
      %v2601 = vadd.f32 %v2585, %v2531
      %v2602 = vadd.f32 %v2586, %v2536
      %v2603 = vadd.f32 %v2587, %v2539
      %v2604 = vadd.f32 %v2588, %v2544
      %v2605 = vadd.f32 %v2589, %v2547
      %v2606 = vadd.f32 %v2590, %v2552
      %v2607 = vadd.f32 %v2591, %v2555
      %v2608 = vadd.f32 %v2592, %v2560
      %v2609 = vadd.f32 %v2593, %v2563
      %v2610 = vadd.f32 %v2594, %v2568
      %v2611 = vadd.f32 %v2595, %v2571
      %v2612 = vadd.f32 %v2596, %v2576
      %v2613 = vadd.f32 %v2597, %v2579
      %2614 = vst [vmem:[#allocation5] sm:$0xff] %v2598
      %2615 = vst [vmem:[#allocation5 + $0x8] sm:$0xff] %v2599
      %2616 = vst [vmem:[#allocation5 + $0x10] sm:$0xff] %v2600
      %2617 = vst [vmem:[#allocation5 + $0x18] sm:$0xff] %v2601
      %2618 = vst [vmem:[#allocation5 + $0x20] sm:$0xff] %v2602
      %2619 = vst [vmem:[#allocation5 + $0x28] sm:$0xff] %v2603
      %2620 = vst [vmem:[#allocation5 + $0x30] sm:$0xff] %v2604
      %2621 = vst [vmem:[#allocation5 + $0x38] sm:$0xff] %v2605
      %2622 = vst [vmem:[#allocation5 + $0x40] sm:$0xff] %v2606
      %2623 = vst [vmem:[#allocation5 + $0x48] sm:$0xff] %v2607
      %2624 = vst [vmem:[#allocation5 + $0x50] sm:$0xff] %v2608
      %2625 = vst [vmem:[#allocation5 + $0x58] sm:$0xff] %v2609
      %2626 = vst [vmem:[#allocation5 + $0x60] sm:$0xff] %v2610
      %2627 = vst [vmem:[#allocation5 + $0x68] sm:$0xff] %v2611
      %2628 = vst [vmem:[#allocation5 + $0x70] sm:$0xff] %v2612
      %2629 = vst [vmem:[#allocation5 + $0x78] sm:$0xff] %v2613
      %v2630 = vld [vmem:[#allocation4 + $0x20] sm:$0xff]
      %v2631 = vld [vmem:[#allocation4 + $0x28] sm:$0xff]
      %v2632 = vld [vmem:[#allocation4 + $0x30] sm:$0xff]
      %v2633 = vld [vmem:[#allocation4 + $0x38] sm:$0xff]
      %v2634 = vld [vmem:[#allocation4 + $0x40] sm:$0xff]
      %v2635 = vld [vmem:[#allocation4 + $0x48] sm:$0xff]
      %v2636 = vld [vmem:[#allocation4 + $0x50] sm:$0xff]
      %v2637 = vld [vmem:[#allocation4 + $0x58] sm:$0xff]
      %s2638 = scalar_lea.vmem %s3, 512
      %v2639 = vld [vmem:[%s2638] sm:$0xf]
      %v2640 = vld [vmem:[%s2638 + $0x4] sm:$0xf]
      %v2641 = vld [vmem:[%s2638 + $0x8] sm:$0xf]
      %v2642 = vld [vmem:[%s2638 + $0xc] sm:$0xf]
      %v2643 = vld [vmem:[%s2638 + $0x10] sm:$0xf]
      %v2644 = vld [vmem:[%s2638 + $0x14] sm:$0xf]
      %v2645 = vld [vmem:[%s2638 + $0x18] sm:$0xf]
      %v2646 = vld [vmem:[%s2638 + $0x1c] sm:$0xf]
      %v2647 = vld [vmem:[%s2638 + $0x20] sm:$0xf]
      %v2648 = vld [vmem:[%s2638 + $0x24] sm:$0xf]
      %v2649 = vld [vmem:[%s2638 + $0x28] sm:$0xf]
      %v2650 = vld [vmem:[%s2638 + $0x2c] sm:$0xf]
      %v2651 = vld [vmem:[%s2638 + $0x30] sm:$0xf]
      %v2652 = vld [vmem:[%s2638 + $0x34] sm:$0xf]
      %v2653 = vld [vmem:[%s2638 + $0x38] sm:$0xf]
      %v2654 = vld [vmem:[%s2638 + $0x3c] sm:$0xf]
      %v2671 = vunpack.c.l.b16 %v2639
      %v2672 = vunpack.c.l.b16 %v2640
      %v2673 = vunpack.c.l.b16 %v2641
      %v2674 = vunpack.c.l.b16 %v2642
      %v2675 = vunpack.c.l.b16 %v2643
      %v2676 = vunpack.c.l.b16 %v2644
      %v2677 = vunpack.c.l.b16 %v2645
      %v2678 = vunpack.c.l.b16 %v2646
      %v2679 = vunpack.c.l.b16 %v2647
      %v2680 = vunpack.c.l.b16 %v2648
      %v2681 = vunpack.c.l.b16 %v2649
      %v2682 = vunpack.c.l.b16 %v2650
      %v2683 = vunpack.c.l.b16 %v2651
      %v2684 = vunpack.c.l.b16 %v2652
      %v2685 = vunpack.c.l.b16 %v2653
      %v2686 = vunpack.c.l.b16 %v2654
      %v2687 = vpack.c.b16 %v2672, %v2671
      %v2688 = vpack.c.b16 %v2674, %v2673
      %v2689 = vpack.c.b16 %v2676, %v2675
      %v2690 = vpack.c.b16 %v2678, %v2677
      %v2691 = vpack.c.b16 %v2680, %v2679
      %v2692 = vpack.c.b16 %v2682, %v2681
      %v2693 = vpack.c.b16 %v2684, %v2683
      %v2694 = vpack.c.b16 %v2686, %v2685
      %2703 = vmatprep.subr.bf16.mxu0 0
      %2704 = vmatpush1.bf16.msra.mxu0 %v2687
      %2705 = vmatprep.subr.bf16.mxu0 0
      %2706 = vmatpush1.bf16.msra.mxu0 %v2688
      %2707 = vmatprep.subr.bf16.mxu0 0
      %2708 = vmatpush1.bf16.msra.mxu0 %v2689
      %2709 = vmatprep.subr.bf16.mxu0 0
      %2710 = vmatpush1.bf16.msra.mxu0 %v2690
      %2711 = vmatprep.subr.bf16.mxu0 0
      %2712 = vmatpush1.bf16.msra.mxu0 %v2691
      %2713 = vmatprep.subr.bf16.mxu0 0
      %2714 = vmatpush1.bf16.msra.mxu0 %v2692
      %2715 = vmatprep.subr.bf16.mxu0 0
      %2716 = vmatpush1.bf16.msra.mxu0 %v2693
      %2717 = vmatprep.subr.bf16.mxu0 0
      %2718 = vmatpush1.bf16.msra.mxu0 %v2694
      %2719 = vmatprep.subr.bf16.mxu0 0
      %2720 = vmatpush1.bf16.msra.mxu0 0
      %2721 = vmatprep.subr.bf16.mxu0 0
      %2722 = vmatpush1.bf16.msra.mxu0 0
      %2723 = vmatprep.subr.bf16.mxu0 0
      %2724 = vmatpush1.bf16.msra.mxu0 0
      %2725 = vmatprep.subr.bf16.mxu0 0
      %2726 = vmatpush1.bf16.msra.mxu0 0
      %2727 = vmatprep.subr.bf16.mxu0 0
      %2728 = vmatpush1.bf16.msra.mxu0 0
      %2729 = vmatprep.subr.bf16.mxu0 0
      %2730 = vmatpush1.bf16.msra.mxu0 0
      %2731 = vmatprep.subr.bf16.mxu0 0
      %2732 = vmatpush1.bf16.msra.mxu0 0
      %2733 = vmatprep.subr.bf16.mxu0 0
      %2734 = vmatpush1.bf16.msra.mxu0 0
      %2735 = vmatprep.mubr.bf16.mxu0 0
      %2736 = vmatmul.mubr.bf16.gmra.mrb[0].mxu0 %v2630
      %v2737 = vpop.f32.mrb[0].mxu0
      %v2738 = vadd.f32 0.0, %v2737
      %v2739 = vpop.f32.mrb[0].mxu0
      %v2740 = vpop.f32.mrb[0].mxu0
      %v2741 = vadd.f32 0.0, %v2740
      %v2742 = vpop.f32.mrb[0].mxu0
      %2743 = vmatprep.mubr.bf16.mxu0 0
      %2744 = vmatmul.mubr.bf16.gmra.mrb[0].mxu0 %v2631
      %v2745 = vpop.f32.mrb[0].mxu0
      %v2746 = vadd.f32 0.0, %v2745
      %v2747 = vpop.f32.mrb[0].mxu0
      %v2748 = vpop.f32.mrb[0].mxu0
      %v2749 = vadd.f32 0.0, %v2748
      %v2750 = vpop.f32.mrb[0].mxu0
      %2751 = vmatprep.mubr.bf16.mxu0 0
      %2752 = vmatmul.mubr.bf16.gmra.mrb[0].mxu0 %v2632
      %v2753 = vpop.f32.mrb[0].mxu0
      %v2754 = vadd.f32 0.0, %v2753
      %v2755 = vpop.f32.mrb[0].mxu0
      %v2756 = vpop.f32.mrb[0].mxu0
      %v2757 = vadd.f32 0.0, %v2756
      %v2758 = vpop.f32.mrb[0].mxu0
      %2759 = vmatprep.mubr.bf16.mxu0 0
      %2760 = vmatmul.mubr.bf16.gmra.mrb[0].mxu0 %v2633
      %v2761 = vpop.f32.mrb[0].mxu0
      %v2762 = vadd.f32 0.0, %v2761
      %v2763 = vpop.f32.mrb[0].mxu0
      %v2764 = vpop.f32.mrb[0].mxu0
      %v2765 = vadd.f32 0.0, %v2764
      %v2766 = vpop.f32.mrb[0].mxu0
      %2767 = vmatprep.mubr.bf16.mxu0 0
      %2768 = vmatmul.mubr.bf16.gmra.mrb[0].mxu0 %v2634
      %v2769 = vpop.f32.mrb[0].mxu0
      %v2770 = vadd.f32 0.0, %v2769
      %v2771 = vpop.f32.mrb[0].mxu0
      %v2772 = vpop.f32.mrb[0].mxu0
      %v2773 = vadd.f32 0.0, %v2772
      %v2774 = vpop.f32.mrb[0].mxu0
      %2775 = vmatprep.mubr.bf16.mxu0 0
      %2776 = vmatmul.mubr.bf16.gmra.mrb[0].mxu0 %v2635
      %v2777 = vpop.f32.mrb[0].mxu0
      %v2778 = vadd.f32 0.0, %v2777
      %v2779 = vpop.f32.mrb[0].mxu0
      %v2780 = vpop.f32.mrb[0].mxu0
      %v2781 = vadd.f32 0.0, %v2780
      %v2782 = vpop.f32.mrb[0].mxu0
      %2783 = vmatprep.mubr.bf16.mxu0 0
      %2784 = vmatmul.mubr.bf16.gmra.mrb[0].mxu0 %v2636
      %v2785 = vpop.f32.mrb[0].mxu0
      %v2786 = vadd.f32 0.0, %v2785
      %v2787 = vpop.f32.mrb[0].mxu0
      %v2788 = vpop.f32.mrb[0].mxu0
      %v2789 = vadd.f32 0.0, %v2788
      %v2790 = vpop.f32.mrb[0].mxu0
      %2791 = vmatprep.mubr.bf16.mxu0 0
      %2792 = vmatmul.mubr.bf16.gmra.mrb[0].mxu0 %v2637
      %v2793 = vpop.f32.mrb[0].mxu0
      %v2794 = vadd.f32 0.0, %v2793
      %v2795 = vpop.f32.mrb[0].mxu0
      %v2796 = vpop.f32.mrb[0].mxu0
      %v2797 = vadd.f32 0.0, %v2796
      %v2798 = vpop.f32.mrb[0].mxu0
      %2799 = vdwg.mxu0
      %v2800 = vld [vmem:[#allocation5] sm:$0xff]
      %v2801 = vld [vmem:[#allocation5 + $0x8] sm:$0xff]
      %v2802 = vld [vmem:[#allocation5 + $0x10] sm:$0xff]
      %v2803 = vld [vmem:[#allocation5 + $0x18] sm:$0xff]
      %v2804 = vld [vmem:[#allocation5 + $0x20] sm:$0xff]
      %v2805 = vld [vmem:[#allocation5 + $0x28] sm:$0xff]
      %v2806 = vld [vmem:[#allocation5 + $0x30] sm:$0xff]
      %v2807 = vld [vmem:[#allocation5 + $0x38] sm:$0xff]
      %v2808 = vld [vmem:[#allocation5 + $0x40] sm:$0xff]
      %v2809 = vld [vmem:[#allocation5 + $0x48] sm:$0xff]
      %v2810 = vld [vmem:[#allocation5 + $0x50] sm:$0xff]
      %v2811 = vld [vmem:[#allocation5 + $0x58] sm:$0xff]
      %v2812 = vld [vmem:[#allocation5 + $0x60] sm:$0xff]
      %v2813 = vld [vmem:[#allocation5 + $0x68] sm:$0xff]
      %v2814 = vld [vmem:[#allocation5 + $0x70] sm:$0xff]
      %v2815 = vld [vmem:[#allocation5 + $0x78] sm:$0xff]
      %v2816 = vadd.f32 %v2800, %v2738
      %v2817 = vadd.f32 %v2801, %v2741
      %v2818 = vadd.f32 %v2802, %v2746
      %v2819 = vadd.f32 %v2803, %v2749
      %v2820 = vadd.f32 %v2804, %v2754
      %v2821 = vadd.f32 %v2805, %v2757
      %v2822 = vadd.f32 %v2806, %v2762
      %v2823 = vadd.f32 %v2807, %v2765
      %v2824 = vadd.f32 %v2808, %v2770
      %v2825 = vadd.f32 %v2809, %v2773
      %v2826 = vadd.f32 %v2810, %v2778
      %v2827 = vadd.f32 %v2811, %v2781
      %v2828 = vadd.f32 %v2812, %v2786
      %v2829 = vadd.f32 %v2813, %v2789
      %v2830 = vadd.f32 %v2814, %v2794
      %v2831 = vadd.f32 %v2815, %v2797
      %2832 = vst [vmem:[#allocation5] sm:$0xff] %v2816
      %2833 = vst [vmem:[#allocation5 + $0x8] sm:$0xff] %v2817
      %2834 = vst [vmem:[#allocation5 + $0x10] sm:$0xff] %v2818
      %2835 = vst [vmem:[#allocation5 + $0x18] sm:$0xff] %v2819
      %2836 = vst [vmem:[#allocation5 + $0x20] sm:$0xff] %v2820
      %2837 = vst [vmem:[#allocation5 + $0x28] sm:$0xff] %v2821
      %2838 = vst [vmem:[#allocation5 + $0x30] sm:$0xff] %v2822
      %2839 = vst [vmem:[#allocation5 + $0x38] sm:$0xff] %v2823
      %2840 = vst [vmem:[#allocation5 + $0x40] sm:$0xff] %v2824
      %2841 = vst [vmem:[#allocation5 + $0x48] sm:$0xff] %v2825
      %2842 = vst [vmem:[#allocation5 + $0x50] sm:$0xff] %v2826
      %2843 = vst [vmem:[#allocation5 + $0x58] sm:$0xff] %v2827
      %2844 = vst [vmem:[#allocation5 + $0x60] sm:$0xff] %v2828
      %2845 = vst [vmem:[#allocation5 + $0x68] sm:$0xff] %v2829
      %2846 = vst [vmem:[#allocation5 + $0x70] sm:$0xff] %v2830
      %2847 = vst [vmem:[#allocation5 + $0x78] sm:$0xff] %v2831
      %v2848 = vld [vmem:[#allocation5] sm:$0xff]
      %v2849 = vld [vmem:[#allocation5 + $0x8] sm:$0xff]
      %v2850 = vld [vmem:[#allocation5 + $0x10] sm:$0xff]
      %v2851 = vld [vmem:[#allocation5 + $0x18] sm:$0xff]
      %v2852 = vld [vmem:[#allocation5 + $0x20] sm:$0xff]
      %v2853 = vld [vmem:[#allocation5 + $0x28] sm:$0xff]
      %v2854 = vld [vmem:[#allocation5 + $0x30] sm:$0xff]
      %v2855 = vld [vmem:[#allocation5 + $0x38] sm:$0xff]
      %v2856 = vld [vmem:[#allocation5 + $0x40] sm:$0xff]
      %v2857 = vld [vmem:[#allocation5 + $0x48] sm:$0xff]
      %v2858 = vld [vmem:[#allocation5 + $0x50] sm:$0xff]
      %v2859 = vld [vmem:[#allocation5 + $0x58] sm:$0xff]
      %v2860 = vld [vmem:[#allocation5 + $0x60] sm:$0xff]
      %v2861 = vld [vmem:[#allocation5 + $0x68] sm:$0xff]
      %v2862 = vld [vmem:[#allocation5 + $0x70] sm:$0xff]
      %v2863 = vld [vmem:[#allocation5 + $0x78] sm:$0xff]
      %v2864 = vld [vmem:[%s4] sm:$0x1]
      %v2866 = vlaneseq
      %v2867 = vshrl.u32 %v2866, 7
      %v2868 = vsub.s32 0, %v2867
      %v2869 = vrot.slane %v2864, %v2868
      %v2871 = vadd.f32 %v2848, %v2869
      %v2872 = vadd.f32 %v2849, %v2869
      %v2873 = vadd.f32 %v2850, %v2869
      %v2874 = vadd.f32 %v2851, %v2869
      %v2875 = vadd.f32 %v2852, %v2869
      %v2876 = vadd.f32 %v2853, %v2869
      %v2877 = vadd.f32 %v2854, %v2869
      %v2878 = vadd.f32 %v2855, %v2869
      %v2879 = vadd.f32 %v2856, %v2869
      %v2880 = vadd.f32 %v2857, %v2869
      %v2881 = vadd.f32 %v2858, %v2869
      %v2882 = vadd.f32 %v2859, %v2869
      %v2883 = vadd.f32 %v2860, %v2869
      %v2884 = vadd.f32 %v2861, %v2869
      %v2885 = vadd.f32 %v2862, %v2869
      %v2886 = vadd.f32 %v2863, %v2869
      %v2887 = vmax.f32 %v2871, 0.0
      %v2888 = vmax.f32 %v2872, 0.0
      %v2889 = vmax.f32 %v2873, 0.0
      %v2890 = vmax.f32 %v2874, 0.0
      %v2891 = vmax.f32 %v2875, 0.0
      %v2892 = vmax.f32 %v2876, 0.0
      %v2893 = vmax.f32 %v2877, 0.0
      %v2894 = vmax.f32 %v2878, 0.0
      %v2895 = vmax.f32 %v2879, 0.0
      %v2896 = vmax.f32 %v2880, 0.0
      %v2897 = vmax.f32 %v2881, 0.0
      %v2898 = vmax.f32 %v2882, 0.0
      %v2899 = vmax.f32 %v2883, 0.0
      %v2900 = vmax.f32 %v2884, 0.0
      %v2901 = vmax.f32 %v2885, 0.0
      %v2902 = vmax.f32 %v2886, 0.0
      %v2903 = vpack.c.bf16 %v2888, %v2887
      %v2904 = vpack.c.bf16 %v2890, %v2889
      %v2905 = vpack.c.bf16 %v2892, %v2891
      %v2906 = vpack.c.bf16 %v2894, %v2893
      %v2907 = vpack.c.bf16 %v2896, %v2895
      %v2908 = vpack.c.bf16 %v2898, %v2897
      %v2909 = vpack.c.bf16 %v2900, %v2899
      %v2910 = vpack.c.bf16 %v2902, %v2901
      %s2911 = sadd.s32 %s305, 1
      %s2912 = smul.u32 %s2911, 32
      %s2913 = scalar_lea.vmem %s292, %s2912
      %v2914 = vld [vmem:[%s2913] sm:$0xff]
      %v2915 = vld [vmem:[%s2913 + $0x8] sm:$0xff]
      %v2916 = vld [vmem:[%s2913 + $0x10] sm:$0xff]
      %v2917 = vld [vmem:[%s2913 + $0x18] sm:$0xff]
      %v2918 = vld [vmem:[%s2913 + $0x20] sm:$0xff]
      %v2919 = vld [vmem:[%s2913 + $0x28] sm:$0xff]
      %v2920 = vld [vmem:[%s2913 + $0x30] sm:$0xff]
      %v2921 = vld [vmem:[%s2913 + $0x38] sm:$0xff]
      %v2922 = vld [vmem:[%s2913 + $0x40] sm:$0xff]
      %v2923 = vld [vmem:[%s2913 + $0x48] sm:$0xff]
      %v2924 = vld [vmem:[%s2913 + $0x50] sm:$0xff]
      %v2925 = vld [vmem:[%s2913 + $0x58] sm:$0xff]
      %v2926 = vld [vmem:[%s2913 + $0x60] sm:$0xff]
      %v2927 = vld [vmem:[%s2913 + $0x68] sm:$0xff]
      %v2928 = vld [vmem:[%s2913 + $0x70] sm:$0xff]
      %v2929 = vld [vmem:[%s2913 + $0x78] sm:$0xff]
      %v2930 = vld [vmem:[%s5] sm:$0xf]
      %v2931 = vld [vmem:[%s5 + $0x4] sm:$0xf]
      %v2932 = vld [vmem:[%s5 + $0x8] sm:$0xf]
      %v2933 = vld [vmem:[%s5 + $0xc] sm:$0xf]
      %v2934 = vld [vmem:[%s5 + $0x10] sm:$0xf]
      %v2935 = vld [vmem:[%s5 + $0x14] sm:$0xf]
      %v2936 = vld [vmem:[%s5 + $0x18] sm:$0xf]
      %v2937 = vld [vmem:[%s5 + $0x1c] sm:$0xf]
      %v2938 = vld [vmem:[%s5 + $0x20] sm:$0xf]
      %v2939 = vld [vmem:[%s5 + $0x24] sm:$0xf]
      %v2940 = vld [vmem:[%s5 + $0x28] sm:$0xf]
      %v2941 = vld [vmem:[%s5 + $0x2c] sm:$0xf]
      %v2942 = vld [vmem:[%s5 + $0x30] sm:$0xf]
      %v2943 = vld [vmem:[%s5 + $0x34] sm:$0xf]
      %v2944 = vld [vmem:[%s5 + $0x38] sm:$0xf]
      %v2945 = vld [vmem:[%s5 + $0x3c] sm:$0xf]
      %v2946 = vld [vmem:[%s6] sm:$0x1]
      %v2948 = vlaneseq
      %v2949 = vshrl.u32 %v2948, 7
      %v2950 = vsub.s32 0, %v2949
      %v2951 = vrot.slane %v2946, %v2950
      %v2969 = vunpack.c.l.b16 %v2930
      %v2970 = vunpack.c.l.b16 %v2931
      %v2971 = vunpack.c.l.b16 %v2932
      %v2972 = vunpack.c.l.b16 %v2933
      %v2973 = vunpack.c.l.b16 %v2934
      %v2974 = vunpack.c.l.b16 %v2935
      %v2975 = vunpack.c.l.b16 %v2936
      %v2976 = vunpack.c.l.b16 %v2937
      %v2977 = vunpack.c.l.b16 %v2938
      %v2978 = vunpack.c.l.b16 %v2939
      %v2979 = vunpack.c.l.b16 %v2940
      %v2980 = vunpack.c.l.b16 %v2941
      %v2981 = vunpack.c.l.b16 %v2942
      %v2982 = vunpack.c.l.b16 %v2943
      %v2983 = vunpack.c.l.b16 %v2944
      %v2984 = vunpack.c.l.b16 %v2945
      %v2985 = vpack.c.b16 %v2970, %v2969
      %v2986 = vpack.c.b16 %v2972, %v2971
      %v2987 = vpack.c.b16 %v2974, %v2973
      %v2988 = vpack.c.b16 %v2976, %v2975
      %v2989 = vpack.c.b16 %v2978, %v2977
      %v2990 = vpack.c.b16 %v2980, %v2979
      %v2991 = vpack.c.b16 %v2982, %v2981
      %v2992 = vpack.c.b16 %v2984, %v2983
      %3001 = vmatprep.subr.bf16.mxu0 0
      %3002 = vmatpush1.bf16.msra.mxu0 %v2985
      %3003 = vmatprep.subr.bf16.mxu0 0
      %3004 = vmatpush1.bf16.msra.mxu0 %v2986
      %3005 = vmatprep.subr.bf16.mxu0 0
      %3006 = vmatpush1.bf16.msra.mxu0 %v2987
      %3007 = vmatprep.subr.bf16.mxu0 0
      %3008 = vmatpush1.bf16.msra.mxu0 %v2988
      %3009 = vmatprep.subr.bf16.mxu0 0
      %3010 = vmatpush1.bf16.msra.mxu0 %v2989
      %3011 = vmatprep.subr.bf16.mxu0 0
      %3012 = vmatpush1.bf16.msra.mxu0 %v2990
      %3013 = vmatprep.subr.bf16.mxu0 0
      %3014 = vmatpush1.bf16.msra.mxu0 %v2991
      %3015 = vmatprep.subr.bf16.mxu0 0
      %3016 = vmatpush1.bf16.msra.mxu0 %v2992
      %3017 = vmatprep.subr.bf16.mxu0 0
      %3018 = vmatpush1.bf16.msra.mxu0 0
      %3019 = vmatprep.subr.bf16.mxu0 0
      %3020 = vmatpush1.bf16.msra.mxu0 0
      %3021 = vmatprep.subr.bf16.mxu0 0
      %3022 = vmatpush1.bf16.msra.mxu0 0
      %3023 = vmatprep.subr.bf16.mxu0 0
      %3024 = vmatpush1.bf16.msra.mxu0 0
      %3025 = vmatprep.subr.bf16.mxu0 0
      %3026 = vmatpush1.bf16.msra.mxu0 0
      %3027 = vmatprep.subr.bf16.mxu0 0
      %3028 = vmatpush1.bf16.msra.mxu0 0
      %3029 = vmatprep.subr.bf16.mxu0 0
      %3030 = vmatpush1.bf16.msra.mxu0 0
      %3031 = vmatprep.subr.bf16.mxu0 0
      %3032 = vmatpush1.bf16.msra.mxu0 0
      %3033 = vmatprep.mubr.bf16.mxu0 0
      %3034 = vmatmul.mubr.bf16.gmra.mrb[0].mxu0 %v2903
      %v3035 = vpop.f32.mrb[0].mxu0
      %v3036 = vadd.f32 %v2951, %v3035
      %v3037 = vpop.f32.mrb[0].mxu0
      %v3038 = vpop.f32.mrb[0].mxu0
      %v3039 = vadd.f32 %v2951, %v3038
      %v3040 = vpop.f32.mrb[0].mxu0
      %3041 = vmatprep.mubr.bf16.mxu0 0
      %3042 = vmatmul.mubr.bf16.gmra.mrb[0].mxu0 %v2904
      %v3043 = vpop.f32.mrb[0].mxu0
      %v3044 = vadd.f32 %v2951, %v3043
      %v3045 = vpop.f32.mrb[0].mxu0
      %v3046 = vpop.f32.mrb[0].mxu0
      %v3047 = vadd.f32 %v2951, %v3046
      %v3048 = vpop.f32.mrb[0].mxu0
      %3049 = vmatprep.mubr.bf16.mxu0 0
      %3050 = vmatmul.mubr.bf16.gmra.mrb[0].mxu0 %v2905
      %v3051 = vpop.f32.mrb[0].mxu0
      %v3052 = vadd.f32 %v2951, %v3051
      %v3053 = vpop.f32.mrb[0].mxu0
      %v3054 = vpop.f32.mrb[0].mxu0
      %v3055 = vadd.f32 %v2951, %v3054
      %v3056 = vpop.f32.mrb[0].mxu0
      %3057 = vmatprep.mubr.bf16.mxu0 0
      %3058 = vmatmul.mubr.bf16.gmra.mrb[0].mxu0 %v2906
      %v3059 = vpop.f32.mrb[0].mxu0
      %v3060 = vadd.f32 %v2951, %v3059
      %v3061 = vpop.f32.mrb[0].mxu0
      %v3062 = vpop.f32.mrb[0].mxu0
      %v3063 = vadd.f32 %v2951, %v3062
      %v3064 = vpop.f32.mrb[0].mxu0
      %3065 = vmatprep.mubr.bf16.mxu0 0
      %3066 = vmatmul.mubr.bf16.gmra.mrb[0].mxu0 %v2907
      %v3067 = vpop.f32.mrb[0].mxu0
      %v3068 = vadd.f32 %v2951, %v3067
      %v3069 = vpop.f32.mrb[0].mxu0
      %v3070 = vpop.f32.mrb[0].mxu0
      %v3071 = vadd.f32 %v2951, %v3070
      %v3072 = vpop.f32.mrb[0].mxu0
      %3073 = vmatprep.mubr.bf16.mxu0 0
      %3074 = vmatmul.mubr.bf16.gmra.mrb[0].mxu0 %v2908
      %v3075 = vpop.f32.mrb[0].mxu0
      %v3076 = vadd.f32 %v2951, %v3075
      %v3077 = vpop.f32.mrb[0].mxu0
      %v3078 = vpop.f32.mrb[0].mxu0
      %v3079 = vadd.f32 %v2951, %v3078
      %v3080 = vpop.f32.mrb[0].mxu0
      %3081 = vmatprep.mubr.bf16.mxu0 0
      %3082 = vmatmul.mubr.bf16.gmra.mrb[0].mxu0 %v2909
      %v3083 = vpop.f32.mrb[0].mxu0
      %v3084 = vadd.f32 %v2951, %v3083
      %v3085 = vpop.f32.mrb[0].mxu0
      %v3086 = vpop.f32.mrb[0].mxu0
      %v3087 = vadd.f32 %v2951, %v3086
      %v3088 = vpop.f32.mrb[0].mxu0
      %3089 = vmatprep.mubr.bf16.mxu0 0
      %3090 = vmatmul.mubr.bf16.gmra.mrb[0].mxu0 %v2910
      %v3091 = vpop.f32.mrb[0].mxu0
      %v3092 = vadd.f32 %v2951, %v3091
      %v3093 = vpop.f32.mrb[0].mxu0
      %v3094 = vpop.f32.mrb[0].mxu0
      %v3095 = vadd.f32 %v2951, %v3094
      %v3096 = vpop.f32.mrb[0].mxu0
      %3097 = vdwg.mxu0
      %v3098 = vadd.f32 %v3036, %v2914
      %v3099 = vadd.f32 %v3039, %v2915
      %v3100 = vadd.f32 %v3044, %v2916
      %v3101 = vadd.f32 %v3047, %v2917
      %v3102 = vadd.f32 %v3052, %v2918
      %v3103 = vadd.f32 %v3055, %v2919
      %v3104 = vadd.f32 %v3060, %v2920
      %v3105 = vadd.f32 %v3063, %v2921
      %v3106 = vadd.f32 %v3068, %v2922
      %v3107 = vadd.f32 %v3071, %v2923
      %v3108 = vadd.f32 %v3076, %v2924
      %v3109 = vadd.f32 %v3079, %v2925
      %v3110 = vadd.f32 %v3084, %v2926
      %v3111 = vadd.f32 %v3087, %v2927
      %v3112 = vadd.f32 %v3092, %v2928
      %v3113 = vadd.f32 %v3095, %v2929
      %v3114 = vmax.f32 %v3098, 0.0
      %v3115 = vmax.f32 %v3099, 0.0
      %v3116 = vmax.f32 %v3100, 0.0
      %v3117 = vmax.f32 %v3101, 0.0
      %v3118 = vmax.f32 %v3102, 0.0
      %v3119 = vmax.f32 %v3103, 0.0
      %v3120 = vmax.f32 %v3104, 0.0
      %v3121 = vmax.f32 %v3105, 0.0
      %v3122 = vmax.f32 %v3106, 0.0
      %v3123 = vmax.f32 %v3107, 0.0
      %v3124 = vmax.f32 %v3108, 0.0
      %v3125 = vmax.f32 %v3109, 0.0
      %v3126 = vmax.f32 %v3110, 0.0
      %v3127 = vmax.f32 %v3111, 0.0
      %v3128 = vmax.f32 %v3112, 0.0
      %v3129 = vmax.f32 %v3113, 0.0
      %3130 = vst [vmem:[%s302] sm:$0xff] %v3114
      %3131 = vst [vmem:[%s302 + $0x8] sm:$0xff] %v3115
      %3132 = vst [vmem:[%s302 + $0x10] sm:$0xff] %v3116
      %3133 = vst [vmem:[%s302 + $0x18] sm:$0xff] %v3117
      %3134 = vst [vmem:[%s302 + $0x20] sm:$0xff] %v3118
      %3135 = vst [vmem:[%s302 + $0x28] sm:$0xff] %v3119
      %3136 = vst [vmem:[%s302 + $0x30] sm:$0xff] %v3120
      %3137 = vst [vmem:[%s302 + $0x38] sm:$0xff] %v3121
      %3138 = vst [vmem:[%s302 + $0x40] sm:$0xff] %v3122
      %3139 = vst [vmem:[%s302 + $0x48] sm:$0xff] %v3123
      %3140 = vst [vmem:[%s302 + $0x50] sm:$0xff] %v3124
      %3141 = vst [vmem:[%s302 + $0x58] sm:$0xff] %v3125
      %3142 = vst [vmem:[%s302 + $0x60] sm:$0xff] %v3126
      %3143 = vst [vmem:[%s302 + $0x68] sm:$0xff] %v3127
      %3144 = vst [vmem:[%s302 + $0x70] sm:$0xff] %v3128
      %3145 = vst [vmem:[%s302 + $0x78] sm:$0xff] %v3129
      %s3146 = smul.u32 4, %s23
      %p3147 = scmp.lt.s32.totalorder %s22, 1
      %s3148 = scalar_select %p3147, %s22, 1
      %p3149 = scmp.lt.s32.totalorder %s3146, 15
      %s3150 = scalar_select %p3149, %s3146, 15
      %s3151 = smul.addr %s3150, 4
      %s3152 = smul.addr %s3148, 64
      %s3153 = sadd.s32 %s3151, %s3152
      %s3154 = smul.addr %s3153, 8
      %s3155 = scalar_lea.vmem %s7, %s3154
      // Predicated region
      $region49: #{bottleneck_forward.1} parent=47 // pred_check
        %p3156 = pneg %p202
      $region50: #{bottleneck_forward.1} parent=47 // pred_check_branch
        %3158 = sbr.rel (%p3156) target = $region52
      $region51: #{bottleneck_forward.1} parent=47 // pred_region
        %s3159 = smul.u32 4, %s23
      $region52: #{bottleneck_forward.1} parent=47 // pred_fallthru
        _
    $region48: #{bottleneck_forward.1} parent=5 // pred_fallthru
      _
    %p3160 = scmp.le.s32.totalorder 2, %s13
    // Predicated region
    $region53: #{bottleneck_forward.1} parent=5 // pred_check
      %p3161 = pneg %p3160
    $region54: #{bottleneck_forward.1} parent=5 // pred_check_branch
      %3163 = sbr.rel (%p3161) target = $region56
    $region55: #{bottleneck_forward.1} parent=5 // pred_region
      %s3164 = ssub.s32 %s13, 2
      // Predicated region
      $region57: #{bottleneck_forward.1} parent=55 // pred_check
        %p3165 = pneg %p208
      $region58: #{bottleneck_forward.1} parent=55 // pred_check_branch
        %3167 = sbr.rel (%p3165) target = $region60
      $region59: #{bottleneck_forward.1} parent=55 // pred_region
        %s3168 = smul.u32 4, %s25
        %p3169 = scmp.lt.s32.totalorder %s24, 1
        %s3170 = scalar_select %p3169, %s24, 1
        %p3171 = scmp.lt.s32.totalorder %s3168, 15
        %s3172 = scalar_select %p3171, %s3168, 15
        %s3173 = smul.addr %s3172, 4
        %s3174 = smul.addr %s3170, 64
        %s3175 = sadd.s32 %s3173, %s3174
        %s3176 = smul.addr %s3175, 8
        %s3177 = scalar_lea.vmem %s7, %s3176
      $region60: #{bottleneck_forward.1} parent=55 // pred_fallthru
        _
    $region56: #{bottleneck_forward.1} parent=5 // pred_fallthru
      _
  $region6: #{bottleneck_forward.1} parent=0 // loop_footer
    %s17 = sadd.s32 1, %s13
  $region7: #{bottleneck_forward.1} parent=0 // loop_footer_branch
    %12 = sbr.rel target = $region3
  $region8: #{bottleneck_forward.1} parent=0 // loop_exit
    _

</llo_original>
